<compile_context>
chip_gen: v5e
topology: v5e:2x2
jax: 0.10.0
libtpu: 0.0.40
codegen_flags: <defaults>
</compile_context>

<pallas_src>
import functools
import math

import jax
import jax.numpy as jnp
from jax import lax
from jax.experimental import pallas as pl
from jax.experimental.pallas import tpu as pltpu

LN_EPS = 1e-5


def _layer_norm(x, gamma, beta):
    # x: (rows, E); gamma/beta: (E,)  -- matches torch.nn.LayerNorm (biased var)
    mean = jnp.mean(x, axis=-1, keepdims=True)
    var = jnp.mean((x - mean) ** 2, axis=-1, keepdims=True)
    return (x - mean) * lax.rsqrt(var + LN_EPS) * gamma + beta


def encoder_block_kernel(num_heads,
                         xq_ref, xf_ref,            # query tile / full sequence
                         g1_ref, b1_ref,            # LayerNorm 1
                         wq_ref, wk_ref, wv_ref,    # fused (E, E) head projections (bf16)
                         wo_ref,                    # (E, E) output projection (bf16)
                         g2_ref, b2_ref,            # LayerNorm 2
                         w1_ref, bf1_ref,           # FF linear_1: (E, F) bf16, (1, F) f32
                         w2_ref, bf2_ref,           # FF linear_2: (F, E) bf16, (1, E) f32
                         o_ref,
                         k_scr, v_scr,              # persistent (S, E) bf16 K / V
                         att_scr):                  # (TQ, E) bf16 head-output staging
    f32 = jnp.float32
    bf16 = jnp.bfloat16

    g1 = g1_ref[0]
    b1 = b1_ref[0]

    # ---- K/V hoist: LN1(full seq) + K/V projections once per batch ----------
    # Scratch persists across the q grid axis ("arbitrary"); recomputed only when
    # the batch index changes (q resets to 0).
    @pl.when(pl.program_id(1) == 0)
    def _():
        xnf = _layer_norm(xf_ref[0], g1, b1).astype(bf16)                 # (S, E)
        k_scr[...] = jnp.dot(xnf, wk_ref[...],
                             preferred_element_type=f32).astype(bf16)
        v_scr[...] = jnp.dot(xnf, wv_ref[...],
                             preferred_element_type=f32).astype(bf16)

    xq = xq_ref[0]                                   # (TQ, E) query/residual tile, f32
    E = xq.shape[-1]
    A = E // num_heads

    # ---- residual block 1: x + MHA(LN1(x)) ----
    xnq = _layer_norm(xq, g1, b1)                    # (TQ, E)
    # wq is pre-scaled by 1/sqrt(A) at init -> no in-kernel score scaling needed.
    qb = jnp.dot(xnq.astype(bf16), wq_ref[...],
                 preferred_element_type=f32).astype(bf16)                 # (TQ, E)
    kb = k_scr[...]                                  # (S, E) bf16
    vb = v_scr[...]                                  # (S, E) bf16

    # Per-head attention core (small static loop).  Head h lives in lanes
    # [h*A, (h+1)*A); outputs are written straight into the contiguous staging.
    for h in range(num_heads):
        sl = slice(h * A, (h + 1) * A)
        # scores: contract on the head dim directly -- no explicit k.T transpose
        s = lax.dot_general(qb[:, sl], kb[:, sl],
                            (((1,), (1,)), ((), ())),
                            preferred_element_type=f32)                   # (TQ, S)
        s = s - jnp.max(s, axis=-1, keepdims=True)                        # softmax over keys
        p = jnp.exp(s)
        p = p / jnp.sum(p, axis=-1, keepdims=True)                        # exact divide
        att_scr[:, sl] = jnp.dot(p.astype(bf16), vb[:, sl],
                                 preferred_element_type=f32).astype(bf16)  # (TQ, A)

    mha = jnp.dot(att_scr[...], wo_ref[...], preferred_element_type=f32)
    y1 = xq + mha

    # ---- residual block 2: y1 + FF(LN2(y1)) ----
    yn = _layer_norm(y1, g2_ref[0], b2_ref[0])
    h1 = jnp.maximum(
        jnp.dot(yn.astype(bf16), w1_ref[...], preferred_element_type=f32) + bf1_ref[0],
        0.0)
    ff = jnp.dot(h1.astype(bf16), w2_ref[...], preferred_element_type=f32) + bf2_ref[0]

    o_ref[0] = y1 + ff


def _vmem_limit_bytes():
    # ~13/16 of physical per-core VMEM: 128 MiB -> ~104 MiB (v5e/v6e),
    # 64 MiB -> ~52 MiB (v7x).  Leaves headroom for compiler scratch / DMA bufs.
    try:
        cap = int(pltpu.get_tpu_info().vmem_capacity_bytes)
        return (cap * 13) // 16
    except Exception:
        return None    # let the compiler default apply


def _build_encoder_call(B, S, E, F, TQ, n_q, num_heads, *,
                        single_buffer_weights, vmem_limit):
    def weight_spec(shape):
        # Grid-invariant block: same tile every step -> never re-fetched; request
        # a single VMEM buffer so the unused second copy doesn't waste VMEM.
        index_map = lambda b, q, _shape=shape: tuple(0 for _ in _shape)
        if single_buffer_weights:
            return pl.BlockSpec(shape, index_map, pipeline_mode=pl.Buffered(1))
        return pl.BlockSpec(shape, index_map)

    # Advisory cost estimate (matches actual work: K/V projected once per batch).
    flops = B * (8 * S * E * E + 4 * S * S * E + 4 * S * E * F)
    transcendentals = B * num_heads * S * S
    bytes_accessed = (3 * B * S * E * 4                     # x (tiles) + x (full) + out, f32
                      + (4 * E * E + 2 * E * F) * 2         # bf16 matmul weights
                      + (5 * E + F) * 4)                    # LN params + biases, f32

    kernel = functools.partial(encoder_block_kernel, num_heads)

    return pl.pallas_call(
        kernel,
        out_shape=jax.ShapeDtypeStruct((B, S, E), jnp.float32),
        grid_spec=pltpu.PrefetchScalarGridSpec(
            num_scalar_prefetch=0,
            grid=(B, n_q),
            in_specs=[
                pl.BlockSpec((1, TQ, E), lambda b, q: (b, q, 0)),   # x (query tile)
                pl.BlockSpec((1, S, E), lambda b, q: (b, 0, 0)),    # x (full seq, K/V source)
                weight_spec((1, E)), weight_spec((1, E)),           # LN1 gamma/beta
                weight_spec((E, E)), weight_spec((E, E)),           # Wq, Wk (fused heads)
                weight_spec((E, E)), weight_spec((E, E)),           # Wv, Wo
                weight_spec((1, E)), weight_spec((1, E)),           # LN2 gamma/beta
                weight_spec((E, F)), weight_spec((1, F)),           # FF linear_1
                weight_spec((F, E)), weight_spec((1, E)),           # FF linear_2
            ],
            out_specs=pl.BlockSpec((1, TQ, E), lambda b, q: (b, q, 0)),
            scratch_shapes=[
                pltpu.VMEM((S, E), jnp.bfloat16),    # K (persists across query tiles)
                pltpu.VMEM((S, E), jnp.bfloat16),    # V (persists across query tiles)
                pltpu.VMEM((TQ, E), jnp.bfloat16),   # head-output staging
            ]),
        compiler_params=pltpu.CompilerParams(
            # batch is the parallel (megacore-shardable) axis; the q axis carries
            # the K/V scratch across iterations so it must be "arbitrary".
            dimension_semantics=("parallel", "arbitrary"),
            vmem_limit_bytes=vmem_limit),
        cost_estimate=pl.CostEstimate(
            flops=flops,
            transcendentals=transcendentals,
            bytes_accessed=bytes_accessed),
    )


def encoder_block(x, params, num_heads, *, q_tile=512):
    B, S, E = x.shape
    F = params["w1"].shape[1]

    TQ = S if S <= q_tile else q_tile
    assert S % TQ == 0, "sequence length must be a multiple of the query tile"
    n_q = S // TQ

    vmem_limit = _vmem_limit_bytes()
    args = (x, x,
            params["ln1_g"], params["ln1_b"],
            params["wq"], params["wk"], params["wv"], params["wo"],
            params["ln2_g"], params["ln2_b"],
            params["w1"], params["b1"], params["w2"], params["b2"])

    try:
        call = _build_encoder_call(B, S, E, F, TQ, n_q, num_heads,
                                   single_buffer_weights=True,
                                   vmem_limit=vmem_limit)
        return jax.block_until_ready(call(*args))
    except Exception:
        # Fallback: some jax/libtpu builds may reject pl.Buffered(1); rerun with
        # default double-buffering (correctness identical, slightly more VMEM).
        call = _build_encoder_call(B, S, E, F, TQ, n_q, num_heads,
                                   single_buffer_weights=False,
                                   vmem_limit=vmem_limit)
        return jax.block_until_ready(call(*args))


def init_params(key, num_heads, embedding_size, feed_forward_size):
    E, H, F = embedding_size, num_heads, feed_forward_size
    A = E // H
    ks = jax.random.split(key, 8)
    bf16 = jnp.bfloat16

    def u(k, shape, fan_in):
        bound = 1.0 / math.sqrt(fan_in)
        return jax.random.uniform(k, shape, jnp.float32, -bound, bound)

    return {
        # LayerNorm defaults (gamma=1, beta=0), stored (1, E) for lane layout, f32
        "ln1_g": jnp.ones((1, E), jnp.float32),
        "ln1_b": jnp.zeros((1, E), jnp.float32),
        "ln2_g": jnp.ones((1, E), jnp.float32),
        "ln2_b": jnp.zeros((1, E), jnp.float32),
        # fused projections: column block [h*A:(h+1)*A] == head h's torch W.T, bf16.
        # wq pre-folds the 1/sqrt(A) softmax norm factor (one-time weight transform).
        "wq": (u(ks[0], (E, E), E) / math.sqrt(A)).astype(bf16),
        "wk": u(ks[1], (E, E), E).astype(bf16),
        "wv": u(ks[2], (E, E), E).astype(bf16),
        # output projection (E, E) == torch W.T, bf16
        "wo": u(ks[3], (E, E), E).astype(bf16),
        # feed-forward (weights bf16, biases f32)
        "w1": u(ks[4], (E, F), E).astype(bf16),
        "b1": u(ks[5], (1, F), E).astype(jnp.float32),
        "w2": u(ks[6], (F, E), F).astype(bf16),
        "b2": u(ks[7], (1, E), F).astype(jnp.float32),
    }


def encoder_block_ref(x, p, num_heads):
    # Pure-JAX reference mirroring the kernel's mixed-precision policy:
    # bf16 MXU inputs / f32 accumulation, f32 LayerNorm / softmax / residuals.
    bf16 = jnp.bfloat16
    f32 = jnp.float32

    def ln(v, g, b):
        m = jnp.mean(v, axis=-1, keepdims=True)
        s = jnp.mean((v - m) ** 2, axis=-1, keepdims=True)
        return (v - m) / jnp.sqrt(s + LN_EPS) * g[0] + b[0]

    def mm(a, w):
        return jnp.dot(a.astype(bf16), w, preferred_element_type=f32)

    E = x.shape[-1]
    A = E // num_heads
    xn = ln(x, p["ln1_g"], p["ln1_b"])
    q = mm(xn, p["wq"])            # wq already folds 1/sqrt(A)
    k = mm(xn, p["wk"])
    v = mm(xn, p["wv"])
    heads = []
    for h in range(num_heads):
        sl = slice(h * A, (h + 1) * A)
        s = jnp.einsum("bqa,bka->bqk", q[..., sl].astype(bf16), k[..., sl].astype(bf16),
                       preferred_element_type=f32)
        pr = jax.nn.softmax(s, axis=-1)
        heads.append(jnp.einsum("bqk,bka->bqa", pr.astype(bf16), v[..., sl].astype(bf16),
                                preferred_element_type=f32))
    att = jnp.concatenate(heads, axis=-1).astype(bf16)
    y1 = x + jnp.dot(att, p["wo"], preferred_element_type=f32)
    yn = ln(y1, p["ln2_g"], p["ln2_b"])
    h1 = jnp.maximum(mm(yn, p["w1"]) + p["b1"][0], 0.0)
    return y1 + mm(h1, p["w2"]) + p["b2"][0]


if __name__ == "__main__":
    B, S = 2, 8
    NUM_HEADS, EMBED, FF = 4, 32, 64

    key = jax.random.PRNGKey(0)
    kx, kp = jax.random.split(key)
    x = jax.random.normal(kx, (B, S, EMBED), jnp.float32)
    params = init_params(kp, NUM_HEADS, EMBED, FF)

    out = jax.block_until_ready(encoder_block(x, params, NUM_HEADS))

    ref = encoder_block_ref(x, params, NUM_HEADS)
    assert out.shape == (B, S, EMBED)
    # Tolerance covers MXU vs XLA accumulation order under the shared bf16-input /
    # f32-accumulation policy (softmax is computed exactly in both paths).
    assert jnp.allclose(out, ref, atol=2e-2, rtol=2e-2), "mismatch vs JAX reference"

    print("KERNEL_OK")
</pallas_src>

<mosaic_0001>
module attributes {stable_mosaic.version = 11 : i64} {
  func.func @encoder_block_kernel(%arg0: i32, %arg1: i32, %arg2: memref<1x8x32xf32, #tpu.memory_space<vmem>>, %arg3: memref<1x8x32xf32, #tpu.memory_space<vmem>>, %arg4: memref<1x32xf32, #tpu.memory_space<vmem>>, %arg5: memref<1x32xf32, #tpu.memory_space<vmem>>, %arg6: memref<32x32xbf16, #tpu.memory_space<vmem>>, %arg7: memref<32x32xbf16, #tpu.memory_space<vmem>>, %arg8: memref<32x32xbf16, #tpu.memory_space<vmem>>, %arg9: memref<32x32xbf16, #tpu.memory_space<vmem>>, %arg10: memref<1x32xf32, #tpu.memory_space<vmem>>, %arg11: memref<1x32xf32, #tpu.memory_space<vmem>>, %arg12: memref<32x64xbf16, #tpu.memory_space<vmem>>, %arg13: memref<1x64xf32, #tpu.memory_space<vmem>>, %arg14: memref<64x32xbf16, #tpu.memory_space<vmem>>, %arg15: memref<1x32xf32, #tpu.memory_space<vmem>>, %arg16: memref<1x8x32xf32, #tpu.memory_space<vmem>>, %arg17: memref<8x32xbf16, #tpu.memory_space<vmem>>, %arg18: memref<8x32xbf16, #tpu.memory_space<vmem>>, %arg19: memref<8x32xbf16, #tpu.memory_space<vmem>>) attributes {dimension_semantics = [#tpu.dimension_semantics<parallel>, #tpu.dimension_semantics<arbitrary>], iteration_bounds = array<i64: 2, 1>, scalar_prefetch = 0 : i64, scratch_operands = 3 : i64, tpu.core_type = #tpu.core_type<tc>, window_params = [{transform_indices = @transform_0, window_bounds = array<i64: 1, 8, 32>}, {transform_indices = @transform_1, window_bounds = array<i64: 1, 8, 32>}, {pipeline_mode = #tpu.pipeline_mode<synchronous>, transform_indices = @transform_2, window_bounds = array<i64: 1, 32>}, {pipeline_mode = #tpu.pipeline_mode<synchronous>, transform_indices = @transform_3, window_bounds = array<i64: 1, 32>}, {pipeline_mode = #tpu.pipeline_mode<synchronous>, transform_indices = @transform_4, window_bounds = array<i64: 32, 32>}, {pipeline_mode = #tpu.pipeline_mode<synchronous>, transform_indices = @transform_5, window_bounds = array<i64: 32, 32>}, {pipeline_mode = #tpu.pipeline_mode<synchronous>, transform_indices = @transform_6, window_bounds = array<i64: 32, 32>}, {pipeline_mode = #tpu.pipeline_mode<synchronous>, transform_indices = @transform_7, window_bounds = array<i64: 32, 32>}, {pipeline_mode = #tpu.pipeline_mode<synchronous>, transform_indices = @transform_8, window_bounds = array<i64: 1, 32>}, {pipeline_mode = #tpu.pipeline_mode<synchronous>, transform_indices = @transform_9, window_bounds = array<i64: 1, 32>}, {pipeline_mode = #tpu.pipeline_mode<synchronous>, transform_indices = @transform_10, window_bounds = array<i64: 32, 64>}, {pipeline_mode = #tpu.pipeline_mode<synchronous>, transform_indices = @transform_11, window_bounds = array<i64: 1, 64>}, {pipeline_mode = #tpu.pipeline_mode<synchronous>, transform_indices = @transform_12, window_bounds = array<i64: 64, 32>}, {pipeline_mode = #tpu.pipeline_mode<synchronous>, transform_indices = @transform_13, window_bounds = array<i64: 1, 32>}, {transform_indices = @transform_14, window_bounds = array<i64: 1, 8, 32>}]} {
    %c0 = arith.constant 0 : index
    %c0_0 = arith.constant 0 : index
    %0 = vector.load %arg4[%c0, %c0_0] : memref<1x32xf32, #tpu.memory_space<vmem>>, vector<1x32xf32>
    %1 = vector.shape_cast %0 : vector<1x32xf32> to vector<32xf32>
    %c0_1 = arith.constant 0 : index
    %c0_2 = arith.constant 0 : index
    %2 = vector.load %arg5[%c0_1, %c0_2] : memref<1x32xf32, #tpu.memory_space<vmem>>, vector<1x32xf32>
    %3 = vector.shape_cast %2 : vector<1x32xf32> to vector<32xf32>
    %c0_i32 = arith.constant 0 : i32
    %4 = arith.cmpi eq, %arg1, %c0_i32 : i32
    %5 = arith.extui %4 : i1 to i32
    %c0_i32_3 = arith.constant 0 : i32
    %6 = arith.cmpi ne, %5, %c0_i32_3 : i32
    scf.if %6 {
      %c0_67 = arith.constant 0 : index
      %c0_68 = arith.constant 0 : index
      %c0_69 = arith.constant 0 : index
      %161 = vector.load %arg3[%c0_67, %c0_68, %c0_69] : memref<1x8x32xf32, #tpu.memory_space<vmem>>, vector<1x8x32xf32>
      %162 = vector.shape_cast %161 : vector<1x8x32xf32> to vector<8x32xf32>
      %cst_70 = arith.constant dense<0.000000e+00> : vector<8xf32>
      %163 = vector.multi_reduction <add>, %162, %cst_70 [1] : vector<8x32xf32> to vector<8xf32>
      %164 = vector.shape_cast %163 : vector<8xf32> to vector<8x1xf32>
      %cst_71 = arith.constant 3.200000e+01 : f32
      %165 = vector.broadcast %cst_71 : f32 to vector<8x1xf32>
      %166 = arith.divf %164, %165 : vector<8x1xf32>
      %167 = vector.broadcast %166 : vector<8x1xf32> to vector<8x32xf32>
      %168 = arith.subf %162, %167 : vector<8x32xf32>
      %169 = arith.mulf %168, %168 : vector<8x32xf32>
      %cst_72 = arith.constant dense<0.000000e+00> : vector<8xf32>
      %170 = vector.multi_reduction <add>, %169, %cst_72 [1] : vector<8x32xf32> to vector<8xf32>
      %171 = vector.shape_cast %170 : vector<8xf32> to vector<8x1xf32>
      %cst_73 = arith.constant 3.200000e+01 : f32
      %172 = vector.broadcast %cst_73 : f32 to vector<8x1xf32>
      %173 = arith.divf %171, %172 : vector<8x1xf32>
      %174 = vector.broadcast %166 : vector<8x1xf32> to vector<8x32xf32>
      %175 = arith.subf %162, %174 : vector<8x32xf32>
      %cst_74 = arith.constant 9.99999974E-6 : f32
      %176 = vector.broadcast %cst_74 : f32 to vector<8x1xf32>
      %177 = arith.addf %173, %176 : vector<8x1xf32>
      %178 = math.rsqrt %177 : vector<8x1xf32>
      %179 = vector.broadcast %178 : vector<8x1xf32> to vector<8x32xf32>
      %180 = arith.mulf %175, %179 : vector<8x32xf32>
      %181 = vector.shape_cast %1 : vector<32xf32> to vector<1x32xf32>
      %182 = vector.broadcast %181 : vector<1x32xf32> to vector<8x32xf32>
      %183 = arith.mulf %180, %182 : vector<8x32xf32>
      %184 = vector.shape_cast %3 : vector<32xf32> to vector<1x32xf32>
      %185 = vector.broadcast %184 : vector<1x32xf32> to vector<8x32xf32>
      %186 = arith.addf %183, %185 : vector<8x32xf32>
      %187 = arith.truncf %186 : vector<8x32xf32> to vector<8x32xbf16>
      %c0_75 = arith.constant 0 : index
      %c0_76 = arith.constant 0 : index
      %188 = vector.load %arg7[%c0_75, %c0_76] : memref<32x32xbf16, #tpu.memory_space<vmem>>, vector<32x32xbf16>
      %cst_77 = arith.constant dense<0.000000e+00> : vector<8x32xf32>
      %189 = tpu.matmul %187, %188, %cst_77 {dimension_numbers = #tpu.dot_dimension_numbers<[1], [0], [0], [1], [0, 0, 1, 1], [], []>} : vector<8x32xbf16>, vector<32x32xbf16>, vector<8x32xf32> -> vector<8x32xf32>
      %190 = arith.truncf %189 : vector<8x32xf32> to vector<8x32xbf16>
      %c0_78 = arith.constant 0 : index
      %c0_79 = arith.constant 0 : index
      %191 = vector.load %arg17[%c0_78, %c0_79] : memref<8x32xbf16, #tpu.memory_space<vmem>>, vector<8x32xbf16>
      tpu.vector_store %arg17[%c0_78, %c0_79], %190 {strides = array<i32>} : memref<8x32xbf16, #tpu.memory_space<vmem>>, vector<8x32xbf16>,
      %c0_80 = arith.constant 0 : index
      %c0_81 = arith.constant 0 : index
      %192 = vector.load %arg8[%c0_80, %c0_81] : memref<32x32xbf16, #tpu.memory_space<vmem>>, vector<32x32xbf16>
      %cst_82 = arith.constant dense<0.000000e+00> : vector<8x32xf32>
      %193 = tpu.matmul %187, %192, %cst_82 {dimension_numbers = #tpu.dot_dimension_numbers<[1], [0], [0], [1], [0, 0, 1, 1], [], []>} : vector<8x32xbf16>, vector<32x32xbf16>, vector<8x32xf32> -> vector<8x32xf32>
      %194 = arith.truncf %193 : vector<8x32xf32> to vector<8x32xbf16>
      %c0_83 = arith.constant 0 : index
      %c0_84 = arith.constant 0 : index
      %195 = vector.load %arg18[%c0_83, %c0_84] : memref<8x32xbf16, #tpu.memory_space<vmem>>, vector<8x32xbf16>
      tpu.vector_store %arg18[%c0_83, %c0_84], %194 {strides = array<i32>} : memref<8x32xbf16, #tpu.memory_space<vmem>>, vector<8x32xbf16>,
    } else {
    }
    %c0_4 = arith.constant 0 : index
    %c0_5 = arith.constant 0 : index
    %c0_6 = arith.constant 0 : index
    %7 = vector.load %arg2[%c0_4, %c0_5, %c0_6] : memref<1x8x32xf32, #tpu.memory_space<vmem>>, vector<1x8x32xf32>
    %8 = vector.shape_cast %7 : vector<1x8x32xf32> to vector<8x32xf32>
    %cst = arith.constant dense<0.000000e+00> : vector<8xf32>
    %9 = vector.multi_reduction <add>, %8, %cst [1] : vector<8x32xf32> to vector<8xf32>
    %10 = vector.shape_cast %9 : vector<8xf32> to vector<8x1xf32>
    %cst_7 = arith.constant 3.200000e+01 : f32
    %11 = vector.broadcast %cst_7 : f32 to vector<8x1xf32>
    %12 = arith.divf %10, %11 : vector<8x1xf32>
    %13 = vector.broadcast %12 : vector<8x1xf32> to vector<8x32xf32>
    %14 = arith.subf %8, %13 : vector<8x32xf32>
    %15 = arith.mulf %14, %14 : vector<8x32xf32>
    %cst_8 = arith.constant dense<0.000000e+00> : vector<8xf32>
    %16 = vector.multi_reduction <add>, %15, %cst_8 [1] : vector<8x32xf32> to vector<8xf32>
    %17 = vector.shape_cast %16 : vector<8xf32> to vector<8x1xf32>
    %cst_9 = arith.constant 3.200000e+01 : f32
    %18 = vector.broadcast %cst_9 : f32 to vector<8x1xf32>
    %19 = arith.divf %17, %18 : vector<8x1xf32>
    %20 = vector.broadcast %12 : vector<8x1xf32> to vector<8x32xf32>
    %21 = arith.subf %8, %20 : vector<8x32xf32>
    %cst_10 = arith.constant 9.99999974E-6 : f32
    %22 = vector.broadcast %cst_10 : f32 to vector<8x1xf32>
    %23 = arith.addf %19, %22 : vector<8x1xf32>
    %24 = math.rsqrt %23 : vector<8x1xf32>
    %25 = vector.broadcast %24 : vector<8x1xf32> to vector<8x32xf32>
    %26 = arith.mulf %21, %25 : vector<8x32xf32>
    %27 = vector.shape_cast %1 : vector<32xf32> to vector<1x32xf32>
    %28 = vector.broadcast %27 : vector<1x32xf32> to vector<8x32xf32>
    %29 = arith.mulf %26, %28 : vector<8x32xf32>
    %30 = vector.shape_cast %3 : vector<32xf32> to vector<1x32xf32>
    %31 = vector.broadcast %30 : vector<1x32xf32> to vector<8x32xf32>
    %32 = arith.addf %29, %31 : vector<8x32xf32>
    %33 = arith.truncf %32 : vector<8x32xf32> to vector<8x32xbf16>
    %c0_11 = arith.constant 0 : index
    %c0_12 = arith.constant 0 : index
    %34 = vector.load %arg6[%c0_11, %c0_12] : memref<32x32xbf16, #tpu.memory_space<vmem>>, vector<32x32xbf16>
    %cst_13 = arith.constant dense<0.000000e+00> : vector<8x32xf32>
    %35 = tpu.matmul %33, %34, %cst_13 {dimension_numbers = #tpu.dot_dimension_numbers<[1], [0], [0], [1], [0, 0, 1, 1], [], []>} : vector<8x32xbf16>, vector<32x32xbf16>, vector<8x32xf32> -> vector<8x32xf32>
    %36 = arith.truncf %35 : vector<8x32xf32> to vector<8x32xbf16>
    %c0_14 = arith.constant 0 : index
    %c0_15 = arith.constant 0 : index
    %37 = vector.load %arg17[%c0_14, %c0_15] : memref<8x32xbf16, #tpu.memory_space<vmem>>, vector<8x32xbf16>
    %c0_16 = arith.constant 0 : index
    %c0_17 = arith.constant 0 : index
    %38 = vector.load %arg18[%c0_16, %c0_17] : memref<8x32xbf16, #tpu.memory_space<vmem>>, vector<8x32xbf16>
    %39 = vector.extract_strided_slice %36 {offsets = [0, 0], sizes = [8, 8], strides = [1, 1]} : vector<8x32xbf16> to vector<8x8xbf16>
    %40 = vector.extract_strided_slice %37 {offsets = [0, 0], sizes = [8, 8], strides = [1, 1]} : vector<8x32xbf16> to vector<8x8xbf16>
    %cst_18 = arith.constant dense<0.000000e+00> : vector<8x8xf32>
    %41 = tpu.matmul %39, %40, %cst_18 {dimension_numbers = #tpu.dot_dimension_numbers<[1], [1], [0], [0], [0, 0, 1, 0], [], []>} : vector<8x8xbf16>, vector<8x8xbf16>, vector<8x8xf32> -> vector<8x8xf32>
    %cst_19 = arith.constant dense<0xFF800000> : vector<8xf32>
    %42 = vector.multi_reduction <maximumf>, %41, %cst_19 [1] : vector<8x8xf32> to vector<8xf32>
    %43 = vector.shape_cast %42 : vector<8xf32> to vector<8x1xf32>
    %44 = vector.broadcast %43 : vector<8x1xf32> to vector<8x8xf32>
    %45 = arith.subf %41, %44 : vector<8x8xf32>
    %46 = math.exp %45 : vector<8x8xf32>
    %cst_20 = arith.constant dense<0.000000e+00> : vector<8xf32>
    %47 = vector.multi_reduction <add>, %46, %cst_20 [1] : vector<8x8xf32> to vector<8xf32>
    %48 = vector.shape_cast %47 : vector<8xf32> to vector<8x1xf32>
    %49 = vector.broadcast %48 : vector<8x1xf32> to vector<8x8xf32>
    %50 = arith.divf %46, %49 : vector<8x8xf32>
    %51 = arith.truncf %50 : vector<8x8xf32> to vector<8x8xbf16>
    %52 = vector.extract_strided_slice %38 {offsets = [0, 0], sizes = [8, 8], strides = [1, 1]} : vector<8x32xbf16> to vector<8x8xbf16>
    %cst_21 = arith.constant dense<0.000000e+00> : vector<8x8xf32>
    %53 = tpu.matmul %51, %52, %cst_21 {dimension_numbers = #tpu.dot_dimension_numbers<[1], [0], [0], [1], [0, 0, 1, 1], [], []>} : vector<8x8xbf16>, vector<8x8xbf16>, vector<8x8xf32> -> vector<8x8xf32>
    %54 = arith.truncf %53 : vector<8x8xf32> to vector<8x8xbf16>
    %c0_22 = arith.constant 0 : index
    %c0_23 = arith.constant 0 : index
    %55 = vector.load %arg19[%c0_22, %c0_23] : memref<8x32xbf16, #tpu.memory_space<vmem>>, vector<8x8xbf16>
    tpu.vector_store %arg19[%c0_22, %c0_23], %54 {strides = array<i32>} : memref<8x32xbf16, #tpu.memory_space<vmem>>, vector<8x8xbf16>,
    %56 = vector.extract_strided_slice %36 {offsets = [0, 8], sizes = [8, 8], strides = [1, 1]} : vector<8x32xbf16> to vector<8x8xbf16>
    %57 = vector.extract_strided_slice %37 {offsets = [0, 8], sizes = [8, 8], strides = [1, 1]} : vector<8x32xbf16> to vector<8x8xbf16>
    %cst_24 = arith.constant dense<0.000000e+00> : vector<8x8xf32>
    %58 = tpu.matmul %56, %57, %cst_24 {dimension_numbers = #tpu.dot_dimension_numbers<[1], [1], [0], [0], [0, 0, 1, 0], [], []>} : vector<8x8xbf16>, vector<8x8xbf16>, vector<8x8xf32> -> vector<8x8xf32>
    %cst_25 = arith.constant dense<0xFF800000> : vector<8xf32>
    %59 = vector.multi_reduction <maximumf>, %58, %cst_25 [1] : vector<8x8xf32> to vector<8xf32>
    %60 = vector.shape_cast %59 : vector<8xf32> to vector<8x1xf32>
    %61 = vector.broadcast %60 : vector<8x1xf32> to vector<8x8xf32>
    %62 = arith.subf %58, %61 : vector<8x8xf32>
    %63 = math.exp %62 : vector<8x8xf32>
    %cst_26 = arith.constant dense<0.000000e+00> : vector<8xf32>
    %64 = vector.multi_reduction <add>, %63, %cst_26 [1] : vector<8x8xf32> to vector<8xf32>
    %65 = vector.shape_cast %64 : vector<8xf32> to vector<8x1xf32>
    %66 = vector.broadcast %65 : vector<8x1xf32> to vector<8x8xf32>
    %67 = arith.divf %63, %66 : vector<8x8xf32>
    %68 = arith.truncf %67 : vector<8x8xf32> to vector<8x8xbf16>
    %69 = vector.extract_strided_slice %38 {offsets = [0, 8], sizes = [8, 8], strides = [1, 1]} : vector<8x32xbf16> to vector<8x8xbf16>
    %cst_27 = arith.constant dense<0.000000e+00> : vector<8x8xf32>
    %70 = tpu.matmul %68, %69, %cst_27 {dimension_numbers = #tpu.dot_dimension_numbers<[1], [0], [0], [1], [0, 0, 1, 1], [], []>} : vector<8x8xbf16>, vector<8x8xbf16>, vector<8x8xf32> -> vector<8x8xf32>
    %71 = arith.truncf %70 : vector<8x8xf32> to vector<8x8xbf16>
    %c0_28 = arith.constant 0 : index
    %c8 = arith.constant 8 : index
    %72 = vector.load %arg19[%c0_28, %c8] : memref<8x32xbf16, #tpu.memory_space<vmem>>, vector<8x8xbf16>
    tpu.vector_store %arg19[%c0_28, %c8], %71 {strides = array<i32>} : memref<8x32xbf16, #tpu.memory_space<vmem>>, vector<8x8xbf16>,
    %73 = vector.extract_strided_slice %36 {offsets = [0, 16], sizes = [8, 8], strides = [1, 1]} : vector<8x32xbf16> to vector<8x8xbf16>
    %74 = vector.extract_strided_slice %37 {offsets = [0, 16], sizes = [8, 8], strides = [1, 1]} : vector<8x32xbf16> to vector<8x8xbf16>
    %cst_29 = arith.constant dense<0.000000e+00> : vector<8x8xf32>
    %75 = tpu.matmul %73, %74, %cst_29 {dimension_numbers = #tpu.dot_dimension_numbers<[1], [1], [0], [0], [0, 0, 1, 0], [], []>} : vector<8x8xbf16>, vector<8x8xbf16>, vector<8x8xf32> -> vector<8x8xf32>
    %cst_30 = arith.constant dense<0xFF800000> : vector<8xf32>
    %76 = vector.multi_reduction <maximumf>, %75, %cst_30 [1] : vector<8x8xf32> to vector<8xf32>
    %77 = vector.shape_cast %76 : vector<8xf32> to vector<8x1xf32>
    %78 = vector.broadcast %77 : vector<8x1xf32> to vector<8x8xf32>
    %79 = arith.subf %75, %78 : vector<8x8xf32>
    %80 = math.exp %79 : vector<8x8xf32>
    %cst_31 = arith.constant dense<0.000000e+00> : vector<8xf32>
    %81 = vector.multi_reduction <add>, %80, %cst_31 [1] : vector<8x8xf32> to vector<8xf32>
    %82 = vector.shape_cast %81 : vector<8xf32> to vector<8x1xf32>
    %83 = vector.broadcast %82 : vector<8x1xf32> to vector<8x8xf32>
    %84 = arith.divf %80, %83 : vector<8x8xf32>
    %85 = arith.truncf %84 : vector<8x8xf32> to vector<8x8xbf16>
    %86 = vector.extract_strided_slice %38 {offsets = [0, 16], sizes = [8, 8], strides = [1, 1]} : vector<8x32xbf16> to vector<8x8xbf16>
    %cst_32 = arith.constant dense<0.000000e+00> : vector<8x8xf32>
    %87 = tpu.matmul %85, %86, %cst_32 {dimension_numbers = #tpu.dot_dimension_numbers<[1], [0], [0], [1], [0, 0, 1, 1], [], []>} : vector<8x8xbf16>, vector<8x8xbf16>, vector<8x8xf32> -> vector<8x8xf32>
    %88 = arith.truncf %87 : vector<8x8xf32> to vector<8x8xbf16>
    %c0_33 = arith.constant 0 : index
    %c16 = arith.constant 16 : index
    %89 = vector.load %arg19[%c0_33, %c16] : memref<8x32xbf16, #tpu.memory_space<vmem>>, vector<8x8xbf16>
    tpu.vector_store %arg19[%c0_33, %c16], %88 {strides = array<i32>} : memref<8x32xbf16, #tpu.memory_space<vmem>>, vector<8x8xbf16>,
    %90 = vector.extract_strided_slice %36 {offsets = [0, 24], sizes = [8, 8], strides = [1, 1]} : vector<8x32xbf16> to vector<8x8xbf16>
    %91 = vector.extract_strided_slice %37 {offsets = [0, 24], sizes = [8, 8], strides = [1, 1]} : vector<8x32xbf16> to vector<8x8xbf16>
    %cst_34 = arith.constant dense<0.000000e+00> : vector<8x8xf32>
    %92 = tpu.matmul %90, %91, %cst_34 {dimension_numbers = #tpu.dot_dimension_numbers<[1], [1], [0], [0], [0, 0, 1, 0], [], []>} : vector<8x8xbf16>, vector<8x8xbf16>, vector<8x8xf32> -> vector<8x8xf32>
    %cst_35 = arith.constant dense<0xFF800000> : vector<8xf32>
    %93 = vector.multi_reduction <maximumf>, %92, %cst_35 [1] : vector<8x8xf32> to vector<8xf32>
    %94 = vector.shape_cast %93 : vector<8xf32> to vector<8x1xf32>
    %95 = vector.broadcast %94 : vector<8x1xf32> to vector<8x8xf32>
    %96 = arith.subf %92, %95 : vector<8x8xf32>
    %97 = math.exp %96 : vector<8x8xf32>
    %cst_36 = arith.constant dense<0.000000e+00> : vector<8xf32>
    %98 = vector.multi_reduction <add>, %97, %cst_36 [1] : vector<8x8xf32> to vector<8xf32>
    %99 = vector.shape_cast %98 : vector<8xf32> to vector<8x1xf32>
    %100 = vector.broadcast %99 : vector<8x1xf32> to vector<8x8xf32>
    %101 = arith.divf %97, %100 : vector<8x8xf32>
    %102 = arith.truncf %101 : vector<8x8xf32> to vector<8x8xbf16>
    %103 = vector.extract_strided_slice %38 {offsets = [0, 24], sizes = [8, 8], strides = [1, 1]} : vector<8x32xbf16> to vector<8x8xbf16>
    %cst_37 = arith.constant dense<0.000000e+00> : vector<8x8xf32>
    %104 = tpu.matmul %102, %103, %cst_37 {dimension_numbers = #tpu.dot_dimension_numbers<[1], [0], [0], [1], [0, 0, 1, 1], [], []>} : vector<8x8xbf16>, vector<8x8xbf16>, vector<8x8xf32> -> vector<8x8xf32>
    %105 = arith.truncf %104 : vector<8x8xf32> to vector<8x8xbf16>
    %c0_38 = arith.constant 0 : index
    %c24 = arith.constant 24 : index
    %106 = vector.load %arg19[%c0_38, %c24] : memref<8x32xbf16, #tpu.memory_space<vmem>>, vector<8x8xbf16>
    tpu.vector_store %arg19[%c0_38, %c24], %105 {strides = array<i32>} : memref<8x32xbf16, #tpu.memory_space<vmem>>, vector<8x8xbf16>,
    %c0_39 = arith.constant 0 : index
    %c0_40 = arith.constant 0 : index
    %107 = vector.load %arg19[%c0_39, %c0_40] : memref<8x32xbf16, #tpu.memory_space<vmem>>, vector<8x32xbf16>
    %c0_41 = arith.constant 0 : index
    %c0_42 = arith.constant 0 : index
    %108 = vector.load %arg9[%c0_41, %c0_42] : memref<32x32xbf16, #tpu.memory_space<vmem>>, vector<32x32xbf16>
    %cst_43 = arith.constant dense<0.000000e+00> : vector<8x32xf32>
    %109 = tpu.matmul %107, %108, %cst_43 {dimension_numbers = #tpu.dot_dimension_numbers<[1], [0], [0], [1], [0, 0, 1, 1], [], []>} : vector<8x32xbf16>, vector<32x32xbf16>, vector<8x32xf32> -> vector<8x32xf32>
    %110 = arith.addf %8, %109 : vector<8x32xf32>
    %c0_44 = arith.constant 0 : index
    %c0_45 = arith.constant 0 : index
    %111 = vector.load %arg10[%c0_44, %c0_45] : memref<1x32xf32, #tpu.memory_space<vmem>>, vector<1x32xf32>
    %112 = vector.shape_cast %111 : vector<1x32xf32> to vector<32xf32>
    %c0_46 = arith.constant 0 : index
    %c0_47 = arith.constant 0 : index
    %113 = vector.load %arg11[%c0_46, %c0_47] : memref<1x32xf32, #tpu.memory_space<vmem>>, vector<1x32xf32>
    %114 = vector.shape_cast %113 : vector<1x32xf32> to vector<32xf32>
    %cst_48 = arith.constant dense<0.000000e+00> : vector<8xf32>
    %115 = vector.multi_reduction <add>, %110, %cst_48 [1] : vector<8x32xf32> to vector<8xf32>
    %116 = vector.shape_cast %115 : vector<8xf32> to vector<8x1xf32>
    %cst_49 = arith.constant 3.200000e+01 : f32
    %117 = vector.broadcast %cst_49 : f32 to vector<8x1xf32>
    %118 = arith.divf %116, %117 : vector<8x1xf32>
    %119 = vector.broadcast %118 : vector<8x1xf32> to vector<8x32xf32>
    %120 = arith.subf %110, %119 : vector<8x32xf32>
    %121 = arith.mulf %120, %120 : vector<8x32xf32>
    %cst_50 = arith.constant dense<0.000000e+00> : vector<8xf32>
    %122 = vector.multi_reduction <add>, %121, %cst_50 [1] : vector<8x32xf32> to vector<8xf32>
    %123 = vector.shape_cast %122 : vector<8xf32> to vector<8x1xf32>
    %cst_51 = arith.constant 3.200000e+01 : f32
    %124 = vector.broadcast %cst_51 : f32 to vector<8x1xf32>
    %125 = arith.divf %123, %124 : vector<8x1xf32>
    %126 = vector.broadcast %118 : vector<8x1xf32> to vector<8x32xf32>
    %127 = arith.subf %110, %126 : vector<8x32xf32>
    %cst_52 = arith.constant 9.99999974E-6 : f32
    %128 = vector.broadcast %cst_52 : f32 to vector<8x1xf32>
    %129 = arith.addf %125, %128 : vector<8x1xf32>
    %130 = math.rsqrt %129 : vector<8x1xf32>
    %131 = vector.broadcast %130 : vector<8x1xf32> to vector<8x32xf32>
    %132 = arith.mulf %127, %131 : vector<8x32xf32>
    %133 = vector.shape_cast %112 : vector<32xf32> to vector<1x32xf32>
    %134 = vector.broadcast %133 : vector<1x32xf32> to vector<8x32xf32>
    %135 = arith.mulf %132, %134 : vector<8x32xf32>
    %136 = vector.shape_cast %114 : vector<32xf32> to vector<1x32xf32>
    %137 = vector.broadcast %136 : vector<1x32xf32> to vector<8x32xf32>
    %138 = arith.addf %135, %137 : vector<8x32xf32>
    %139 = arith.truncf %138 : vector<8x32xf32> to vector<8x32xbf16>
    %c0_53 = arith.constant 0 : index
    %c0_54 = arith.constant 0 : index
    %140 = vector.load %arg12[%c0_53, %c0_54] : memref<32x64xbf16, #tpu.memory_space<vmem>>, vector<32x64xbf16>
    %cst_55 = arith.constant dense<0.000000e+00> : vector<8x64xf32>
    %141 = tpu.matmul %139, %140, %cst_55 {dimension_numbers = #tpu.dot_dimension_numbers<[1], [0], [0], [1], [0, 0, 1, 1], [], []>} : vector<8x32xbf16>, vector<32x64xbf16>, vector<8x64xf32> -> vector<8x64xf32>
    %c0_56 = arith.constant 0 : index
    %c0_57 = arith.constant 0 : index
    %142 = vector.load %arg13[%c0_56, %c0_57] : memref<1x64xf32, #tpu.memory_space<vmem>>, vector<1x64xf32>
    %143 = vector.shape_cast %142 : vector<1x64xf32> to vector<64xf32>
    %144 = vector.shape_cast %143 : vector<64xf32> to vector<1x64xf32>
    %145 = vector.broadcast %144 : vector<1x64xf32> to vector<8x64xf32>
    %146 = arith.addf %141, %145 : vector<8x64xf32>
    %cst_58 = arith.constant 0.000000e+00 : f32
    %147 = vector.broadcast %cst_58 : f32 to vector<8x64xf32>
    %148 = arith.maximumf %146, %147 : vector<8x64xf32>
    %149 = arith.truncf %148 : vector<8x64xf32> to vector<8x64xbf16>
    %c0_59 = arith.constant 0 : index
    %c0_60 = arith.constant 0 : index
    %150 = vector.load %arg14[%c0_59, %c0_60] : memref<64x32xbf16, #tpu.memory_space<vmem>>, vector<64x32xbf16>
    %cst_61 = arith.constant dense<0.000000e+00> : vector<8x32xf32>
    %151 = tpu.matmul %149, %150, %cst_61 {dimension_numbers = #tpu.dot_dimension_numbers<[1], [0], [0], [1], [0, 0, 1, 1], [], []>} : vector<8x64xbf16>, vector<64x32xbf16>, vector<8x32xf32> -> vector<8x32xf32>
    %c0_62 = arith.constant 0 : index
    %c0_63 = arith.constant 0 : index
    %152 = vector.load %arg15[%c0_62, %c0_63] : memref<1x32xf32, #tpu.memory_space<vmem>>, vector<1x32xf32>
    %153 = vector.shape_cast %152 : vector<1x32xf32> to vector<32xf32>
    %154 = vector.shape_cast %153 : vector<32xf32> to vector<1x32xf32>
    %155 = vector.broadcast %154 : vector<1x32xf32> to vector<8x32xf32>
    %156 = arith.addf %151, %155 : vector<8x32xf32>
    %157 = arith.addf %110, %156 : vector<8x32xf32>
    %c0_64 = arith.constant 0 : index
    %c0_65 = arith.constant 0 : index
    %c0_66 = arith.constant 0 : index
    %158 = vector.load %arg16[%c0_64, %c0_65, %c0_66] : memref<1x8x32xf32, #tpu.memory_space<vmem>>, vector<1x8x32xf32>
    %159 = vector.shape_cast %158 : vector<1x8x32xf32> to vector<8x32xf32>
    %160 = vector.shape_cast %157 : vector<8x32xf32> to vector<1x8x32xf32>
    tpu.vector_store %arg16[%c0_64, %c0_65, %c0_66], %160 {strides = array<i32>} : memref<1x8x32xf32, #tpu.memory_space<vmem>>, vector<1x8x32xf32>,
    return
  }
  func.func @transform_0(%arg0: i32, %arg1: i32) -> (i32, i32, i32) {
    %c0_i32 = arith.constant 0 : i32
    %c0_i32_0 = arith.constant 0 : i32
    return %arg0, %arg1, %c0_i32 : i32, i32, i32
  }
  func.func @transform_1(%arg0: i32, %arg1: i32) -> (i32, i32, i32) {
    %c0_i32 = arith.constant 0 : i32
    %c0_i32_0 = arith.constant 0 : i32
    %c0_i32_1 = arith.constant 0 : i32
    return %arg0, %c0_i32, %c0_i32_0 : i32, i32, i32
  }
  func.func @transform_2(%arg0: i32, %arg1: i32) -> (i32, i32) {
    %c0_i32 = arith.constant 0 : i32
    %c0_i32_0 = arith.constant 0 : i32
    %c0_i32_1 = arith.constant 0 : i32
    return %c0_i32, %c0_i32_0 : i32, i32
  }
  func.func @transform_3(%arg0: i32, %arg1: i32) -> (i32, i32) {
    %c0_i32 = arith.constant 0 : i32
    %c0_i32_0 = arith.constant 0 : i32
    %c0_i32_1 = arith.constant 0 : i32
    return %c0_i32, %c0_i32_0 : i32, i32
  }
  func.func @transform_4(%arg0: i32, %arg1: i32) -> (i32, i32) {
    %c0_i32 = arith.constant 0 : i32
    %c0_i32_0 = arith.constant 0 : i32
    %c0_i32_1 = arith.constant 0 : i32
    return %c0_i32, %c0_i32_0 : i32, i32
  }
  func.func @transform_5(%arg0: i32, %arg1: i32) -> (i32, i32) {
    %c0_i32 = arith.constant 0 : i32
    %c0_i32_0 = arith.constant 0 : i32
    %c0_i32_1 = arith.constant 0 : i32
    return %c0_i32, %c0_i32_0 : i32, i32
  }
  func.func @transform_6(%arg0: i32, %arg1: i32) -> (i32, i32) {
    %c0_i32 = arith.constant 0 : i32
    %c0_i32_0 = arith.constant 0 : i32
    %c0_i32_1 = arith.constant 0 : i32
    return %c0_i32, %c0_i32_0 : i32, i32
  }
  func.func @transform_7(%arg0: i32, %arg1: i32) -> (i32, i32) {
    %c0_i32 = arith.constant 0 : i32
    %c0_i32_0 = arith.constant 0 : i32
    %c0_i32_1 = arith.constant 0 : i32
    return %c0_i32, %c0_i32_0 : i32, i32
  }
  func.func @transform_8(%arg0: i32, %arg1: i32) -> (i32, i32) {
    %c0_i32 = arith.constant 0 : i32
    %c0_i32_0 = arith.constant 0 : i32
    %c0_i32_1 = arith.constant 0 : i32
    return %c0_i32, %c0_i32_0 : i32, i32
  }
  func.func @transform_9(%arg0: i32, %arg1: i32) -> (i32, i32) {
    %c0_i32 = arith.constant 0 : i32
    %c0_i32_0 = arith.constant 0 : i32
    %c0_i32_1 = arith.constant 0 : i32
    return %c0_i32, %c0_i32_0 : i32, i32
  }
  func.func @transform_10(%arg0: i32, %arg1: i32) -> (i32, i32) {
    %c0_i32 = arith.constant 0 : i32
    %c0_i32_0 = arith.constant 0 : i32
    %c0_i32_1 = arith.constant 0 : i32
    return %c0_i32, %c0_i32_0 : i32, i32
  }
  func.func @transform_11(%arg0: i32, %arg1: i32) -> (i32, i32) {
    %c0_i32 = arith.constant 0 : i32
    %c0_i32_0 = arith.constant 0 : i32
    %c0_i32_1 = arith.constant 0 : i32
    return %c0_i32, %c0_i32_0 : i32, i32
  }
  func.func @transform_12(%arg0: i32, %arg1: i32) -> (i32, i32) {
    %c0_i32 = arith.constant 0 : i32
    %c0_i32_0 = arith.constant 0 : i32
    %c0_i32_1 = arith.constant 0 : i32
    return %c0_i32, %c0_i32_0 : i32, i32
  }
  func.func @transform_13(%arg0: i32, %arg1: i32) -> (i32, i32) {
    %c0_i32 = arith.constant 0 : i32
    %c0_i32_0 = arith.constant 0 : i32
    %c0_i32_1 = arith.constant 0 : i32
    return %c0_i32, %c0_i32_0 : i32, i32
  }
  func.func @transform_14(%arg0: i32, %arg1: i32) -> (i32, i32, i32) {
    %c0_i32 = arith.constant 0 : i32
    %c0_i32_0 = arith.constant 0 : i32
    return %arg0, %arg1, %c0_i32 : i32, i32, i32
  }
}

module attributes {stable_mosaic.version = 11 : i64} {
  func.func @encoder_block_kernel(%arg0: i32, %arg1: i32, %arg2: memref<1x8x32xf32, #tpu.memory_space<vmem>>, %arg3: memref<1x8x32xf32, #tpu.memory_space<vmem>>, %arg4: memref<1x32xf32, #tpu.memory_space<vmem>>, %arg5: memref<1x32xf32, #tpu.memory_space<vmem>>, %arg6: memref<32x32xbf16, #tpu.memory_space<vmem>>, %arg7: memref<32x32xbf16, #tpu.memory_space<vmem>>, %arg8: memref<32x32xbf16, #tpu.memory_space<vmem>>, %arg9: memref<32x32xbf16, #tpu.memory_space<vmem>>, %arg10: memref<1x32xf32, #tpu.memory_space<vmem>>, %arg11: memref<1x32xf32, #tpu.memory_space<vmem>>, %arg12: memref<32x64xbf16, #tpu.memory_space<vmem>>, %arg13: memref<1x64xf32, #tpu.memory_space<vmem>>, %arg14: memref<64x32xbf16, #tpu.memory_space<vmem>>, %arg15: memref<1x32xf32, #tpu.memory_space<vmem>>, %arg16: memref<1x8x32xf32, #tpu.memory_space<vmem>>, %arg17: memref<8x32xbf16, #tpu.memory_space<vmem>>, %arg18: memref<8x32xbf16, #tpu.memory_space<vmem>>, %arg19: memref<8x32xbf16, #tpu.memory_space<vmem>>) attributes {dimension_semantics = [#tpu.dimension_semantics<parallel>, #tpu.dimension_semantics<arbitrary>], iteration_bounds = array<i64: 2, 1>, scalar_prefetch = 0 : i64, scratch_operands = 3 : i64, tpu.core_type = #tpu.core_type<tc>, window_params = [{transform_indices = @transform_0, window_bounds = array<i64: 1, 8, 32>}, {transform_indices = @transform_1, window_bounds = array<i64: 1, 8, 32>}, {pipeline_mode = #tpu.pipeline_mode<synchronous>, transform_indices = @transform_2, window_bounds = array<i64: 1, 32>}, {pipeline_mode = #tpu.pipeline_mode<synchronous>, transform_indices = @transform_3, window_bounds = array<i64: 1, 32>}, {pipeline_mode = #tpu.pipeline_mode<synchronous>, transform_indices = @transform_4, window_bounds = array<i64: 32, 32>}, {pipeline_mode = #tpu.pipeline_mode<synchronous>, transform_indices = @transform_5, window_bounds = array<i64: 32, 32>}, {pipeline_mode = #tpu.pipeline_mode<synchronous>, transform_indices = @transform_6, window_bounds = array<i64: 32, 32>}, {pipeline_mode = #tpu.pipeline_mode<synchronous>, transform_indices = @transform_7, window_bounds = array<i64: 32, 32>}, {pipeline_mode = #tpu.pipeline_mode<synchronous>, transform_indices = @transform_8, window_bounds = array<i64: 1, 32>}, {pipeline_mode = #tpu.pipeline_mode<synchronous>, transform_indices = @transform_9, window_bounds = array<i64: 1, 32>}, {pipeline_mode = #tpu.pipeline_mode<synchronous>, transform_indices = @transform_10, window_bounds = array<i64: 32, 64>}, {pipeline_mode = #tpu.pipeline_mode<synchronous>, transform_indices = @transform_11, window_bounds = array<i64: 1, 64>}, {pipeline_mode = #tpu.pipeline_mode<synchronous>, transform_indices = @transform_12, window_bounds = array<i64: 64, 32>}, {pipeline_mode = #tpu.pipeline_mode<synchronous>, transform_indices = @transform_13, window_bounds = array<i64: 1, 32>}, {transform_indices = @transform_14, window_bounds = array<i64: 1, 8, 32>}]} {
    %c0 = arith.constant 0 : index
    %c0_0 = arith.constant 0 : index
    %0 = vector.load %arg4[%c0, %c0_0] : memref<1x32xf32, #tpu.memory_space<vmem>>, vector<1x32xf32>
    %1 = vector.shape_cast %0 : vector<1x32xf32> to vector<32xf32>
    %c0_1 = arith.constant 0 : index
    %c0_2 = arith.constant 0 : index
    %2 = vector.load %arg5[%c0_1, %c0_2] : memref<1x32xf32, #tpu.memory_space<vmem>>, vector<1x32xf32>
    %3 = vector.shape_cast %2 : vector<1x32xf32> to vector<32xf32>
    %c0_i32 = arith.constant 0 : i32
    %4 = arith.cmpi eq, %arg1, %c0_i32 : i32
    %5 = arith.extui %4 : i1 to i32
    %c0_i32_3 = arith.constant 0 : i32
    %6 = arith.cmpi ne, %5, %c0_i32_3 : i32
    scf.if %6 {
      %c0_67 = arith.constant 0 : index
      %c0_68 = arith.constant 0 : index
      %c0_69 = arith.constant 0 : index
      %161 = vector.load %arg3[%c0_67, %c0_68, %c0_69] : memref<1x8x32xf32, #tpu.memory_space<vmem>>, vector<1x8x32xf32>
      %162 = vector.shape_cast %161 : vector<1x8x32xf32> to vector<8x32xf32>
      %cst_70 = arith.constant dense<0.000000e+00> : vector<8xf32>
      %163 = vector.multi_reduction <add>, %162, %cst_70 [1] : vector<8x32xf32> to vector<8xf32>
      %164 = vector.shape_cast %163 : vector<8xf32> to vector<8x1xf32>
      %cst_71 = arith.constant 3.200000e+01 : f32
      %165 = vector.broadcast %cst_71 : f32 to vector<8x1xf32>
      %166 = arith.divf %164, %165 : vector<8x1xf32>
      %167 = vector.broadcast %166 : vector<8x1xf32> to vector<8x32xf32>
      %168 = arith.subf %162, %167 : vector<8x32xf32>
      %169 = arith.mulf %168, %168 : vector<8x32xf32>
      %cst_72 = arith.constant dense<0.000000e+00> : vector<8xf32>
      %170 = vector.multi_reduction <add>, %169, %cst_72 [1] : vector<8x32xf32> to vector<8xf32>
      %171 = vector.shape_cast %170 : vector<8xf32> to vector<8x1xf32>
      %cst_73 = arith.constant 3.200000e+01 : f32
      %172 = vector.broadcast %cst_73 : f32 to vector<8x1xf32>
      %173 = arith.divf %171, %172 : vector<8x1xf32>
      %174 = vector.broadcast %166 : vector<8x1xf32> to vector<8x32xf32>
      %175 = arith.subf %162, %174 : vector<8x32xf32>
      %cst_74 = arith.constant 9.99999974E-6 : f32
      %176 = vector.broadcast %cst_74 : f32 to vector<8x1xf32>
      %177 = arith.addf %173, %176 : vector<8x1xf32>
      %178 = math.rsqrt %177 : vector<8x1xf32>
      %179 = vector.broadcast %178 : vector<8x1xf32> to vector<8x32xf32>
      %180 = arith.mulf %175, %179 : vector<8x32xf32>
      %181 = vector.shape_cast %1 : vector<32xf32> to vector<1x32xf32>
      %182 = vector.broadcast %181 : vector<1x32xf32> to vector<8x32xf32>
      %183 = arith.mulf %180, %182 : vector<8x32xf32>
      %184 = vector.shape_cast %3 : vector<32xf32> to vector<1x32xf32>
      %185 = vector.broadcast %184 : vector<1x32xf32> to vector<8x32xf32>
      %186 = arith.addf %183, %185 : vector<8x32xf32>
      %187 = arith.truncf %186 : vector<8x32xf32> to vector<8x32xbf16>
      %c0_75 = arith.constant 0 : index
      %c0_76 = arith.constant 0 : index
      %188 = vector.load %arg7[%c0_75, %c0_76] : memref<32x32xbf16, #tpu.memory_space<vmem>>, vector<32x32xbf16>
      %cst_77 = arith.constant dense<0.000000e+00> : vector<8x32xf32>
      %189 = tpu.matmul %187, %188, %cst_77 {dimension_numbers = #tpu.dot_dimension_numbers<[1], [0], [0], [1], [0, 0, 1, 1], [], []>} : vector<8x32xbf16>, vector<32x32xbf16>, vector<8x32xf32> -> vector<8x32xf32>
      %190 = arith.truncf %189 : vector<8x32xf32> to vector<8x32xbf16>
      %c0_78 = arith.constant 0 : index
      %c0_79 = arith.constant 0 : index
      %191 = vector.load %arg17[%c0_78, %c0_79] : memref<8x32xbf16, #tpu.memory_space<vmem>>, vector<8x32xbf16>
      tpu.vector_store %arg17[%c0_78, %c0_79], %190 {strides = array<i32>} : memref<8x32xbf16, #tpu.memory_space<vmem>>, vector<8x32xbf16>,
      %c0_80 = arith.constant 0 : index
      %c0_81 = arith.constant 0 : index
      %192 = vector.load %arg8[%c0_80, %c0_81] : memref<32x32xbf16, #tpu.memory_space<vmem>>, vector<32x32xbf16>
      %cst_82 = arith.constant dense<0.000000e+00> : vector<8x32xf32>
      %193 = tpu.matmul %187, %192, %cst_82 {dimension_numbers = #tpu.dot_dimension_numbers<[1], [0], [0], [1], [0, 0, 1, 1], [], []>} : vector<8x32xbf16>, vector<32x32xbf16>, vector<8x32xf32> -> vector<8x32xf32>
      %194 = arith.truncf %193 : vector<8x32xf32> to vector<8x32xbf16>
      %c0_83 = arith.constant 0 : index
      %c0_84 = arith.constant 0 : index
      %195 = vector.load %arg18[%c0_83, %c0_84] : memref<8x32xbf16, #tpu.memory_space<vmem>>, vector<8x32xbf16>
      tpu.vector_store %arg18[%c0_83, %c0_84], %194 {strides = array<i32>} : memref<8x32xbf16, #tpu.memory_space<vmem>>, vector<8x32xbf16>,
    } else {
    }
    %c0_4 = arith.constant 0 : index
    %c0_5 = arith.constant 0 : index
    %c0_6 = arith.constant 0 : index
    %7 = vector.load %arg2[%c0_4, %c0_5, %c0_6] : memref<1x8x32xf32, #tpu.memory_space<vmem>>, vector<1x8x32xf32>
    %8 = vector.shape_cast %7 : vector<1x8x32xf32> to vector<8x32xf32>
    %cst = arith.constant dense<0.000000e+00> : vector<8xf32>
    %9 = vector.multi_reduction <add>, %8, %cst [1] : vector<8x32xf32> to vector<8xf32>
    %10 = vector.shape_cast %9 : vector<8xf32> to vector<8x1xf32>
    %cst_7 = arith.constant 3.200000e+01 : f32
    %11 = vector.broadcast %cst_7 : f32 to vector<8x1xf32>
    %12 = arith.divf %10, %11 : vector<8x1xf32>
    %13 = vector.broadcast %12 : vector<8x1xf32> to vector<8x32xf32>
    %14 = arith.subf %8, %13 : vector<8x32xf32>
    %15 = arith.mulf %14, %14 : vector<8x32xf32>
    %cst_8 = arith.constant dense<0.000000e+00> : vector<8xf32>
    %16 = vector.multi_reduction <add>, %15, %cst_8 [1] : vector<8x32xf32> to vector<8xf32>
    %17 = vector.shape_cast %16 : vector<8xf32> to vector<8x1xf32>
    %cst_9 = arith.constant 3.200000e+01 : f32
    %18 = vector.broadcast %cst_9 : f32 to vector<8x1xf32>
    %19 = arith.divf %17, %18 : vector<8x1xf32>
    %20 = vector.broadcast %12 : vector<8x1xf32> to vector<8x32xf32>
    %21 = arith.subf %8, %20 : vector<8x32xf32>
    %cst_10 = arith.constant 9.99999974E-6 : f32
    %22 = vector.broadcast %cst_10 : f32 to vector<8x1xf32>
    %23 = arith.addf %19, %22 : vector<8x1xf32>
    %24 = math.rsqrt %23 : vector<8x1xf32>
    %25 = vector.broadcast %24 : vector<8x1xf32> to vector<8x32xf32>
    %26 = arith.mulf %21, %25 : vector<8x32xf32>
    %27 = vector.shape_cast %1 : vector<32xf32> to vector<1x32xf32>
    %28 = vector.broadcast %27 : vector<1x32xf32> to vector<8x32xf32>
    %29 = arith.mulf %26, %28 : vector<8x32xf32>
    %30 = vector.shape_cast %3 : vector<32xf32> to vector<1x32xf32>
    %31 = vector.broadcast %30 : vector<1x32xf32> to vector<8x32xf32>
    %32 = arith.addf %29, %31 : vector<8x32xf32>
    %33 = arith.truncf %32 : vector<8x32xf32> to vector<8x32xbf16>
    %c0_11 = arith.constant 0 : index
    %c0_12 = arith.constant 0 : index
    %34 = vector.load %arg6[%c0_11, %c0_12] : memref<32x32xbf16, #tpu.memory_space<vmem>>, vector<32x32xbf16>
    %cst_13 = arith.constant dense<0.000000e+00> : vector<8x32xf32>
    %35 = tpu.matmul %33, %34, %cst_13 {dimension_numbers = #tpu.dot_dimension_numbers<[1], [0], [0], [1], [0, 0, 1, 1], [], []>} : vector<8x32xbf16>, vector<32x32xbf16>, vector<8x32xf32> -> vector<8x32xf32>
    %36 = arith.truncf %35 : vector<8x32xf32> to vector<8x32xbf16>
    %c0_14 = arith.constant 0 : index
    %c0_15 = arith.constant 0 : index
    %37 = vector.load %arg17[%c0_14, %c0_15] : memref<8x32xbf16, #tpu.memory_space<vmem>>, vector<8x32xbf16>
    %c0_16 = arith.constant 0 : index
    %c0_17 = arith.constant 0 : index
    %38 = vector.load %arg18[%c0_16, %c0_17] : memref<8x32xbf16, #tpu.memory_space<vmem>>, vector<8x32xbf16>
    %39 = vector.extract_strided_slice %36 {offsets = [0, 0], sizes = [8, 8], strides = [1, 1]} : vector<8x32xbf16> to vector<8x8xbf16>
    %40 = vector.extract_strided_slice %37 {offsets = [0, 0], sizes = [8, 8], strides = [1, 1]} : vector<8x32xbf16> to vector<8x8xbf16>
    %cst_18 = arith.constant dense<0.000000e+00> : vector<8x8xf32>
    %41 = tpu.matmul %39, %40, %cst_18 {dimension_numbers = #tpu.dot_dimension_numbers<[1], [1], [0], [0], [0, 0, 1, 0], [], []>} : vector<8x8xbf16>, vector<8x8xbf16>, vector<8x8xf32> -> vector<8x8xf32>
    %cst_19 = arith.constant dense<0xFF800000> : vector<8xf32>
    %42 = vector.multi_reduction <maximumf>, %41, %cst_19 [1] : vector<8x8xf32> to vector<8xf32>
    %43 = vector.shape_cast %42 : vector<8xf32> to vector<8x1xf32>
    %44 = vector.broadcast %43 : vector<8x1xf32> to vector<8x8xf32>
    %45 = arith.subf %41, %44 : vector<8x8xf32>
    %46 = math.exp %45 : vector<8x8xf32>
    %cst_20 = arith.constant dense<0.000000e+00> : vector<8xf32>
    %47 = vector.multi_reduction <add>, %46, %cst_20 [1] : vector<8x8xf32> to vector<8xf32>
    %48 = vector.shape_cast %47 : vector<8xf32> to vector<8x1xf32>
    %49 = vector.broadcast %48 : vector<8x1xf32> to vector<8x8xf32>
    %50 = arith.divf %46, %49 : vector<8x8xf32>
    %51 = arith.truncf %50 : vector<8x8xf32> to vector<8x8xbf16>
    %52 = vector.extract_strided_slice %38 {offsets = [0, 0], sizes = [8, 8], strides = [1, 1]} : vector<8x32xbf16> to vector<8x8xbf16>
    %cst_21 = arith.constant dense<0.000000e+00> : vector<8x8xf32>
    %53 = tpu.matmul %51, %52, %cst_21 {dimension_numbers = #tpu.dot_dimension_numbers<[1], [0], [0], [1], [0, 0, 1, 1], [], []>} : vector<8x8xbf16>, vector<8x8xbf16>, vector<8x8xf32> -> vector<8x8xf32>
    %54 = arith.truncf %53 : vector<8x8xf32> to vector<8x8xbf16>
    %c0_22 = arith.constant 0 : index
    %c0_23 = arith.constant 0 : index
    %55 = vector.load %arg19[%c0_22, %c0_23] : memref<8x32xbf16, #tpu.memory_space<vmem>>, vector<8x8xbf16>
    tpu.vector_store %arg19[%c0_22, %c0_23], %54 {strides = array<i32>} : memref<8x32xbf16, #tpu.memory_space<vmem>>, vector<8x8xbf16>,
    %56 = vector.extract_strided_slice %36 {offsets = [0, 8], sizes = [8, 8], strides = [1, 1]} : vector<8x32xbf16> to vector<8x8xbf16>
    %57 = vector.extract_strided_slice %37 {offsets = [0, 8], sizes = [8, 8], strides = [1, 1]} : vector<8x32xbf16> to vector<8x8xbf16>
    %cst_24 = arith.constant dense<0.000000e+00> : vector<8x8xf32>
    %58 = tpu.matmul %56, %57, %cst_24 {dimension_numbers = #tpu.dot_dimension_numbers<[1], [1], [0], [0], [0, 0, 1, 0], [], []>} : vector<8x8xbf16>, vector<8x8xbf16>, vector<8x8xf32> -> vector<8x8xf32>
    %cst_25 = arith.constant dense<0xFF800000> : vector<8xf32>
    %59 = vector.multi_reduction <maximumf>, %58, %cst_25 [1] : vector<8x8xf32> to vector<8xf32>
    %60 = vector.shape_cast %59 : vector<8xf32> to vector<8x1xf32>
    %61 = vector.broadcast %60 : vector<8x1xf32> to vector<8x8xf32>
    %62 = arith.subf %58, %61 : vector<8x8xf32>
    %63 = math.exp %62 : vector<8x8xf32>
    %cst_26 = arith.constant dense<0.000000e+00> : vector<8xf32>
    %64 = vector.multi_reduction <add>, %63, %cst_26 [1] : vector<8x8xf32> to vector<8xf32>
    %65 = vector.shape_cast %64 : vector<8xf32> to vector<8x1xf32>
    %66 = vector.broadcast %65 : vector<8x1xf32> to vector<8x8xf32>
    %67 = arith.divf %63, %66 : vector<8x8xf32>
    %68 = arith.truncf %67 : vector<8x8xf32> to vector<8x8xbf16>
    %69 = vector.extract_strided_slice %38 {offsets = [0, 8], sizes = [8, 8], strides = [1, 1]} : vector<8x32xbf16> to vector<8x8xbf16>
    %cst_27 = arith.constant dense<0.000000e+00> : vector<8x8xf32>
    %70 = tpu.matmul %68, %69, %cst_27 {dimension_numbers = #tpu.dot_dimension_numbers<[1], [0], [0], [1], [0, 0, 1, 1], [], []>} : vector<8x8xbf16>, vector<8x8xbf16>, vector<8x8xf32> -> vector<8x8xf32>
    %71 = arith.truncf %70 : vector<8x8xf32> to vector<8x8xbf16>
    %c0_28 = arith.constant 0 : index
    %c8 = arith.constant 8 : index
    %72 = vector.load %arg19[%c0_28, %c8] : memref<8x32xbf16, #tpu.memory_space<vmem>>, vector<8x8xbf16>
    tpu.vector_store %arg19[%c0_28, %c8], %71 {strides = array<i32>} : memref<8x32xbf16, #tpu.memory_space<vmem>>, vector<8x8xbf16>,
    %73 = vector.extract_strided_slice %36 {offsets = [0, 16], sizes = [8, 8], strides = [1, 1]} : vector<8x32xbf16> to vector<8x8xbf16>
    %74 = vector.extract_strided_slice %37 {offsets = [0, 16], sizes = [8, 8], strides = [1, 1]} : vector<8x32xbf16> to vector<8x8xbf16>
    %cst_29 = arith.constant dense<0.000000e+00> : vector<8x8xf32>
    %75 = tpu.matmul %73, %74, %cst_29 {dimension_numbers = #tpu.dot_dimension_numbers<[1], [1], [0], [0], [0, 0, 1, 0], [], []>} : vector<8x8xbf16>, vector<8x8xbf16>, vector<8x8xf32> -> vector<8x8xf32>
    %cst_30 = arith.constant dense<0xFF800000> : vector<8xf32>
    %76 = vector.multi_reduction <maximumf>, %75, %cst_30 [1] : vector<8x8xf32> to vector<8xf32>
    %77 = vector.shape_cast %76 : vector<8xf32> to vector<8x1xf32>
    %78 = vector.broadcast %77 : vector<8x1xf32> to vector<8x8xf32>
    %79 = arith.subf %75, %78 : vector<8x8xf32>
    %80 = math.exp %79 : vector<8x8xf32>
    %cst_31 = arith.constant dense<0.000000e+00> : vector<8xf32>
    %81 = vector.multi_reduction <add>, %80, %cst_31 [1] : vector<8x8xf32> to vector<8xf32>
    %82 = vector.shape_cast %81 : vector<8xf32> to vector<8x1xf32>
    %83 = vector.broadcast %82 : vector<8x1xf32> to vector<8x8xf32>
    %84 = arith.divf %80, %83 : vector<8x8xf32>
    %85 = arith.truncf %84 : vector<8x8xf32> to vector<8x8xbf16>
    %86 = vector.extract_strided_slice %38 {offsets = [0, 16], sizes = [8, 8], strides = [1, 1]} : vector<8x32xbf16> to vector<8x8xbf16>
    %cst_32 = arith.constant dense<0.000000e+00> : vector<8x8xf32>
    %87 = tpu.matmul %85, %86, %cst_32 {dimension_numbers = #tpu.dot_dimension_numbers<[1], [0], [0], [1], [0, 0, 1, 1], [], []>} : vector<8x8xbf16>, vector<8x8xbf16>, vector<8x8xf32> -> vector<8x8xf32>
    %88 = arith.truncf %87 : vector<8x8xf32> to vector<8x8xbf16>
    %c0_33 = arith.constant 0 : index
    %c16 = arith.constant 16 : index
    %89 = vector.load %arg19[%c0_33, %c16] : memref<8x32xbf16, #tpu.memory_space<vmem>>, vector<8x8xbf16>
    tpu.vector_store %arg19[%c0_33, %c16], %88 {strides = array<i32>} : memref<8x32xbf16, #tpu.memory_space<vmem>>, vector<8x8xbf16>,
    %90 = vector.extract_strided_slice %36 {offsets = [0, 24], sizes = [8, 8], strides = [1, 1]} : vector<8x32xbf16> to vector<8x8xbf16>
    %91 = vector.extract_strided_slice %37 {offsets = [0, 24], sizes = [8, 8], strides = [1, 1]} : vector<8x32xbf16> to vector<8x8xbf16>
    %cst_34 = arith.constant dense<0.000000e+00> : vector<8x8xf32>
    %92 = tpu.matmul %90, %91, %cst_34 {dimension_numbers = #tpu.dot_dimension_numbers<[1], [1], [0], [0], [0, 0, 1, 0], [], []>} : vector<8x8xbf16>, vector<8x8xbf16>, vector<8x8xf32> -> vector<8x8xf32>
    %cst_35 = arith.constant dense<0xFF800000> : vector<8xf32>
    %93 = vector.multi_reduction <maximumf>, %92, %cst_35 [1] : vector<8x8xf32> to vector<8xf32>
    %94 = vector.shape_cast %93 : vector<8xf32> to vector<8x1xf32>
    %95 = vector.broadcast %94 : vector<8x1xf32> to vector<8x8xf32>
    %96 = arith.subf %92, %95 : vector<8x8xf32>
    %97 = math.exp %96 : vector<8x8xf32>
    %cst_36 = arith.constant dense<0.000000e+00> : vector<8xf32>
    %98 = vector.multi_reduction <add>, %97, %cst_36 [1] : vector<8x8xf32> to vector<8xf32>
    %99 = vector.shape_cast %98 : vector<8xf32> to vector<8x1xf32>
    %100 = vector.broadcast %99 : vector<8x1xf32> to vector<8x8xf32>
    %101 = arith.divf %97, %100 : vector<8x8xf32>
    %102 = arith.truncf %101 : vector<8x8xf32> to vector<8x8xbf16>
    %103 = vector.extract_strided_slice %38 {offsets = [0, 24], sizes = [8, 8], strides = [1, 1]} : vector<8x32xbf16> to vector<8x8xbf16>
    %cst_37 = arith.constant dense<0.000000e+00> : vector<8x8xf32>
    %104 = tpu.matmul %102, %103, %cst_37 {dimension_numbers = #tpu.dot_dimension_numbers<[1], [0], [0], [1], [0, 0, 1, 1], [], []>} : vector<8x8xbf16>, vector<8x8xbf16>, vector<8x8xf32> -> vector<8x8xf32>
    %105 = arith.truncf %104 : vector<8x8xf32> to vector<8x8xbf16>
    %c0_38 = arith.constant 0 : index
    %c24 = arith.constant 24 : index
    %106 = vector.load %arg19[%c0_38, %c24] : memref<8x32xbf16, #tpu.memory_space<vmem>>, vector<8x8xbf16>
    tpu.vector_store %arg19[%c0_38, %c24], %105 {strides = array<i32>} : memref<8x32xbf16, #tpu.memory_space<vmem>>, vector<8x8xbf16>,
    %c0_39 = arith.constant 0 : index
    %c0_40 = arith.constant 0 : index
    %107 = vector.load %arg19[%c0_39, %c0_40] : memref<8x32xbf16, #tpu.memory_space<vmem>>, vector<8x32xbf16>
    %c0_41 = arith.constant 0 : index
    %c0_42 = arith.constant 0 : index
    %108 = vector.load %arg9[%c0_41, %c0_42] : memref<32x32xbf16, #tpu.memory_space<vmem>>, vector<32x32xbf16>
    %cst_43 = arith.constant dense<0.000000e+00> : vector<8x32xf32>
    %109 = tpu.matmul %107, %108, %cst_43 {dimension_numbers = #tpu.dot_dimension_numbers<[1], [0], [0], [1], [0, 0, 1, 1], [], []>} : vector<8x32xbf16>, vector<32x32xbf16>, vector<8x32xf32> -> vector<8x32xf32>
    %110 = arith.addf %8, %109 : vector<8x32xf32>
    %c0_44 = arith.constant 0 : index
    %c0_45 = arith.constant 0 : index
    %111 = vector.load %arg10[%c0_44, %c0_45] : memref<1x32xf32, #tpu.memory_space<vmem>>, vector<1x32xf32>
    %112 = vector.shape_cast %111 : vector<1x32xf32> to vector<32xf32>
    %c0_46 = arith.constant 0 : index
    %c0_47 = arith.constant 0 : index
    %113 = vector.load %arg11[%c0_46, %c0_47] : memref<1x32xf32, #tpu.memory_space<vmem>>, vector<1x32xf32>
    %114 = vector.shape_cast %113 : vector<1x32xf32> to vector<32xf32>
    %cst_48 = arith.constant dense<0.000000e+00> : vector<8xf32>
    %115 = vector.multi_reduction <add>, %110, %cst_48 [1] : vector<8x32xf32> to vector<8xf32>
    %116 = vector.shape_cast %115 : vector<8xf32> to vector<8x1xf32>
    %cst_49 = arith.constant 3.200000e+01 : f32
    %117 = vector.broadcast %cst_49 : f32 to vector<8x1xf32>
    %118 = arith.divf %116, %117 : vector<8x1xf32>
    %119 = vector.broadcast %118 : vector<8x1xf32> to vector<8x32xf32>
    %120 = arith.subf %110, %119 : vector<8x32xf32>
    %121 = arith.mulf %120, %120 : vector<8x32xf32>
    %cst_50 = arith.constant dense<0.000000e+00> : vector<8xf32>
    %122 = vector.multi_reduction <add>, %121, %cst_50 [1] : vector<8x32xf32> to vector<8xf32>
    %123 = vector.shape_cast %122 : vector<8xf32> to vector<8x1xf32>
    %cst_51 = arith.constant 3.200000e+01 : f32
    %124 = vector.broadcast %cst_51 : f32 to vector<8x1xf32>
    %125 = arith.divf %123, %124 : vector<8x1xf32>
    %126 = vector.broadcast %118 : vector<8x1xf32> to vector<8x32xf32>
    %127 = arith.subf %110, %126 : vector<8x32xf32>
    %cst_52 = arith.constant 9.99999974E-6 : f32
    %128 = vector.broadcast %cst_52 : f32 to vector<8x1xf32>
    %129 = arith.addf %125, %128 : vector<8x1xf32>
    %130 = math.rsqrt %129 : vector<8x1xf32>
    %131 = vector.broadcast %130 : vector<8x1xf32> to vector<8x32xf32>
    %132 = arith.mulf %127, %131 : vector<8x32xf32>
    %133 = vector.shape_cast %112 : vector<32xf32> to vector<1x32xf32>
    %134 = vector.broadcast %133 : vector<1x32xf32> to vector<8x32xf32>
    %135 = arith.mulf %132, %134 : vector<8x32xf32>
    %136 = vector.shape_cast %114 : vector<32xf32> to vector<1x32xf32>
    %137 = vector.broadcast %136 : vector<1x32xf32> to vector<8x32xf32>
    %138 = arith.addf %135, %137 : vector<8x32xf32>
    %139 = arith.truncf %138 : vector<8x32xf32> to vector<8x32xbf16>
    %c0_53 = arith.constant 0 : index
    %c0_54 = arith.constant 0 : index
    %140 = vector.load %arg12[%c0_53, %c0_54] : memref<32x64xbf16, #tpu.memory_space<vmem>>, vector<32x64xbf16>
    %cst_55 = arith.constant dense<0.000000e+00> : vector<8x64xf32>
    %141 = tpu.matmul %139, %140, %cst_55 {dimension_numbers = #tpu.dot_dimension_numbers<[1], [0], [0], [1], [0, 0, 1, 1], [], []>} : vector<8x32xbf16>, vector<32x64xbf16>, vector<8x64xf32> -> vector<8x64xf32>
    %c0_56 = arith.constant 0 : index
    %c0_57 = arith.constant 0 : index
    %142 = vector.load %arg13[%c0_56, %c0_57] : memref<1x64xf32, #tpu.memory_space<vmem>>, vector<1x64xf32>
    %143 = vector.shape_cast %142 : vector<1x64xf32> to vector<64xf32>
    %144 = vector.shape_cast %143 : vector<64xf32> to vector<1x64xf32>
    %145 = vector.broadcast %144 : vector<1x64xf32> to vector<8x64xf32>
    %146 = arith.addf %141, %145 : vector<8x64xf32>
    %cst_58 = arith.constant 0.000000e+00 : f32
    %147 = vector.broadcast %cst_58 : f32 to vector<8x64xf32>
    %148 = arith.maximumf %146, %147 : vector<8x64xf32>
    %149 = arith.truncf %148 : vector<8x64xf32> to vector<8x64xbf16>
    %c0_59 = arith.constant 0 : index
    %c0_60 = arith.constant 0 : index
    %150 = vector.load %arg14[%c0_59, %c0_60] : memref<64x32xbf16, #tpu.memory_space<vmem>>, vector<64x32xbf16>
    %cst_61 = arith.constant dense<0.000000e+00> : vector<8x32xf32>
    %151 = tpu.matmul %149, %150, %cst_61 {dimension_numbers = #tpu.dot_dimension_numbers<[1], [0], [0], [1], [0, 0, 1, 1], [], []>} : vector<8x64xbf16>, vector<64x32xbf16>, vector<8x32xf32> -> vector<8x32xf32>
    %c0_62 = arith.constant 0 : index
    %c0_63 = arith.constant 0 : index
    %152 = vector.load %arg15[%c0_62, %c0_63] : memref<1x32xf32, #tpu.memory_space<vmem>>, vector<1x32xf32>
    %153 = vector.shape_cast %152 : vector<1x32xf32> to vector<32xf32>
    %154 = vector.shape_cast %153 : vector<32xf32> to vector<1x32xf32>
    %155 = vector.broadcast %154 : vector<1x32xf32> to vector<8x32xf32>
    %156 = arith.addf %151, %155 : vector<8x32xf32>
    %157 = arith.addf %110, %156 : vector<8x32xf32>
    %c0_64 = arith.constant 0 : index
    %c0_65 = arith.constant 0 : index
    %c0_66 = arith.constant 0 : index
    %158 = vector.load %arg16[%c0_64, %c0_65, %c0_66] : memref<1x8x32xf32, #tpu.memory_space<vmem>>, vector<1x8x32xf32>
    %159 = vector.shape_cast %158 : vector<1x8x32xf32> to vector<8x32xf32>
    %160 = vector.shape_cast %157 : vector<8x32xf32> to vector<1x8x32xf32>
    tpu.vector_store %arg16[%c0_64, %c0_65, %c0_66], %160 {strides = array<i32>} : memref<1x8x32xf32, #tpu.memory_space<vmem>>, vector<1x8x32xf32>,
    return
  }
  func.func @transform_0(%arg0: i32, %arg1: i32) -> (i32, i32, i32) {
    %c0_i32 = arith.constant 0 : i32
    %c0_i32_0 = arith.constant 0 : i32
    return %arg0, %arg1, %c0_i32 : i32, i32, i32
  }
  func.func @transform_1(%arg0: i32, %arg1: i32) -> (i32, i32, i32) {
    %c0_i32 = arith.constant 0 : i32
    %c0_i32_0 = arith.constant 0 : i32
    %c0_i32_1 = arith.constant 0 : i32
    return %arg0, %c0_i32, %c0_i32_0 : i32, i32, i32
  }
  func.func @transform_2(%arg0: i32, %arg1: i32) -> (i32, i32) {
    %c0_i32 = arith.constant 0 : i32
    %c0_i32_0 = arith.constant 0 : i32
    %c0_i32_1 = arith.constant 0 : i32
    return %c0_i32, %c0_i32_0 : i32, i32
  }
  func.func @transform_3(%arg0: i32, %arg1: i32) -> (i32, i32) {
    %c0_i32 = arith.constant 0 : i32
    %c0_i32_0 = arith.constant 0 : i32
    %c0_i32_1 = arith.constant 0 : i32
    return %c0_i32, %c0_i32_0 : i32, i32
  }
  func.func @transform_4(%arg0: i32, %arg1: i32) -> (i32, i32) {
    %c0_i32 = arith.constant 0 : i32
    %c0_i32_0 = arith.constant 0 : i32
    %c0_i32_1 = arith.constant 0 : i32
    return %c0_i32, %c0_i32_0 : i32, i32
  }
  func.func @transform_5(%arg0: i32, %arg1: i32) -> (i32, i32) {
    %c0_i32 = arith.constant 0 : i32
    %c0_i32_0 = arith.constant 0 : i32
    %c0_i32_1 = arith.constant 0 : i32
    return %c0_i32, %c0_i32_0 : i32, i32
  }
  func.func @transform_6(%arg0: i32, %arg1: i32) -> (i32, i32) {
    %c0_i32 = arith.constant 0 : i32
    %c0_i32_0 = arith.constant 0 : i32
    %c0_i32_1 = arith.constant 0 : i32
    return %c0_i32, %c0_i32_0 : i32, i32
  }
  func.func @transform_7(%arg0: i32, %arg1: i32) -> (i32, i32) {
    %c0_i32 = arith.constant 0 : i32
    %c0_i32_0 = arith.constant 0 : i32
    %c0_i32_1 = arith.constant 0 : i32
    return %c0_i32, %c0_i32_0 : i32, i32
  }
  func.func @transform_8(%arg0: i32, %arg1: i32) -> (i32, i32) {
    %c0_i32 = arith.constant 0 : i32
    %c0_i32_0 = arith.constant 0 : i32
    %c0_i32_1 = arith.constant 0 : i32
    return %c0_i32, %c0_i32_0 : i32, i32
  }
  func.func @transform_9(%arg0: i32, %arg1: i32) -> (i32, i32) {
    %c0_i32 = arith.constant 0 : i32
    %c0_i32_0 = arith.constant 0 : i32
    %c0_i32_1 = arith.constant 0 : i32
    return %c0_i32, %c0_i32_0 : i32, i32
  }
  func.func @transform_10(%arg0: i32, %arg1: i32) -> (i32, i32) {
    %c0_i32 = arith.constant 0 : i32
    %c0_i32_0 = arith.constant 0 : i32
    %c0_i32_1 = arith.constant 0 : i32
    return %c0_i32, %c0_i32_0 : i32, i32
  }
  func.func @transform_11(%arg0: i32, %arg1: i32) -> (i32, i32) {
    %c0_i32 = arith.constant 0 : i32
    %c0_i32_0 = arith.constant 0 : i32
    %c0_i32_1 = arith.constant 0 : i32
    return %c0_i32, %c0_i32_0 : i32, i32
  }
  func.func @transform_12(%arg0: i32, %arg1: i32) -> (i32, i32) {
    %c0_i32 = arith.constant 0 : i32
    %c0_i32_0 = arith.constant 0 : i32
    %c0_i32_1 = arith.constant 0 : i32
    return %c0_i32, %c0_i32_0 : i32, i32
  }
  func.func @transform_13(%arg0: i32, %arg1: i32) -> (i32, i32) {
    %c0_i32 = arith.constant 0 : i32
    %c0_i32_0 = arith.constant 0 : i32
    %c0_i32_1 = arith.constant 0 : i32
    return %c0_i32, %c0_i32_0 : i32, i32
  }
  func.func @transform_14(%arg0: i32, %arg1: i32) -> (i32, i32, i32) {
    %c0_i32 = arith.constant 0 : i32
    %c0_i32_0 = arith.constant 0 : i32
    return %arg0, %arg1, %c0_i32 : i32, i32, i32
  }
}

</mosaic_0001>

<llo_original>
// kernel: tpu_custom_call.1
$region0: #{tpu_custom_call.1}
  #allocation0 [shape = 'u32[]', space=smem, size = 0x4, offset = 0x4, fixed_abs, tag = 'smem constant byte address 0x4 - core index']
  #allocation1 [shape = 'u32[72,128]{1,0:T(1,128)}', space=vmem, size = 0x9000, scoped, tag = 'internal scratch']
  #allocation2 [shape = 'bf16[8,32]{1,0:T(8,128)(2,1)}', space=vmem, size = 0x800, scoped, tag = 'scratch operand']
  #allocation3 [shape = 'bf16[8,32]{1,0:T(8,128)(2,1)}', space=vmem, size = 0x800, scoped, tag = 'scratch operand']
  #allocation4 [shape = 'bf16[8,32]{1,0:T(8,128)(2,1)}', space=vmem, size = 0x800, scoped, tag = 'scratch operand']
  %s0 = inlined_call_operand.vmem [shape: f32[2,8,32], index: 0, kind: input, shape index: {}]
  %s1 = inlined_call_operand.vmem [shape: f32[2,8,32], index: 1, kind: input, shape index: {}]
  %s2 = inlined_call_operand.vmem [shape: f32[1,32], index: 2, kind: input, shape index: {}]
  %s3 = inlined_call_operand.vmem [shape: f32[1,32], index: 3, kind: input, shape index: {}]
  %s4 = inlined_call_operand.vmem [shape: bf16[32,32], index: 4, kind: input, shape index: {}]
  %s5 = inlined_call_operand.hbm [shape: bf16[32,32], index: 5, kind: input, shape index: {}]
  %s6 = inlined_call_operand.hbm [shape: bf16[32,32], index: 6, kind: input, shape index: {}]
  %s7 = inlined_call_operand.hbm [shape: bf16[32,32], index: 7, kind: input, shape index: {}]
  %s8 = inlined_call_operand.vmem [shape: f32[1,32], index: 8, kind: input, shape index: {}]
  %s9 = inlined_call_operand.vmem [shape: f32[1,32], index: 9, kind: input, shape index: {}]
  %s10 = inlined_call_operand.hbm [shape: bf16[32,64], index: 10, kind: input, shape index: {}]
  %s11 = inlined_call_operand.vmem [shape: f32[1,64], index: 11, kind: input, shape index: {}]
  %s12 = inlined_call_operand.vmem [shape: bf16[64,32], index: 12, kind: input, shape index: {}]
  %s13 = inlined_call_operand.vmem [shape: f32[1,32], index: 13, kind: input, shape index: {}]
  %s14 = inlined_call_operand.hbm [shape: f32[2,8,32], index: 14, kind: output, shape index: {}]
  %s15 = sld [smem:[#allocation0]]
  $region109: #{tpu_custom_call.1} parent=0
    _
  %s17 = ssub.s32 1, %s15
  %s18 = scalar_select 0, %s17, %s15
  $region1: #{tpu_custom_call.1} parent=0
    #allocation5 [shape = 'u8[8192]{0}', space=vmem, size = 0x2000, scoped, tag = 'input window, operand 5, single buffered']
    #allocation6 [shape = 's32[2]{0}', space=sflag, size = 0x8, scoped, tag = 'scoped memory for tpu_custom_call.1']
    #allocation7 [shape = 's32[2]{0}', space=sflag, size = 0x8, scoped, tag = 'scoped memory for tpu_custom_call.1']
    #allocation8 [shape = 'u8[8192]{0}', space=vmem, size = 0x2000, scoped, tag = 'input window, operand 6, single buffered']
    #allocation9 [shape = 's32[1]{0}', space=sflag, size = 0x4, scoped, tag = 'scoped memory for tpu_custom_call.1']
    #allocation10 [shape = 'u8[8192]{0}', space=vmem, size = 0x2000, scoped, tag = 'input window, operand 7, single buffered']
    #allocation11 [shape = 'u8[8192]{0}', space=vmem, size = 0x2000, scoped, tag = 'input window, operand 10, single buffered']
    #allocation12 [shape = 's32[1]{0}', space=sflag, size = 0x4, scoped, tag = 'scoped memory for tpu_custom_call.1']
    #allocation13 [shape = 'u8[8192]{0}', space=vmem, size = 0x2000, scoped, tag = 'output window, operand 0']
    %19 = vsyncpa [#allocation6], 0
    %20 = vsyncpa [#allocation9], 0
    %21 = vsyncpa [#allocation12], 0
    %22 = vsyncpa [#allocation7], 0
    %s23 = scalar_lea.sflag [#allocation7], 1
    %24 = vsyncpa %s23, 0
    loop: start=0, step=1, limit=4
    $region2: #{tpu_custom_call.1} parent=1 // loop_pre_header
      _
    $region3: #{tpu_custom_call.1} parent=1 // loop_header
      %s26 = sphi 0, %s30
      %p27 = scmp.ge.s32.totalorder %s26, 4
      %s33 = sphi 0, %s45
      %s34 = sphi 0, %s41
      %s35 = sphi 0, %s33
      %s36 = sphi 0, %s34
      %s37 = sphi 0, %s35
      %s38 = sphi 0, %s36
      %s50 = sphi 0, %s52
      %s53 = sphi 0, %s50
      %s54 = sphi 0, %s53
      %s70 = sphi 0, %s54
      %s76 = sphi 0, %s78
      %s79 = sphi 0, %s76
      %s80 = sphi 0, %s79
      %s96 = sphi 0, %s80
      %s100 = sphi 0, %s100
      %s102 = sphi 0, %s100
      %s103 = sphi 0, %s102
      %s117 = sphi 0, %s103
      %s121 = sphi 0, %s121
      %s123 = sphi 0, %s121
      %s124 = sphi 0, %s123
      %s138 = sphi 0, %s124
      %s142 = sphi 0, %s142
      %s144 = sphi 0, %s142
      %s145 = sphi 0, %s144
      %s159 = sphi 0, %s145
      %s163 = sphi 0, %s163
      %s165 = sphi 0, %s163
      %s166 = sphi 0, %s165
      %s180 = sphi 0, %s166
      %s184 = sphi 0, %s184
      %s186 = sphi 0, %s184
      %s187 = sphi 0, %s186
      %s201 = sphi 0, %s187
      %s205 = sphi 0, %s205
      %s207 = sphi 0, %s205
      %s208 = sphi 0, %s207
      %s222 = sphi 0, %s208
      %s226 = sphi 0, %s226
      %s228 = sphi 0, %s226
      %s229 = sphi 0, %s228
      %s243 = sphi 0, %s229
      %s247 = sphi 0, %s247
      %s249 = sphi 0, %s247
      %s250 = sphi 0, %s249
      %s264 = sphi 0, %s250
      %s268 = sphi 0, %s268
      %s270 = sphi 0, %s268
      %s271 = sphi 0, %s270
      %s285 = sphi 0, %s271
      %s289 = sphi 0, %s289
      %s291 = sphi 0, %s289
      %s292 = sphi 0, %s291
      %s306 = sphi 0, %s292
      %s310 = sphi 0, %s310
      %s312 = sphi 0, %s310
      %s313 = sphi 0, %s312
      %s327 = sphi 0, %s313
      %s331 = sphi 0, %s331
      %s333 = sphi 0, %s331
      %s334 = sphi 0, %s333
      %s348 = sphi 0, %s334
      %s356 = sphi 0, %s358
      %s359 = sphi 0, %s356
      %s360 = sphi 0, %s359
      %s376 = sphi 0, %s360
    $region4: #{tpu_custom_call.1} parent=1 // loop_header_branch
      %29 = sbr.rel (%p27) target = $region8
    $region5: #{tpu_custom_call.1} parent=1 // loop_body
      %s31 = ssub.s32 %s26, 1
      %s32 = ssub.s32 %s26, 2
      %s39 = sadd.s32 1, %s34
      %p40 = scmp.ge.s32.totalorder %s39, 1
      %s41 = scalar_select %p40, 0, %s39
      %s42 = sadd.s32 1, %s33
      %s43 = scalar_select %p40, %s42, %s33
      %p44 = scmp.ge.s32.totalorder %s43, 2
      %s45 = scalar_select %p44, 0, %s43
      %s46 = ssub.s32 %s33, %s45
      %s47 = ssub.s32 %s34, %s41
      %s48 = sor.u32 %s46, %s47
      %p49 = scmp.eq.s32.totalorder %s48, 0
      %s51 = sadd.s32 %s50, 1
      %s52 = scalar_select %p49, %s50, %s51
      %p55 = pneg %p49
      %p56 = scmp.eq.s32.totalorder %s26, 1
      %p57 = por %p55, %p56
      %p58 = scmp.ne.s32.totalorder %s50, %s53
      %p59 = scmp.eq.s32.totalorder %s26, 0
      %p60 = por %p58, %p59
      %p61 = scmp.ne.s32.totalorder %s50, %s53
      %p62 = scmp.eq.s32.totalorder %s31, 1
      %p63 = por %p61, %p62
      %p64 = scmp.ne.s32.totalorder %s53, %s54
      %p65 = scmp.eq.s32.totalorder %s31, 0
      %p66 = por %p64, %p65
      %p67 = scmp.ne.s32.totalorder %s53, %s54
      %p68 = scmp.eq.s32.totalorder %s32, 1
      %p69 = por %p67, %p68
      %p71 = scmp.ne.s32.totalorder %s54, %s70
      %p72 = scmp.eq.s32.totalorder %s32, 0
      %p73 = por %p71, %p72
      %s74 = ssub.s32 %s33, %s45
      %p75 = scmp.eq.s32.totalorder %s74, 0
      %s77 = sadd.s32 %s76, 1
      %s78 = scalar_select %p75, %s76, %s77
      %p81 = pneg %p75
      %p82 = scmp.eq.s32.totalorder %s26, 1
      %p83 = por %p81, %p82
      %p84 = scmp.ne.s32.totalorder %s76, %s79
      %p85 = scmp.eq.s32.totalorder %s26, 0
      %p86 = por %p84, %p85
      %p87 = scmp.ne.s32.totalorder %s76, %s79
      %p88 = scmp.eq.s32.totalorder %s31, 1
      %p89 = por %p87, %p88
      %p90 = scmp.ne.s32.totalorder %s79, %s80
      %p91 = scmp.eq.s32.totalorder %s31, 0
      %p92 = por %p90, %p91
      %p93 = scmp.ne.s32.totalorder %s79, %s80
      %p94 = scmp.eq.s32.totalorder %s32, 1
      %p95 = por %p93, %p94
      %p97 = scmp.ne.s32.totalorder %s80, %s96
      %p98 = scmp.eq.s32.totalorder %s32, 0
      %p99 = por %p97, %p98
      %s101 = sadd.s32 %s100, 1
      %p104 = scmp.eq.s32.totalorder %s26, 1
      %p105 = scmp.ne.s32.totalorder %s100, %s102
      %p106 = scmp.eq.s32.totalorder %s26, 0
      %p107 = por %p105, %p106
      %p108 = scmp.ne.s32.totalorder %s100, %s102
      %p109 = scmp.eq.s32.totalorder %s31, 1
      %p110 = por %p108, %p109
      %p111 = scmp.ne.s32.totalorder %s102, %s103
      %p112 = scmp.eq.s32.totalorder %s31, 0
      %p113 = por %p111, %p112
      %p114 = scmp.ne.s32.totalorder %s102, %s103
      %p115 = scmp.eq.s32.totalorder %s32, 1
      %p116 = por %p114, %p115
      %p118 = scmp.ne.s32.totalorder %s103, %s117
      %p119 = scmp.eq.s32.totalorder %s32, 0
      %p120 = por %p118, %p119
      %s122 = sadd.s32 %s121, 1
      %p125 = scmp.eq.s32.totalorder %s26, 1
      %p126 = scmp.ne.s32.totalorder %s121, %s123
      %p127 = scmp.eq.s32.totalorder %s26, 0
      %p128 = por %p126, %p127
      %p129 = scmp.ne.s32.totalorder %s121, %s123
      %p130 = scmp.eq.s32.totalorder %s31, 1
      %p131 = por %p129, %p130
      %p132 = scmp.ne.s32.totalorder %s123, %s124
      %p133 = scmp.eq.s32.totalorder %s31, 0
      %p134 = por %p132, %p133
      %p135 = scmp.ne.s32.totalorder %s123, %s124
      %p136 = scmp.eq.s32.totalorder %s32, 1
      %p137 = por %p135, %p136
      %p139 = scmp.ne.s32.totalorder %s124, %s138
      %p140 = scmp.eq.s32.totalorder %s32, 0
      %p141 = por %p139, %p140
      %s143 = sadd.s32 %s142, 1
      %p146 = scmp.eq.s32.totalorder %s26, 1
      %p147 = scmp.ne.s32.totalorder %s142, %s144
      %p148 = scmp.eq.s32.totalorder %s26, 0
      %p149 = por %p147, %p148
      %p150 = scmp.ne.s32.totalorder %s142, %s144
      %p151 = scmp.eq.s32.totalorder %s31, 1
      %p152 = por %p150, %p151
      %p153 = scmp.ne.s32.totalorder %s144, %s145
      %p154 = scmp.eq.s32.totalorder %s31, 0
      %p155 = por %p153, %p154
      %p156 = scmp.ne.s32.totalorder %s144, %s145
      %p157 = scmp.eq.s32.totalorder %s32, 1
      %p158 = por %p156, %p157
      %p160 = scmp.ne.s32.totalorder %s145, %s159
      %p161 = scmp.eq.s32.totalorder %s32, 0
      %p162 = por %p160, %p161
      %s164 = sadd.s32 %s163, 1
      %p167 = scmp.eq.s32.totalorder %s26, 1
      %p168 = scmp.ne.s32.totalorder %s163, %s165
      %p169 = scmp.eq.s32.totalorder %s26, 0
      %p170 = por %p168, %p169
      %p171 = scmp.ne.s32.totalorder %s163, %s165
      %p172 = scmp.eq.s32.totalorder %s31, 1
      %p173 = por %p171, %p172
      %p174 = scmp.ne.s32.totalorder %s165, %s166
      %p175 = scmp.eq.s32.totalorder %s31, 0
      %p176 = por %p174, %p175
      %p177 = scmp.ne.s32.totalorder %s165, %s166
      %p178 = scmp.eq.s32.totalorder %s32, 1
      %p179 = por %p177, %p178
      %p181 = scmp.ne.s32.totalorder %s166, %s180
      %p182 = scmp.eq.s32.totalorder %s32, 0
      %p183 = por %p181, %p182
      %s185 = sadd.s32 %s184, 1
      %p188 = scmp.eq.s32.totalorder %s26, 1
      %p189 = scmp.ne.s32.totalorder %s184, %s186
      %p190 = scmp.eq.s32.totalorder %s26, 0
      %p191 = por %p189, %p190
      %p192 = scmp.ne.s32.totalorder %s184, %s186
      %p193 = scmp.eq.s32.totalorder %s31, 1
      %p194 = por %p192, %p193
      %p195 = scmp.ne.s32.totalorder %s186, %s187
      %p196 = scmp.eq.s32.totalorder %s31, 0
      %p197 = por %p195, %p196
      %p198 = scmp.ne.s32.totalorder %s186, %s187
      %p199 = scmp.eq.s32.totalorder %s32, 1
      %p200 = por %p198, %p199
      %p202 = scmp.ne.s32.totalorder %s187, %s201
      %p203 = scmp.eq.s32.totalorder %s32, 0
      %p204 = por %p202, %p203
      %s206 = sadd.s32 %s205, 1
      %p209 = scmp.eq.s32.totalorder %s26, 1
      %p210 = scmp.ne.s32.totalorder %s205, %s207
      %p211 = scmp.eq.s32.totalorder %s26, 0
      %p212 = por %p210, %p211
      %p213 = scmp.ne.s32.totalorder %s205, %s207
      %p214 = scmp.eq.s32.totalorder %s31, 1
      %p215 = por %p213, %p214
      %p216 = scmp.ne.s32.totalorder %s207, %s208
      %p217 = scmp.eq.s32.totalorder %s31, 0
      %p218 = por %p216, %p217
      %p219 = scmp.ne.s32.totalorder %s207, %s208
      %p220 = scmp.eq.s32.totalorder %s32, 1
      %p221 = por %p219, %p220
      %p223 = scmp.ne.s32.totalorder %s208, %s222
      %p224 = scmp.eq.s32.totalorder %s32, 0
      %p225 = por %p223, %p224
      %s227 = sadd.s32 %s226, 1
      %p230 = scmp.eq.s32.totalorder %s26, 1
      %p231 = scmp.ne.s32.totalorder %s226, %s228
      %p232 = scmp.eq.s32.totalorder %s26, 0
      %p233 = por %p231, %p232
      %p234 = scmp.ne.s32.totalorder %s226, %s228
      %p235 = scmp.eq.s32.totalorder %s31, 1
      %p236 = por %p234, %p235
      %p237 = scmp.ne.s32.totalorder %s228, %s229
      %p238 = scmp.eq.s32.totalorder %s31, 0
      %p239 = por %p237, %p238
      %p240 = scmp.ne.s32.totalorder %s228, %s229
      %p241 = scmp.eq.s32.totalorder %s32, 1
      %p242 = por %p240, %p241
      %p244 = scmp.ne.s32.totalorder %s229, %s243
      %p245 = scmp.eq.s32.totalorder %s32, 0
      %p246 = por %p244, %p245
      %s248 = sadd.s32 %s247, 1
      %p251 = scmp.eq.s32.totalorder %s26, 1
      %p252 = scmp.ne.s32.totalorder %s247, %s249
      %p253 = scmp.eq.s32.totalorder %s26, 0
      %p254 = por %p252, %p253
      %p255 = scmp.ne.s32.totalorder %s247, %s249
      %p256 = scmp.eq.s32.totalorder %s31, 1
      %p257 = por %p255, %p256
      %p258 = scmp.ne.s32.totalorder %s249, %s250
      %p259 = scmp.eq.s32.totalorder %s31, 0
      %p260 = por %p258, %p259
      %p261 = scmp.ne.s32.totalorder %s249, %s250
      %p262 = scmp.eq.s32.totalorder %s32, 1
      %p263 = por %p261, %p262
      %p265 = scmp.ne.s32.totalorder %s250, %s264
      %p266 = scmp.eq.s32.totalorder %s32, 0
      %p267 = por %p265, %p266
      %s269 = sadd.s32 %s268, 1
      %p272 = scmp.eq.s32.totalorder %s26, 1
      %p273 = scmp.ne.s32.totalorder %s268, %s270
      %p274 = scmp.eq.s32.totalorder %s26, 0
      %p275 = por %p273, %p274
      %p276 = scmp.ne.s32.totalorder %s268, %s270
      %p277 = scmp.eq.s32.totalorder %s31, 1
      %p278 = por %p276, %p277
      %p279 = scmp.ne.s32.totalorder %s270, %s271
      %p280 = scmp.eq.s32.totalorder %s31, 0
      %p281 = por %p279, %p280
      %p282 = scmp.ne.s32.totalorder %s270, %s271
      %p283 = scmp.eq.s32.totalorder %s32, 1
      %p284 = por %p282, %p283
      %p286 = scmp.ne.s32.totalorder %s271, %s285
      %p287 = scmp.eq.s32.totalorder %s32, 0
      %p288 = por %p286, %p287
      %s290 = sadd.s32 %s289, 1
      %p293 = scmp.eq.s32.totalorder %s26, 1
      %p294 = scmp.ne.s32.totalorder %s289, %s291
      %p295 = scmp.eq.s32.totalorder %s26, 0
      %p296 = por %p294, %p295
      %p297 = scmp.ne.s32.totalorder %s289, %s291
      %p298 = scmp.eq.s32.totalorder %s31, 1
      %p299 = por %p297, %p298
      %p300 = scmp.ne.s32.totalorder %s291, %s292
      %p301 = scmp.eq.s32.totalorder %s31, 0
      %p302 = por %p300, %p301
      %p303 = scmp.ne.s32.totalorder %s291, %s292
      %p304 = scmp.eq.s32.totalorder %s32, 1
      %p305 = por %p303, %p304
      %p307 = scmp.ne.s32.totalorder %s292, %s306
      %p308 = scmp.eq.s32.totalorder %s32, 0
      %p309 = por %p307, %p308
      %s311 = sadd.s32 %s310, 1
      %p314 = scmp.eq.s32.totalorder %s26, 1
      %p315 = scmp.ne.s32.totalorder %s310, %s312
      %p316 = scmp.eq.s32.totalorder %s26, 0
      %p317 = por %p315, %p316
      %p318 = scmp.ne.s32.totalorder %s310, %s312
      %p319 = scmp.eq.s32.totalorder %s31, 1
      %p320 = por %p318, %p319
      %p321 = scmp.ne.s32.totalorder %s312, %s313
      %p322 = scmp.eq.s32.totalorder %s31, 0
      %p323 = por %p321, %p322
      %p324 = scmp.ne.s32.totalorder %s312, %s313
      %p325 = scmp.eq.s32.totalorder %s32, 1
      %p326 = por %p324, %p325
      %p328 = scmp.ne.s32.totalorder %s313, %s327
      %p329 = scmp.eq.s32.totalorder %s32, 0
      %p330 = por %p328, %p329
      %s332 = sadd.s32 %s331, 1
      %p335 = scmp.eq.s32.totalorder %s26, 1
      %p336 = scmp.ne.s32.totalorder %s331, %s333
      %p337 = scmp.eq.s32.totalorder %s26, 0
      %p338 = por %p336, %p337
      %p339 = scmp.ne.s32.totalorder %s331, %s333
      %p340 = scmp.eq.s32.totalorder %s31, 1
      %p341 = por %p339, %p340
      %p342 = scmp.ne.s32.totalorder %s333, %s334
      %p343 = scmp.eq.s32.totalorder %s31, 0
      %p344 = por %p342, %p343
      %p345 = scmp.ne.s32.totalorder %s333, %s334
      %p346 = scmp.eq.s32.totalorder %s32, 1
      %p347 = por %p345, %p346
      %p349 = scmp.ne.s32.totalorder %s334, %s348
      %p350 = scmp.eq.s32.totalorder %s32, 0
      %p351 = por %p349, %p350
      %s352 = ssub.s32 %s33, %s45
      %s353 = ssub.s32 %s34, %s41
      %s354 = sor.u32 %s352, %s353
      %p355 = scmp.eq.s32.totalorder %s354, 0
      %s357 = sadd.s32 %s356, 1
      %s358 = scalar_select %p355, %s356, %s357
      %p361 = pneg %p355
      %p362 = scmp.eq.s32.totalorder %s26, 1
      %p363 = por %p361, %p362
      %p364 = scmp.ne.s32.totalorder %s356, %s359
      %p365 = scmp.eq.s32.totalorder %s26, 0
      %p366 = por %p364, %p365
      %p367 = scmp.ne.s32.totalorder %s356, %s359
      %p368 = scmp.eq.s32.totalorder %s31, 1
      %p369 = por %p367, %p368
      %p370 = scmp.ne.s32.totalorder %s359, %s360
      %p371 = scmp.eq.s32.totalorder %s31, 0
      %p372 = por %p370, %p371
      %p373 = scmp.ne.s32.totalorder %s359, %s360
      %p374 = scmp.eq.s32.totalorder %s32, 1
      %p375 = por %p373, %p374
      %p377 = scmp.ne.s32.totalorder %s360, %s376
      %p378 = scmp.eq.s32.totalorder %s32, 0
      %p379 = por %p377, %p378
      %p380 = scmp.le.s32.totalorder 1, %s26
      %p381 = scmp.lt.s32.totalorder %s26, 3
      %p382 = pnand %p380, %p381
      %p383 = pneg %p382
      // Predicated region
      $region9: #{tpu_custom_call.1} parent=5 // pred_check
        _
      $region10: #{tpu_custom_call.1} parent=5 // pred_check_branch
        %385 = sbr.rel (%p382) target = $region12
      $region11: #{tpu_custom_call.1} parent=5 // pred_region
        %s386 = ssub.s32 %s26, 1
        // Predicated region
        $region13: #{tpu_custom_call.1} parent=11 // pred_check
          %p387 = pneg %p113
        $region14: #{tpu_custom_call.1} parent=11 // pred_check_branch
          %389 = sbr.rel (%p387) target = $region16
        $region15: #{tpu_custom_call.1} parent=11 // pred_region
          _
        $region16: #{tpu_custom_call.1} parent=11 // pred_fallthru
          _
        // Predicated region
        $region17: #{tpu_custom_call.1} parent=11 // pred_check
          %p390 = pneg %p134
        $region18: #{tpu_custom_call.1} parent=11 // pred_check_branch
          %392 = sbr.rel (%p390) target = $region20
        $region19: #{tpu_custom_call.1} parent=11 // pred_region
          _
        $region20: #{tpu_custom_call.1} parent=11 // pred_fallthru
          _
        // Predicated region
        $region21: #{tpu_custom_call.1} parent=11 // pred_check
          %p393 = pneg %p155
        $region22: #{tpu_custom_call.1} parent=11 // pred_check_branch
          %395 = sbr.rel (%p393) target = $region24
        $region23: #{tpu_custom_call.1} parent=11 // pred_region
          _
        $region24: #{tpu_custom_call.1} parent=11 // pred_fallthru
          _
        // Predicated region
        $region25: #{tpu_custom_call.1} parent=11 // pred_check
          %p396 = pneg %p176
        $region26: #{tpu_custom_call.1} parent=11 // pred_check_branch
          %398 = sbr.rel (%p396) target = $region28
        $region27: #{tpu_custom_call.1} parent=11 // pred_region
          %400 = vsyncadd [#allocation6], 0
          %s401 = sshll.u32 %s5, 4
          %s402 = int_to_ptr.hbm [resolvable:$true] %s401
          %s403 = sshll.u32 [#allocation5], 4
          %s404 = int_to_ptr.vmem [resolvable:$true] %s403
          %409 = dma.hbm_to_vmem [thread:$0]  %s402, 256, %s404, [#allocation6], 64, 64, 4
        $region28: #{tpu_custom_call.1} parent=11 // pred_fallthru
          _
        // Predicated region
        $region29: #{tpu_custom_call.1} parent=11 // pred_check
          %p410 = pneg %p197
        $region30: #{tpu_custom_call.1} parent=11 // pred_check_branch
          %412 = sbr.rel (%p410) target = $region32
        $region31: #{tpu_custom_call.1} parent=11 // pred_region
          %414 = vsyncadd [#allocation9], 0
          %s415 = sshll.u32 %s6, 4
          %s416 = int_to_ptr.hbm [resolvable:$true] %s415
          %s417 = sshll.u32 [#allocation8], 4
          %s418 = int_to_ptr.vmem [resolvable:$true] %s417
          %423 = dma.hbm_to_vmem [thread:$0]  %s416, 256, %s418, [#allocation9], 64, 64, 4
        $region32: #{tpu_custom_call.1} parent=11 // pred_fallthru
          _
        // Predicated region
        $region33: #{tpu_custom_call.1} parent=11 // pred_check
          %p424 = pneg %p218
        $region34: #{tpu_custom_call.1} parent=11 // pred_check_branch
          %426 = sbr.rel (%p424) target = $region36
        $region35: #{tpu_custom_call.1} parent=11 // pred_region
          %428 = vsyncadd [#allocation9], 0
          %s429 = sshll.u32 %s7, 4
          %s430 = int_to_ptr.hbm [resolvable:$true] %s429
          %s431 = sshll.u32 [#allocation10], 4
          %s432 = int_to_ptr.vmem [resolvable:$true] %s431
          %437 = dma.hbm_to_vmem [thread:$0]  %s430, 256, %s432, [#allocation9], 64, 64, 4
        $region36: #{tpu_custom_call.1} parent=11 // pred_fallthru
          _
        // Predicated region
        $region37: #{tpu_custom_call.1} parent=11 // pred_check
          %p438 = pneg %p239
        $region38: #{tpu_custom_call.1} parent=11 // pred_check_branch
          %440 = sbr.rel (%p438) target = $region40
        $region39: #{tpu_custom_call.1} parent=11 // pred_region
          _
        $region40: #{tpu_custom_call.1} parent=11 // pred_fallthru
          _
        // Predicated region
        $region41: #{tpu_custom_call.1} parent=11 // pred_check
          %p441 = pneg %p260
        $region42: #{tpu_custom_call.1} parent=11 // pred_check_branch
          %443 = sbr.rel (%p441) target = $region44
        $region43: #{tpu_custom_call.1} parent=11 // pred_region
          _
        $region44: #{tpu_custom_call.1} parent=11 // pred_fallthru
          _
        // Predicated region
        $region45: #{tpu_custom_call.1} parent=11 // pred_check
          %p444 = pneg %p281
        $region46: #{tpu_custom_call.1} parent=11 // pred_check_branch
          %446 = sbr.rel (%p444) target = $region48
        $region47: #{tpu_custom_call.1} parent=11 // pred_region
          %448 = vsyncadd [#allocation12], 0
          %s449 = sshll.u32 %s10, 4
          %s450 = int_to_ptr.hbm [resolvable:$true] %s449
          %s451 = sshll.u32 [#allocation11], 4
          %s452 = int_to_ptr.vmem [resolvable:$true] %s451
          %457 = dma.hbm_to_vmem [thread:$0]  %s450, 256, %s452, [#allocation12], 64, 64, 4
        $region48: #{tpu_custom_call.1} parent=11 // pred_fallthru
          _
        // Predicated region
        $region49: #{tpu_custom_call.1} parent=11 // pred_check
          %p458 = pneg %p302
        $region50: #{tpu_custom_call.1} parent=11 // pred_check_branch
          %460 = sbr.rel (%p458) target = $region52
        $region51: #{tpu_custom_call.1} parent=11 // pred_region
          _
        $region52: #{tpu_custom_call.1} parent=11 // pred_fallthru
          _
        // Predicated region
        $region53: #{tpu_custom_call.1} parent=11 // pred_check
          %p461 = pneg %p323
        $region54: #{tpu_custom_call.1} parent=11 // pred_check_branch
          %463 = sbr.rel (%p461) target = $region56
        $region55: #{tpu_custom_call.1} parent=11 // pred_region
          _
        $region56: #{tpu_custom_call.1} parent=11 // pred_fallthru
          _
        // Predicated region
        $region57: #{tpu_custom_call.1} parent=11 // pred_check
          %p464 = pneg %p344
        $region58: #{tpu_custom_call.1} parent=11 // pred_check_branch
          %466 = sbr.rel (%p464) target = $region60
        $region59: #{tpu_custom_call.1} parent=11 // pred_region
          _
        $region60: #{tpu_custom_call.1} parent=11 // pred_fallthru
          _
      $region12: #{tpu_custom_call.1} parent=5 // pred_fallthru
        _
      %p467 = scmp.lt.s32.totalorder %s26, 2
      // Predicated region
      $region61: #{tpu_custom_call.1} parent=5 // pred_check
        %p468 = pneg %p467
      $region62: #{tpu_custom_call.1} parent=5 // pred_check_branch
        %470 = sbr.rel (%p468) target = $region64
      $region63: #{tpu_custom_call.1} parent=5 // pred_region
        // Predicated region
        $region65: #{tpu_custom_call.1} parent=63 // pred_check
          %p471 = pneg %p60
        $region66: #{tpu_custom_call.1} parent=63 // pred_check_branch
          %473 = sbr.rel (%p471) target = $region68
        $region67: #{tpu_custom_call.1} parent=63 // pred_region
          %p474 = scmp.lt.s32.totalorder %s33, 1
          %s475 = scalar_select %p474, %s33, 1
          %p476 = scmp.lt.s32.totalorder %s34, 0
          %s477 = scalar_select %p476, %s34, 0
          %s478 = sadd.s32 %s477, %s475
          %s479 = smul.addr %s478, 8
          %s480 = scalar_lea.vmem %s0, %s479
        $region68: #{tpu_custom_call.1} parent=63 // pred_fallthru
          _
        // Predicated region
        $region69: #{tpu_custom_call.1} parent=63 // pred_check
          %p481 = pneg %p86
        $region70: #{tpu_custom_call.1} parent=63 // pred_check_branch
          %483 = sbr.rel (%p481) target = $region72
        $region71: #{tpu_custom_call.1} parent=63 // pred_region
          %p484 = scmp.lt.s32.totalorder %s33, 1
          %s485 = scalar_select %p484, %s33, 1
          %s486 = smul.addr %s485, 8
          %s487 = scalar_lea.vmem %s1, %s486
        $region72: #{tpu_custom_call.1} parent=63 // pred_fallthru
          _
      $region64: #{tpu_custom_call.1} parent=5 // pred_fallthru
        _
      %p488 = scmp.le.s32.totalorder 1, %s26
      %p489 = scmp.lt.s32.totalorder %s26, 3
      %p490 = pnand %p488, %p489
      %p491 = pneg %p490
      // Predicated region
      $region73: #{tpu_custom_call.1} parent=5 // pred_check
        _
      $region74: #{tpu_custom_call.1} parent=5 // pred_check_branch
        %493 = sbr.rel (%p490) target = $region76
      $region75: #{tpu_custom_call.1} parent=5 // pred_region
        %s494 = ssub.s32 %s26, 1
        // Predicated region
        $region77: #{tpu_custom_call.1} parent=75 // pred_check
          %p495 = pneg %p176
        $region78: #{tpu_custom_call.1} parent=75 // pred_check_branch
          %497 = sbr.rel (%p495) target = $region80
        $region79: #{tpu_custom_call.1} parent=75 // pred_region
          %499 = dma.done [#allocation6], 256
        $region80: #{tpu_custom_call.1} parent=75 // pred_fallthru
          _
        // Predicated region
        $region81: #{tpu_custom_call.1} parent=75 // pred_check
          %p500 = pneg %p197
        $region82: #{tpu_custom_call.1} parent=75 // pred_check_branch
          %502 = sbr.rel (%p500) target = $region84
        $region83: #{tpu_custom_call.1} parent=75 // pred_region
          %504 = dma.done [#allocation9], 256
        $region84: #{tpu_custom_call.1} parent=75 // pred_fallthru
          _
        // Predicated region
        $region85: #{tpu_custom_call.1} parent=75 // pred_check
          %p505 = pneg %p218
        $region86: #{tpu_custom_call.1} parent=75 // pred_check_branch
          %507 = sbr.rel (%p505) target = $region88
        $region87: #{tpu_custom_call.1} parent=75 // pred_region
          %509 = dma.done [#allocation9], 256
        $region88: #{tpu_custom_call.1} parent=75 // pred_fallthru
          _
        // Predicated region
        $region89: #{tpu_custom_call.1} parent=75 // pred_check
          %p510 = pneg %p281
        $region90: #{tpu_custom_call.1} parent=75 // pred_check_branch
          %512 = sbr.rel (%p510) target = $region92
        $region91: #{tpu_custom_call.1} parent=75 // pred_region
          %514 = dma.done [#allocation12], 256
        $region92: #{tpu_custom_call.1} parent=75 // pred_fallthru
          _
        %p515 = scmp.lt.s32.totalorder %s35, 1
        %s516 = scalar_select %p515, %s35, 1
        %p517 = scmp.lt.s32.totalorder %s36, 0
        %s518 = scalar_select %p517, %s36, 0
        %s519 = sadd.s32 %s518, %s516
        %s520 = smul.addr %s519, 8
        %s521 = scalar_lea.vmem %s0, %s520
        %p522 = pneg %p66
        %p523 = pneg %p63
        %p524 = scmp.lt.s32.totalorder %s35, 1
        %s525 = scalar_select %p524, %s35, 1
        %s526 = smul.addr %s525, 8
        %s527 = scalar_lea.vmem %s1, %s526
        %p528 = pneg %p92
        %p529 = pneg %p89
        %p530 = pneg %p113
        %p531 = pneg %p110
        %p532 = pneg %p134
        %p533 = pneg %p131
        %p534 = pneg %p155
        %p535 = pneg %p152
        %p536 = pneg %p176
        %p537 = pneg %p173
        %p538 = pneg %p197
        %p539 = pneg %p194
        %p540 = pneg %p218
        %p541 = pneg %p215
        %p542 = pneg %p239
        %p543 = pneg %p236
        %p544 = pneg %p260
        %p545 = pneg %p257
        %p546 = pneg %p281
        %p547 = pneg %p278
        %p548 = pneg %p302
        %p549 = pneg %p299
        %p550 = pneg %p323
        %p551 = pneg %p320
        %p552 = pneg %p344
        %p553 = pneg %p341
        %p554 = pneg %p372
        %p555 = pneg %p369
        %s556 = sand.u32 %s359, 1
        %s557 = scalar_lea.sflag [#allocation7], %s556
        %s558 = sand.u32 %s359, 1
        %s559 = smul.addr %s558, 8
        %s560 = scalar_lea.vmem [#allocation13], %s559
        %p561 = scmp.lt.s32.totalorder %s35, 1
        %s562 = scalar_select %p561, %s35, 1
        %p563 = scmp.lt.s32.totalorder %s36, 0
        %s564 = scalar_select %p563, %s36, 0
        %s565 = sadd.s32 %s564, %s562
        %s566 = smul.addr %s565, 8
        %s567 = scalar_lea.vmem %s0, %s566
        %p568 = scmp.lt.s32.totalorder %s35, 1
        %s569 = scalar_select %p568, %s35, 1
        %s570 = smul.addr %s569, 8
        %s571 = scalar_lea.vmem %s1, %s570
        %v573 = vld [vmem:[%s2] sm:$0x1]
        %v574 = vld [vmem:[%s3] sm:$0x1]
        %p575 = scmp.eq.s32.totalorder %s36, 0
        // Predicated region
        $region93: #{tpu_custom_call.1} parent=75 // pred_check
          %p576 = pneg %p575
        $region94: #{tpu_custom_call.1} parent=75 // pred_check_branch
          %578 = sbr.rel (%p576) target = $region96
        $region95: #{tpu_custom_call.1} parent=75 // pred_region
          %v579 = vld [vmem:[%s571] sm:$0xff]
          %vm580 = vcmask 261120
          %v581 = vsel %vm580, %v579, 0.0
          %582 = vadd.xlane.f32.xlu0 %v581
          %v583 = vpop.xlane.xlu0 %582
          %v584 = vrcp.pop 32.0
          %v585 = vmul.f32 32.0, %v584
          %v586 = vsub.f32 1.0, %v585
          %v587 = vmul.f32 %v584, %v586
          %v588 = vadd.f32 %v584, %v587
          %vm589 = vweird.f32 %v584
          %v590 = vsel %vm589, %v584, %v588
          %v591 = vmul.f32 %v583, %v590
          %v592 = vsub.f32 %v579, %v591
          %v593 = vmul.f32 %v592, %v592
          %v594 = vsel %vm580, %v593, 0.0
          %595 = vadd.xlane.f32.xlu0 %v594
          %v596 = vpop.xlane.xlu0 %595
          %v597 = vmul.f32 %v596, %v590
          %v598 = vadd.f32 %v597, 1e-05
          %v599 = vrsqrt.pop %v598
          %v600 = vmul.f32 %v599, %v598
          %v601 = vmul.f32 %v600, %v599
          %v602 = vmul.f32 0.5, %v601
          %v603 = vsub.f32 1.5, %v602
          %v604 = vmul.f32 %v599, %v603
          %vm605 = vweird.f32 %v598
          %vm606 = vweird.f32 %v599
          %vm607 = vmor %vm605, %vm606
          %v608 = vsel %vm607, %v599, %v604
          %v609 = vmul.f32 %v592, %v608
          %v611 = vperm.slane %v573, 0
          %v613 = vmul.f32 %v609, %v611
          %v615 = vperm.slane %v574, 0
          %v617 = vadd.f32 %v613, %v615
          %v618 = vpack.c.bf16 %v617, %v617
          %v619 = vld [vmem:[#allocation5] sm:$0xf]
          %v620 = vld [vmem:[#allocation5 + $0x4] sm:$0xf]
          %v621 = vld [vmem:[#allocation5 + $0x8] sm:$0xf]
          %v622 = vld [vmem:[#allocation5 + $0xc] sm:$0xf]
          %v627 = vunpack.c.l.b16 %v619
          %v628 = vunpack.c.l.b16 %v620
          %v629 = vunpack.c.l.b16 %v621
          %v630 = vunpack.c.l.b16 %v622
          %v631 = vpack.c.b16 %v628, %v627
          %v632 = vpack.c.b16 %v630, %v629
          %v636 = vsel %vm580, %v618, 0
          %638 = vmatpush.bf16.msra.mxu0 0
          %639 = vmatpush.bf16.msra.mxu0 0
          %640 = vmatpush.bf16.msra.mxu0 0
          %641 = vmatpush.bf16.msra.mxu0 0
          %642 = vmatpush.bf16.msra.mxu0 0
          %643 = vmatpush.bf16.msra.mxu0 0
          %644 = vmatpush.bf16.msra.mxu0 %v632
          %645 = vmatpush.bf16.msra.mxu0 %v631
          %646 = vmatmul.bf16.gmra.mxu0 %v636
          %v647 = vpop.f32.mrf.mxu0
          %v648 = vadd.f32 0.0, %v647
          %v649 = vpop.f32.mrf.mxu0
          %650 = vdwg.mxu0
          %v651 = vpack.c.bf16 %v648, %v648
          %vm652 = vcmask 257024
          %653 = vst.msk [vmem:[#allocation2] sm:$0xf] %vm652, %v651
          %v654 = vld [vmem:[#allocation8] sm:$0xf]
          %v655 = vld [vmem:[#allocation8 + $0x4] sm:$0xf]
          %v656 = vld [vmem:[#allocation8 + $0x8] sm:$0xf]
          %v657 = vld [vmem:[#allocation8 + $0xc] sm:$0xf]
          %v662 = vunpack.c.l.b16 %v654
          %v663 = vunpack.c.l.b16 %v655
          %v664 = vunpack.c.l.b16 %v656
          %v665 = vunpack.c.l.b16 %v657
          %v666 = vpack.c.b16 %v663, %v662
          %v667 = vpack.c.b16 %v665, %v664
          %670 = vmatpush.bf16.msra.mxu0 0
          %671 = vmatpush.bf16.msra.mxu0 0
          %672 = vmatpush.bf16.msra.mxu0 0
          %673 = vmatpush.bf16.msra.mxu0 0
          %674 = vmatpush.bf16.msra.mxu0 0
          %675 = vmatpush.bf16.msra.mxu0 0
          %676 = vmatpush.bf16.msra.mxu0 %v667
          %677 = vmatpush.bf16.msra.mxu0 %v666
          %678 = vmatmul.bf16.gmra.mxu0 %v636
          %v679 = vpop.f32.mrf.mxu0
          %v680 = vadd.f32 0.0, %v679
          %v681 = vpop.f32.mrf.mxu0
          %682 = vdwg.mxu0
          %v683 = vpack.c.bf16 %v680, %v680
          %684 = vst.msk [vmem:[#allocation3] sm:$0xf] %vm652, %v683
        $region96: #{tpu_custom_call.1} parent=75 // pred_fallthru
          _
        %v685 = vld [vmem:[%s567] sm:$0xff]
        %vm686 = vcmask 261120
        %v687 = vsel %vm686, %v685, 0.0
        %688 = vadd.xlane.f32.xlu0 %v687
        %v689 = vpop.xlane.xlu0 %688
        %v690 = vrcp.pop 32.0
        %v691 = vmul.f32 32.0, %v690
        %v692 = vsub.f32 1.0, %v691
        %v693 = vmul.f32 %v690, %v692
        %v694 = vadd.f32 %v690, %v693
        %vm695 = vweird.f32 %v690
        %v696 = vsel %vm695, %v690, %v694
        %v697 = vmul.f32 %v689, %v696
        %v698 = vsub.f32 %v685, %v697
        %v699 = vmul.f32 %v698, %v698
        %v700 = vsel %vm686, %v699, 0.0
        %701 = vadd.xlane.f32.xlu0 %v700
        %v702 = vpop.xlane.xlu0 %701
        %v703 = vmul.f32 %v702, %v696
        %v704 = vadd.f32 %v703, 1e-05
        %v705 = vrsqrt.pop %v704
        %v706 = vmul.f32 %v705, %v704
        %v707 = vmul.f32 %v706, %v705
        %v708 = vmul.f32 0.5, %v707
        %v709 = vsub.f32 1.5, %v708
        %v710 = vmul.f32 %v705, %v709
        %vm711 = vweird.f32 %v704
        %vm712 = vweird.f32 %v705
        %vm713 = vmor %vm711, %vm712
        %v714 = vsel %vm713, %v705, %v710
        %v715 = vmul.f32 %v698, %v714
        %v717 = vperm.slane %v573, 0
        %v719 = vmul.f32 %v715, %v717
        %v721 = vperm.slane %v574, 0
        %v723 = vadd.f32 %v719, %v721
        %v724 = vpack.c.bf16 %v723, %v723
        %v725 = vld [vmem:[%s4] sm:$0xf]
        %v726 = vld [vmem:[%s4 + $0x4] sm:$0xf]
        %v727 = vld [vmem:[%s4 + $0x8] sm:$0xf]
        %v728 = vld [vmem:[%s4 + $0xc] sm:$0xf]
        %v733 = vunpack.c.l.b16 %v725
        %v734 = vunpack.c.l.b16 %v726
        %v735 = vunpack.c.l.b16 %v727
        %v736 = vunpack.c.l.b16 %v728
        %v737 = vpack.c.b16 %v734, %v733
        %v738 = vpack.c.b16 %v736, %v735
        %v742 = vsel %vm686, %v724, 0
        %744 = vmatpush.bf16.msra.mxu0 0
        %745 = vmatpush.bf16.msra.mxu0 0
        %746 = vmatpush.bf16.msra.mxu0 0
        %747 = vmatpush.bf16.msra.mxu0 0
        %748 = vmatpush.bf16.msra.mxu0 0
        %749 = vmatpush.bf16.msra.mxu0 0
        %750 = vmatpush.bf16.msra.mxu0 %v738
        %751 = vmatpush.bf16.msra.mxu0 %v737
        %752 = vmatmul.bf16.gmra.mxu0 %v742
        %v753 = vpop.f32.mrf.mxu0
        %v754 = vadd.f32 0.0, %v753
        %v755 = vpop.f32.mrf.mxu0
        %756 = vdwg.mxu0
        %v757 = vpack.c.bf16 %v754, %v754
        %v758 = vld [vmem:[#allocation2] sm:$0xf]
        %v759 = vld [vmem:[#allocation3] sm:$0xf]
        %vm760 = vcmask 64512
        %v762 = vsel %vm760, %v757, 0
        %v765 = vsel %vm760, %v758, 0
        %767 = vmatpush.bf16.xpose.msra.mxu0 0
        %768 = vmatpush.bf16.xpose.msra.mxu0 0
        %769 = vmatpush.bf16.xpose.msra.mxu0 0
        %770 = vmatpush.bf16.xpose.msra.mxu0 0
        %771 = vmatpush.bf16.xpose.msra.mxu0 0
        %772 = vmatpush.bf16.xpose.msra.mxu0 0
        %773 = vmatpush.bf16.xpose.msra.mxu0 0
        %774 = vmatpush.bf16.xpose.msra.mxu0 %v765
        %775 = vmatmul.bf16.gmra.mxu0 %v762
        %v776 = vpop.f32.mrf.mxu0
        %v777 = vadd.f32 0.0, %v776
        %v778 = vpop.f32.mrf.mxu0
        %779 = vdwg.mxu0
        %v780 = vsel %vm760, %v777, -inf
        %781 = vmax.xlane.f32.xlu0 %v780
        %v782 = vpop.xlane.xlu0 %781
        %v783 = vsub.f32 %v777, %v782
        %v784 = vmul.f32 %v783, 1.442695
        %v785 = vpow.pop %v784
        %v786 = vsel %vm760, %v785, 0.0
        %787 = vadd.xlane.f32.xlu0 %v786
        %v788 = vpop.xlane.xlu0 %787
        %v789 = vrcp.pop %v788
        %v790 = vmul.f32 %v788, %v789
        %v791 = vsub.f32 1.0, %v790
        %v792 = vmul.f32 %v789, %v791
        %v793 = vadd.f32 %v789, %v792
        %vm794 = vweird.f32 %v788
        %vm795 = vweird.f32 %v789
        %vm796 = vmor %vm794, %vm795
        %v797 = vsel %vm796, %v789, %v793
        %v798 = vand.u32 2147483647, %v788
        %vm799 = vcmp.eq.f32.partialorder %v798, 8.507059e+37
        %v800 = vand.u32 %v788, 2147483648
        %v801 = vor.u32 1.1754944e-38, %v800
        %v802 = vsel %vm799, %v801, %v797
        %v803 = vmul.f32 %v785, %v802
        %v804 = vpack.c.bf16 %v803, %v803
        %v806 = vsel %vm760, %v804, 0
        %vm808 = vcmask 1043456
        %v810 = vsel %vm808, %v759, 0
        %812 = vmatpush.bf16.msra.mxu0 0
        %813 = vmatpush.bf16.msra.mxu0 0
        %814 = vmatpush.bf16.msra.mxu0 0
        %815 = vmatpush.bf16.msra.mxu0 0
        %816 = vmatpush.bf16.msra.mxu0 0
        %817 = vmatpush.bf16.msra.mxu0 0
        %818 = vmatpush.bf16.msra.mxu0 0
        %819 = vmatpush.bf16.msra.mxu0 %v810
        %820 = vmatmul.bf16.gmra.mxu0 %v806
        %v821 = vpop.f32.mrf.mxu0
        %v822 = vadd.f32 0.0, %v821
        %v823 = vpop.f32.mrf.mxu0
        %824 = vdwg.mxu0
        %v825 = vpack.c.bf16 %v822, %v822
        %vm826 = vcmask 60416
        %827 = vst.msk [vmem:[#allocation4] sm:$0xf] %vm826, %v825
        %v829 = vunpack.c.l.b16 %v757
        %v830 = vpack.c.b16 %v829, %v829
        %831 = vrot.lane.b32.xlu0 %v830, 120
        %v832 = vpop.permute.xlu0 %831
        %v834 = vunpack.c.l.b16 %v758
        %v835 = vpack.c.b16 %v834, %v834
        %836 = vrot.lane.b32.xlu0 %v835, 120
        %v837 = vpop.permute.xlu0 %836
        %v839 = vsel %vm760, %v832, 0
        %v842 = vsel %vm760, %v837, 0
        %844 = vmatpush.bf16.xpose.msra.mxu0 0
        %845 = vmatpush.bf16.xpose.msra.mxu0 0
        %846 = vmatpush.bf16.xpose.msra.mxu0 0
        %847 = vmatpush.bf16.xpose.msra.mxu0 0
        %848 = vmatpush.bf16.xpose.msra.mxu0 0
        %849 = vmatpush.bf16.xpose.msra.mxu0 0
        %850 = vmatpush.bf16.xpose.msra.mxu0 0
        %851 = vmatpush.bf16.xpose.msra.mxu0 %v842
        %852 = vmatmul.bf16.gmra.mxu0 %v839
        %v853 = vpop.f32.mrf.mxu0
        %v854 = vadd.f32 0.0, %v853
        %v855 = vpop.f32.mrf.mxu0
        %856 = vdwg.mxu0
        %v857 = vsel %vm760, %v854, -inf
        %858 = vmax.xlane.f32.xlu0 %v857
        %v859 = vpop.xlane.xlu0 %858
        %v860 = vsub.f32 %v854, %v859
        %v861 = vmul.f32 %v860, 1.442695
        %v862 = vpow.pop %v861
        %v863 = vsel %vm760, %v862, 0.0
        %864 = vadd.xlane.f32.xlu0 %v863
        %v865 = vpop.xlane.xlu0 %864
        %v866 = vrcp.pop %v865
        %v867 = vmul.f32 %v865, %v866
        %v868 = vsub.f32 1.0, %v867
        %v869 = vmul.f32 %v866, %v868
        %v870 = vadd.f32 %v866, %v869
        %vm871 = vweird.f32 %v865
        %vm872 = vweird.f32 %v866
        %vm873 = vmor %vm871, %vm872
        %v874 = vsel %vm873, %v866, %v870
        %v875 = vand.u32 2147483647, %v865
        %vm876 = vcmp.eq.f32.partialorder %v875, 8.507059e+37
        %v877 = vand.u32 %v865, 2147483648
        %v878 = vor.u32 1.1754944e-38, %v877
        %v879 = vsel %vm876, %v878, %v874
        %v880 = vmul.f32 %v862, %v879
        %v881 = vpack.c.bf16 %v880, %v880
        %v883 = vunpack.c.l.b16 %v759
        %v884 = vpack.c.b16 %v883, %v883
        %885 = vrot.lane.b32.xlu0 %v884, 120
        %v886 = vpop.permute.xlu0 %885
        %v888 = vsel %vm760, %v881, 0
        %v891 = vsel %vm808, %v886, 0
        %893 = vmatpush.bf16.msra.mxu0 0
        %894 = vmatpush.bf16.msra.mxu0 0
        %895 = vmatpush.bf16.msra.mxu0 0
        %896 = vmatpush.bf16.msra.mxu0 0
        %897 = vmatpush.bf16.msra.mxu0 0
        %898 = vmatpush.bf16.msra.mxu0 0
        %899 = vmatpush.bf16.msra.mxu0 0
        %900 = vmatpush.bf16.msra.mxu0 %v891
        %901 = vmatmul.bf16.gmra.mxu0 %v888
        %v902 = vpop.f32.mrf.mxu0
        %v903 = vadd.f32 0.0, %v902
        %v904 = vpop.f32.mrf.mxu0
        %905 = vdwg.mxu0
        %v906 = vpack.c.bf16 %v903, %v903
        %908 = vrot.lane.b32.xlu0 %v906, 8
        %v909 = vpop.permute.xlu0 %908
        %vm911 = vcmask 126016
        %912 = vst.msk [vmem:[#allocation4] sm:$0xf] %vm911, %v909
        %913 = vrot.lane.b32.xlu0 %v830, 112
        %v914 = vpop.permute.xlu0 %913
        %915 = vrot.lane.b32.xlu0 %v835, 112
        %v916 = vpop.permute.xlu0 %915
        %v918 = vsel %vm760, %v914, 0
        %v921 = vsel %vm760, %v916, 0
        %923 = vmatpush.bf16.xpose.msra.mxu0 0
        %924 = vmatpush.bf16.xpose.msra.mxu0 0
        %925 = vmatpush.bf16.xpose.msra.mxu0 0
        %926 = vmatpush.bf16.xpose.msra.mxu0 0
        %927 = vmatpush.bf16.xpose.msra.mxu0 0
        %928 = vmatpush.bf16.xpose.msra.mxu0 0
        %929 = vmatpush.bf16.xpose.msra.mxu0 0
        %930 = vmatpush.bf16.xpose.msra.mxu0 %v921
        %931 = vmatmul.bf16.gmra.mxu0 %v918
        %v932 = vpop.f32.mrf.mxu0
        %v933 = vadd.f32 0.0, %v932
        %v934 = vpop.f32.mrf.mxu0
        %935 = vdwg.mxu0
        %v936 = vsel %vm760, %v933, -inf
        %937 = vmax.xlane.f32.xlu0 %v936
        %v938 = vpop.xlane.xlu0 %937
        %v939 = vsub.f32 %v933, %v938
        %v940 = vmul.f32 %v939, 1.442695
        %v941 = vpow.pop %v940
        %v942 = vsel %vm760, %v941, 0.0
        %943 = vadd.xlane.f32.xlu0 %v942
        %v944 = vpop.xlane.xlu0 %943
        %v945 = vrcp.pop %v944
        %v946 = vmul.f32 %v944, %v945
        %v947 = vsub.f32 1.0, %v946
        %v948 = vmul.f32 %v945, %v947
        %v949 = vadd.f32 %v945, %v948
        %vm950 = vweird.f32 %v944
        %vm951 = vweird.f32 %v945
        %vm952 = vmor %vm950, %vm951
        %v953 = vsel %vm952, %v945, %v949
        %v954 = vand.u32 2147483647, %v944
        %vm955 = vcmp.eq.f32.partialorder %v954, 8.507059e+37
        %v956 = vand.u32 %v944, 2147483648
        %v957 = vor.u32 1.1754944e-38, %v956
        %v958 = vsel %vm955, %v957, %v953
        %v959 = vmul.f32 %v941, %v958
        %v960 = vpack.c.bf16 %v959, %v959
        %961 = vrot.lane.b32.xlu0 %v884, 112
        %v962 = vpop.permute.xlu0 %961
        %v964 = vsel %vm760, %v960, 0
        %v967 = vsel %vm808, %v962, 0
        %969 = vmatpush.bf16.msra.mxu0 0
        %970 = vmatpush.bf16.msra.mxu0 0
        %971 = vmatpush.bf16.msra.mxu0 0
        %972 = vmatpush.bf16.msra.mxu0 0
        %973 = vmatpush.bf16.msra.mxu0 0
        %974 = vmatpush.bf16.msra.mxu0 0
        %975 = vmatpush.bf16.msra.mxu0 0
        %976 = vmatpush.bf16.msra.mxu0 %v967
        %977 = vmatmul.bf16.gmra.mxu0 %v964
        %v978 = vpop.f32.mrf.mxu0
        %v979 = vadd.f32 0.0, %v978
        %v980 = vpop.f32.mrf.mxu0
        %981 = vdwg.mxu0
        %v982 = vpack.c.bf16 %v979, %v979
        %984 = vrot.lane.b32.xlu0 %v982, 16
        %v985 = vpop.permute.xlu0 %984
        %vm987 = vcmask 191616
        %988 = vst.msk [vmem:[#allocation4] sm:$0xf] %vm987, %v985
        %989 = vrot.lane.b32.xlu0 %v830, 104
        %v990 = vpop.permute.xlu0 %989
        %991 = vrot.lane.b32.xlu0 %v835, 104
        %v992 = vpop.permute.xlu0 %991
        %v994 = vsel %vm760, %v990, 0
        %v997 = vsel %vm760, %v992, 0
        %999 = vmatpush.bf16.xpose.msra.mxu0 0
        %1000 = vmatpush.bf16.xpose.msra.mxu0 0
        %1001 = vmatpush.bf16.xpose.msra.mxu0 0
        %1002 = vmatpush.bf16.xpose.msra.mxu0 0
        %1003 = vmatpush.bf16.xpose.msra.mxu0 0
        %1004 = vmatpush.bf16.xpose.msra.mxu0 0
        %1005 = vmatpush.bf16.xpose.msra.mxu0 0
        %1006 = vmatpush.bf16.xpose.msra.mxu0 %v997
        %1007 = vmatmul.bf16.gmra.mxu0 %v994
        %v1008 = vpop.f32.mrf.mxu0
        %v1009 = vadd.f32 0.0, %v1008
        %v1010 = vpop.f32.mrf.mxu0
        %1011 = vdwg.mxu0
        %v1012 = vsel %vm760, %v1009, -inf
        %1013 = vmax.xlane.f32.xlu0 %v1012
        %v1014 = vpop.xlane.xlu0 %1013
        %v1015 = vsub.f32 %v1009, %v1014
        %v1016 = vmul.f32 %v1015, 1.442695
        %v1017 = vpow.pop %v1016
        %v1018 = vsel %vm760, %v1017, 0.0
        %1019 = vadd.xlane.f32.xlu0 %v1018
        %v1020 = vpop.xlane.xlu0 %1019
        %v1021 = vrcp.pop %v1020
        %v1022 = vmul.f32 %v1020, %v1021
        %v1023 = vsub.f32 1.0, %v1022
        %v1024 = vmul.f32 %v1021, %v1023
        %v1025 = vadd.f32 %v1021, %v1024
        %vm1026 = vweird.f32 %v1020
        %vm1027 = vweird.f32 %v1021
        %vm1028 = vmor %vm1026, %vm1027
        %v1029 = vsel %vm1028, %v1021, %v1025
        %v1030 = vand.u32 2147483647, %v1020
        %vm1031 = vcmp.eq.f32.partialorder %v1030, 8.507059e+37
        %v1032 = vand.u32 %v1020, 2147483648
        %v1033 = vor.u32 1.1754944e-38, %v1032
        %v1034 = vsel %vm1031, %v1033, %v1029
        %v1035 = vmul.f32 %v1017, %v1034
        %v1036 = vpack.c.bf16 %v1035, %v1035
        %1037 = vrot.lane.b32.xlu0 %v884, 104
        %v1038 = vpop.permute.xlu0 %1037
        %v1040 = vsel %vm760, %v1036, 0
        %v1043 = vsel %vm808, %v1038, 0
        %1045 = vmatpush.bf16.msra.mxu0 0
        %1046 = vmatpush.bf16.msra.mxu0 0
        %1047 = vmatpush.bf16.msra.mxu0 0
        %1048 = vmatpush.bf16.msra.mxu0 0
        %1049 = vmatpush.bf16.msra.mxu0 0
        %1050 = vmatpush.bf16.msra.mxu0 0
        %1051 = vmatpush.bf16.msra.mxu0 0
        %1052 = vmatpush.bf16.msra.mxu0 %v1043
        %1053 = vmatmul.bf16.gmra.mxu0 %v1040
        %v1054 = vpop.f32.mrf.mxu0
        %v1055 = vadd.f32 0.0, %v1054
        %v1056 = vpop.f32.mrf.mxu0
        %1057 = vdwg.mxu0
        %v1058 = vpack.c.bf16 %v1055, %v1055
        %1060 = vrot.lane.b32.xlu0 %v1058, 24
        %v1061 = vpop.permute.xlu0 %1060
        %vm1063 = vcmask 257216
        %1064 = vst.msk [vmem:[#allocation4] sm:$0xf] %vm1063, %v1061
        %v1065 = vld [vmem:[#allocation4] sm:$0xf]
        %v1066 = vld [vmem:[#allocation10] sm:$0xf]
        %v1067 = vld [vmem:[#allocation10 + $0x4] sm:$0xf]
        %v1068 = vld [vmem:[#allocation10 + $0x8] sm:$0xf]
        %v1069 = vld [vmem:[#allocation10 + $0xc] sm:$0xf]
        %v1074 = vunpack.c.l.b16 %v1066
        %v1075 = vunpack.c.l.b16 %v1067
        %v1076 = vunpack.c.l.b16 %v1068
        %v1077 = vunpack.c.l.b16 %v1069
        %v1078 = vpack.c.b16 %v1075, %v1074
        %v1079 = vpack.c.b16 %v1077, %v1076
        %v1083 = vsel %vm686, %v1065, 0
        %1085 = vmatpush.bf16.msra.mxu0 0
        %1086 = vmatpush.bf16.msra.mxu0 0
        %1087 = vmatpush.bf16.msra.mxu0 0
        %1088 = vmatpush.bf16.msra.mxu0 0
        %1089 = vmatpush.bf16.msra.mxu0 0
        %1090 = vmatpush.bf16.msra.mxu0 0
        %1091 = vmatpush.bf16.msra.mxu0 %v1079
        %1092 = vmatpush.bf16.msra.mxu0 %v1078
        %1093 = vmatmul.bf16.gmra.mxu0 %v1083
        %v1094 = vpop.f32.mrf.mxu0
        %v1095 = vadd.f32 0.0, %v1094
        %v1096 = vpop.f32.mrf.mxu0
        %1097 = vdwg.mxu0
        %v1098 = vadd.f32 %v685, %v1095
        %v1099 = vld [vmem:[%s8] sm:$0x1]
        %v1100 = vld [vmem:[%s9] sm:$0x1]
        %v1101 = vsel %vm686, %v1098, 0.0
        %1102 = vadd.xlane.f32.xlu0 %v1101
        %v1103 = vpop.xlane.xlu0 %1102
        %v1104 = vmul.f32 %v1103, %v696
        %v1105 = vsub.f32 %v1098, %v1104
        %v1106 = vmul.f32 %v1105, %v1105
        %v1107 = vsel %vm686, %v1106, 0.0
        %1108 = vadd.xlane.f32.xlu0 %v1107
        %v1109 = vpop.xlane.xlu0 %1108
        %v1110 = vmul.f32 %v1109, %v696
        %v1111 = vadd.f32 %v1110, 1e-05
        %v1112 = vrsqrt.pop %v1111
        %v1113 = vmul.f32 %v1112, %v1111
        %v1114 = vmul.f32 %v1113, %v1112
        %v1115 = vmul.f32 0.5, %v1114
        %v1116 = vsub.f32 1.5, %v1115
        %v1117 = vmul.f32 %v1112, %v1116
        %vm1118 = vweird.f32 %v1111
        %vm1119 = vweird.f32 %v1112
        %vm1120 = vmor %vm1118, %vm1119
        %v1121 = vsel %vm1120, %v1112, %v1117
        %v1122 = vmul.f32 %v1105, %v1121
        %v1124 = vperm.slane %v1099, 0
        %v1126 = vmul.f32 %v1122, %v1124
        %v1128 = vperm.slane %v1100, 0
        %v1130 = vadd.f32 %v1126, %v1128
        %v1131 = vpack.c.bf16 %v1130, %v1130
        %v1132 = vld [vmem:[#allocation11] sm:$0xf]
        %v1133 = vld [vmem:[#allocation11 + $0x4] sm:$0xf]
        %v1134 = vld [vmem:[#allocation11 + $0x8] sm:$0xf]
        %v1135 = vld [vmem:[#allocation11 + $0xc] sm:$0xf]
        %v1136 = vld [vmem:[%s11] sm:$0x1]
        %v1138 = vperm.slane %v1136, 0
        %v1144 = vunpack.c.l.b16 %v1132
        %v1145 = vunpack.c.l.b16 %v1133
        %v1146 = vunpack.c.l.b16 %v1134
        %v1147 = vunpack.c.l.b16 %v1135
        %v1148 = vpack.c.b16 %v1145, %v1144
        %v1149 = vpack.c.b16 %v1147, %v1146
        %v1153 = vsel %vm686, %v1131, 0
        %1155 = vmatpush.bf16.msra.mxu0 0
        %1156 = vmatpush.bf16.msra.mxu0 0
        %1157 = vmatpush.bf16.msra.mxu0 0
        %1158 = vmatpush.bf16.msra.mxu0 0
        %1159 = vmatpush.bf16.msra.mxu0 0
        %1160 = vmatpush.bf16.msra.mxu0 0
        %1161 = vmatpush.bf16.msra.mxu0 %v1149
        %1162 = vmatpush.bf16.msra.mxu0 %v1148
        %1163 = vmatmul.bf16.gmra.mxu0 %v1153
        %v1164 = vpop.f32.mrf.mxu0
        %v1165 = vadd.f32 %v1138, %v1164
        %v1166 = vpop.f32.mrf.mxu0
        %1167 = vdwg.mxu0
        %v1168 = vmax.f32 %v1165, 0.0
        %v1169 = vpack.c.bf16 %v1168, %v1168
        %v1170 = vld [vmem:[%s12] sm:$0xf]
        %v1171 = vld [vmem:[%s12 + $0x4] sm:$0xf]
        %v1172 = vld [vmem:[%s12 + $0x8] sm:$0xf]
        %v1173 = vld [vmem:[%s12 + $0xc] sm:$0xf]
        %v1174 = vld [vmem:[%s12 + $0x10] sm:$0xf]
        %v1175 = vld [vmem:[%s12 + $0x14] sm:$0xf]
        %v1176 = vld [vmem:[%s12 + $0x18] sm:$0xf]
        %v1177 = vld [vmem:[%s12 + $0x1c] sm:$0xf]
        %v1178 = vld [vmem:[%s13] sm:$0x1]
        %v1180 = vperm.slane %v1178, 0
        %v1190 = vunpack.c.l.b16 %v1170
        %v1191 = vunpack.c.l.b16 %v1171
        %v1192 = vunpack.c.l.b16 %v1172
        %v1193 = vunpack.c.l.b16 %v1173
        %v1194 = vunpack.c.l.b16 %v1174
        %v1195 = vunpack.c.l.b16 %v1175
        %v1196 = vunpack.c.l.b16 %v1176
        %v1197 = vunpack.c.l.b16 %v1177
        %v1198 = vpack.c.b16 %v1191, %v1190
        %v1199 = vpack.c.b16 %v1193, %v1192
        %v1200 = vpack.c.b16 %v1195, %v1194
        %v1201 = vpack.c.b16 %v1197, %v1196
        %vm1206 = vcmask 523264
        %v1208 = vsel %vm1206, %v1169, 0
        %1210 = vmatpush.bf16.msra.mxu0 0
        %1211 = vmatpush.bf16.msra.mxu0 0
        %1212 = vmatpush.bf16.msra.mxu0 0
        %1213 = vmatpush.bf16.msra.mxu0 0
        %1214 = vmatpush.bf16.msra.mxu0 %v1201
        %1215 = vmatpush.bf16.msra.mxu0 %v1200
        %1216 = vmatpush.bf16.msra.mxu0 %v1199
        %1217 = vmatpush.bf16.msra.mxu0 %v1198
        %1218 = vmatmul.bf16.gmra.mxu0 %v1208
        %v1219 = vpop.f32.mrf.mxu0
        %v1220 = vadd.f32 %v1180, %v1219
        %v1221 = vpop.f32.mrf.mxu0
        %1222 = vdwg.mxu0
        %v1223 = vadd.f32 %v1098, %v1220
        %1224 = vst.msk [vmem:[%s560] sm:$0xff] %vm686, %v1223
        %s1225 = sand.u32 %s359, 1
        %s1226 = scalar_lea.sflag [#allocation7], %s1225
        %s1227 = sand.u32 %s359, 1
        %s1228 = smul.addr %s1227, 8
        %s1229 = scalar_lea.vmem [#allocation13], %s1228
        // Predicated region
        $region97: #{tpu_custom_call.1} parent=75 // pred_check
          %p1230 = pneg %p369
        $region98: #{tpu_custom_call.1} parent=75 // pred_check_branch
          %1232 = sbr.rel (%p1230) target = $region100
        $region99: #{tpu_custom_call.1} parent=75 // pred_region
          %1234 = vsyncadd %s1226, 0
          %s1235 = sadd.s32 %s36, %s35
          %s1236 = smul.addr %s1235, 8
          %s1237 = scalar_lea.hbm %s14, %s1236
          %s1239 = sshll.u32 %s1229, 4
          %s1240 = int_to_ptr.vmem [resolvable:$true] %s1239
          %s1241 = sshll.u32 %s1237, 4
          %s1242 = int_to_ptr.hbm [resolvable:$true] %s1241
          %1244 = dma.vmem_to_hbm [thread:$0]  %s1240, 128, %s1242, %s1226
        $region100: #{tpu_custom_call.1} parent=75 // pred_fallthru
          _
      $region76: #{tpu_custom_call.1} parent=5 // pred_fallthru
        _
      %p1245 = scmp.le.s32.totalorder 2, %s26
      // Predicated region
      $region101: #{tpu_custom_call.1} parent=5 // pred_check
        %p1246 = pneg %p1245
      $region102: #{tpu_custom_call.1} parent=5 // pred_check_branch
        %1248 = sbr.rel (%p1246) target = $region104
      $region103: #{tpu_custom_call.1} parent=5 // pred_region
        %s1249 = ssub.s32 %s26, 2
        // Predicated region
        $region105: #{tpu_custom_call.1} parent=103 // pred_check
          %p1250 = pneg %p375
        $region106: #{tpu_custom_call.1} parent=103 // pred_check_branch
          %1252 = sbr.rel (%p1250) target = $region108
        $region107: #{tpu_custom_call.1} parent=103 // pred_region
          %s1253 = sand.u32 %s360, 1
          %s1254 = scalar_lea.sflag [#allocation7], %s1253
          %s1255 = sand.u32 %s360, 1
          %s1256 = smul.addr %s1255, 8
          %s1257 = scalar_lea.vmem [#allocation13], %s1256
          %1259 = dma.done %s1254, 128
        $region108: #{tpu_custom_call.1} parent=103 // pred_fallthru
          _
      $region104: #{tpu_custom_call.1} parent=5 // pred_fallthru
        _
    $region6: #{tpu_custom_call.1} parent=1 // loop_footer
      %s30 = sadd.s32 1, %s26
    $region7: #{tpu_custom_call.1} parent=1 // loop_footer_branch
      %25 = sbr.rel target = $region3
    $region8: #{tpu_custom_call.1} parent=1 // loop_exit
      _
    %1260 = vsyncpa [#allocation6], 1
    %s1261 = scalar_lea.sflag [#allocation6], 1
    %1262 = vsyncpa %s1261, 1
    %1263 = vsyncpa [#allocation9], 1
    %1264 = vsyncpa [#allocation12], 1
    %1265 = vsyncpa [#allocation7], 1
    %s1266 = scalar_lea.sflag [#allocation7], 1
    %1267 = vsyncpa %s1266, 1

// kernel: tpu_custom_call.1
$region0: #{tpu_custom_call.1}
  #allocation0 [shape = 'u32[]', space=smem, size = 0x4, offset = 0x4, fixed_abs, tag = 'smem constant byte address 0x4 - core index']
  #allocation1 [shape = 'u32[72,128]{1,0:T(1,128)}', space=vmem, size = 0x9000, scoped, tag = 'internal scratch']
  #allocation2 [shape = 'bf16[8,32]{1,0:T(8,128)(2,1)}', space=vmem, size = 0x800, scoped, tag = 'scratch operand']
  #allocation3 [shape = 'bf16[8,32]{1,0:T(8,128)(2,1)}', space=vmem, size = 0x800, scoped, tag = 'scratch operand']
  #allocation4 [shape = 'bf16[8,32]{1,0:T(8,128)(2,1)}', space=vmem, size = 0x800, scoped, tag = 'scratch operand']
  %s0 = inlined_call_operand.vmem [shape: f32[2,8,32], index: 0, kind: input, shape index: {}]
  %s1 = inlined_call_operand.vmem [shape: f32[2,8,32], index: 1, kind: input, shape index: {}]
  %s2 = inlined_call_operand.vmem [shape: f32[1,32], index: 2, kind: input, shape index: {}]
  %s3 = inlined_call_operand.vmem [shape: f32[1,32], index: 3, kind: input, shape index: {}]
  %s4 = inlined_call_operand.vmem [shape: bf16[32,32], index: 4, kind: input, shape index: {}]
  %s5 = inlined_call_operand.hbm [shape: bf16[32,32], index: 5, kind: input, shape index: {}]
  %s6 = inlined_call_operand.hbm [shape: bf16[32,32], index: 6, kind: input, shape index: {}]
  %s7 = inlined_call_operand.hbm [shape: bf16[32,32], index: 7, kind: input, shape index: {}]
  %s8 = inlined_call_operand.vmem [shape: f32[1,32], index: 8, kind: input, shape index: {}]
  %s9 = inlined_call_operand.vmem [shape: f32[1,32], index: 9, kind: input, shape index: {}]
  %s10 = inlined_call_operand.hbm [shape: bf16[32,64], index: 10, kind: input, shape index: {}]
  %s11 = inlined_call_operand.vmem [shape: f32[1,64], index: 11, kind: input, shape index: {}]
  %s12 = inlined_call_operand.vmem [shape: bf16[64,32], index: 12, kind: input, shape index: {}]
  %s13 = inlined_call_operand.vmem [shape: f32[1,32], index: 13, kind: input, shape index: {}]
  %s14 = inlined_call_operand.hbm [shape: f32[2,8,32], index: 14, kind: output, shape index: {}]
  %s15 = sld [smem:[#allocation0]]
  $region109: #{tpu_custom_call.1} parent=0
    _
  %s17 = ssub.s32 1, %s15
  %s18 = scalar_select 0, %s17, %s15
  $region1: #{tpu_custom_call.1} parent=0
    #allocation5 [shape = 'u8[8192]{0}', space=vmem, size = 0x2000, scoped, tag = 'input window, operand 5, single buffered']
    #allocation6 [shape = 's32[2]{0}', space=sflag, size = 0x8, scoped, tag = 'scoped memory for tpu_custom_call.1']
    #allocation7 [shape = 's32[2]{0}', space=sflag, size = 0x8, scoped, tag = 'scoped memory for tpu_custom_call.1']
    #allocation8 [shape = 'u8[8192]{0}', space=vmem, size = 0x2000, scoped, tag = 'input window, operand 6, single buffered']
    #allocation9 [shape = 's32[1]{0}', space=sflag, size = 0x4, scoped, tag = 'scoped memory for tpu_custom_call.1']
    #allocation10 [shape = 'u8[8192]{0}', space=vmem, size = 0x2000, scoped, tag = 'input window, operand 7, single buffered']
    #allocation11 [shape = 'u8[8192]{0}', space=vmem, size = 0x2000, scoped, tag = 'input window, operand 10, single buffered']
    #allocation12 [shape = 's32[1]{0}', space=sflag, size = 0x4, scoped, tag = 'scoped memory for tpu_custom_call.1']
    #allocation13 [shape = 'u8[8192]{0}', space=vmem, size = 0x2000, scoped, tag = 'output window, operand 0']
    %19 = vsyncpa [#allocation6], 0
    %20 = vsyncpa [#allocation9], 0
    %21 = vsyncpa [#allocation12], 0
    %22 = vsyncpa [#allocation7], 0
    %s23 = scalar_lea.sflag [#allocation7], 1
    %24 = vsyncpa %s23, 0
    loop: start=0, step=1, limit=4
    $region2: #{tpu_custom_call.1} parent=1 // loop_pre_header
      _
    $region3: #{tpu_custom_call.1} parent=1 // loop_header
      %s26 = sphi 0, %s30
      %p27 = scmp.ge.s32.totalorder %s26, 4
      %s33 = sphi 0, %s45
      %s34 = sphi 0, %s41
      %s35 = sphi 0, %s33
      %s36 = sphi 0, %s34
      %s37 = sphi 0, %s35
      %s38 = sphi 0, %s36
      %s50 = sphi 0, %s52
      %s53 = sphi 0, %s50
      %s54 = sphi 0, %s53
      %s70 = sphi 0, %s54
      %s76 = sphi 0, %s78
      %s79 = sphi 0, %s76
      %s80 = sphi 0, %s79
      %s96 = sphi 0, %s80
      %s100 = sphi 0, %s100
      %s102 = sphi 0, %s100
      %s103 = sphi 0, %s102
      %s117 = sphi 0, %s103
      %s121 = sphi 0, %s121
      %s123 = sphi 0, %s121
      %s124 = sphi 0, %s123
      %s138 = sphi 0, %s124
      %s142 = sphi 0, %s142
      %s144 = sphi 0, %s142
      %s145 = sphi 0, %s144
      %s159 = sphi 0, %s145
      %s163 = sphi 0, %s163
      %s165 = sphi 0, %s163
      %s166 = sphi 0, %s165
      %s180 = sphi 0, %s166
      %s184 = sphi 0, %s184
      %s186 = sphi 0, %s184
      %s187 = sphi 0, %s186
      %s201 = sphi 0, %s187
      %s205 = sphi 0, %s205
      %s207 = sphi 0, %s205
      %s208 = sphi 0, %s207
      %s222 = sphi 0, %s208
      %s226 = sphi 0, %s226
      %s228 = sphi 0, %s226
      %s229 = sphi 0, %s228
      %s243 = sphi 0, %s229
      %s247 = sphi 0, %s247
      %s249 = sphi 0, %s247
      %s250 = sphi 0, %s249
      %s264 = sphi 0, %s250
      %s268 = sphi 0, %s268
      %s270 = sphi 0, %s268
      %s271 = sphi 0, %s270
      %s285 = sphi 0, %s271
      %s289 = sphi 0, %s289
      %s291 = sphi 0, %s289
      %s292 = sphi 0, %s291
      %s306 = sphi 0, %s292
      %s310 = sphi 0, %s310
      %s312 = sphi 0, %s310
      %s313 = sphi 0, %s312
      %s327 = sphi 0, %s313
      %s331 = sphi 0, %s331
      %s333 = sphi 0, %s331
      %s334 = sphi 0, %s333
      %s348 = sphi 0, %s334
      %s356 = sphi 0, %s358
      %s359 = sphi 0, %s356
      %s360 = sphi 0, %s359
      %s376 = sphi 0, %s360
    $region4: #{tpu_custom_call.1} parent=1 // loop_header_branch
      %29 = sbr.rel (%p27) target = $region8
    $region5: #{tpu_custom_call.1} parent=1 // loop_body
      %s31 = ssub.s32 %s26, 1
      %s32 = ssub.s32 %s26, 2
      %s39 = sadd.s32 1, %s34
      %p40 = scmp.ge.s32.totalorder %s39, 1
      %s41 = scalar_select %p40, 0, %s39
      %s42 = sadd.s32 1, %s33
      %s43 = scalar_select %p40, %s42, %s33
      %p44 = scmp.ge.s32.totalorder %s43, 2
      %s45 = scalar_select %p44, 0, %s43
      %s46 = ssub.s32 %s33, %s45
      %s47 = ssub.s32 %s34, %s41
      %s48 = sor.u32 %s46, %s47
      %p49 = scmp.eq.s32.totalorder %s48, 0
      %s51 = sadd.s32 %s50, 1
      %s52 = scalar_select %p49, %s50, %s51
      %p55 = pneg %p49
      %p56 = scmp.eq.s32.totalorder %s26, 1
      %p57 = por %p55, %p56
      %p58 = scmp.ne.s32.totalorder %s50, %s53
      %p59 = scmp.eq.s32.totalorder %s26, 0
      %p60 = por %p58, %p59
      %p61 = scmp.ne.s32.totalorder %s50, %s53
      %p62 = scmp.eq.s32.totalorder %s31, 1
      %p63 = por %p61, %p62
      %p64 = scmp.ne.s32.totalorder %s53, %s54
      %p65 = scmp.eq.s32.totalorder %s31, 0
      %p66 = por %p64, %p65
      %p67 = scmp.ne.s32.totalorder %s53, %s54
      %p68 = scmp.eq.s32.totalorder %s32, 1
      %p69 = por %p67, %p68
      %p71 = scmp.ne.s32.totalorder %s54, %s70
      %p72 = scmp.eq.s32.totalorder %s32, 0
      %p73 = por %p71, %p72
      %s74 = ssub.s32 %s33, %s45
      %p75 = scmp.eq.s32.totalorder %s74, 0
      %s77 = sadd.s32 %s76, 1
      %s78 = scalar_select %p75, %s76, %s77
      %p81 = pneg %p75
      %p82 = scmp.eq.s32.totalorder %s26, 1
      %p83 = por %p81, %p82
      %p84 = scmp.ne.s32.totalorder %s76, %s79
      %p85 = scmp.eq.s32.totalorder %s26, 0
      %p86 = por %p84, %p85
      %p87 = scmp.ne.s32.totalorder %s76, %s79
      %p88 = scmp.eq.s32.totalorder %s31, 1
      %p89 = por %p87, %p88
      %p90 = scmp.ne.s32.totalorder %s79, %s80
      %p91 = scmp.eq.s32.totalorder %s31, 0
      %p92 = por %p90, %p91
      %p93 = scmp.ne.s32.totalorder %s79, %s80
      %p94 = scmp.eq.s32.totalorder %s32, 1
      %p95 = por %p93, %p94
      %p97 = scmp.ne.s32.totalorder %s80, %s96
      %p98 = scmp.eq.s32.totalorder %s32, 0
      %p99 = por %p97, %p98
      %s101 = sadd.s32 %s100, 1
      %p104 = scmp.eq.s32.totalorder %s26, 1
      %p105 = scmp.ne.s32.totalorder %s100, %s102
      %p106 = scmp.eq.s32.totalorder %s26, 0
      %p107 = por %p105, %p106
      %p108 = scmp.ne.s32.totalorder %s100, %s102
      %p109 = scmp.eq.s32.totalorder %s31, 1
      %p110 = por %p108, %p109
      %p111 = scmp.ne.s32.totalorder %s102, %s103
      %p112 = scmp.eq.s32.totalorder %s31, 0
      %p113 = por %p111, %p112
      %p114 = scmp.ne.s32.totalorder %s102, %s103
      %p115 = scmp.eq.s32.totalorder %s32, 1
      %p116 = por %p114, %p115
      %p118 = scmp.ne.s32.totalorder %s103, %s117
      %p119 = scmp.eq.s32.totalorder %s32, 0
      %p120 = por %p118, %p119
      %s122 = sadd.s32 %s121, 1
      %p125 = scmp.eq.s32.totalorder %s26, 1
      %p126 = scmp.ne.s32.totalorder %s121, %s123
      %p127 = scmp.eq.s32.totalorder %s26, 0
      %p128 = por %p126, %p127
      %p129 = scmp.ne.s32.totalorder %s121, %s123
      %p130 = scmp.eq.s32.totalorder %s31, 1
      %p131 = por %p129, %p130
      %p132 = scmp.ne.s32.totalorder %s123, %s124
      %p133 = scmp.eq.s32.totalorder %s31, 0
      %p134 = por %p132, %p133
      %p135 = scmp.ne.s32.totalorder %s123, %s124
      %p136 = scmp.eq.s32.totalorder %s32, 1
      %p137 = por %p135, %p136
      %p139 = scmp.ne.s32.totalorder %s124, %s138
      %p140 = scmp.eq.s32.totalorder %s32, 0
      %p141 = por %p139, %p140
      %s143 = sadd.s32 %s142, 1
      %p146 = scmp.eq.s32.totalorder %s26, 1
      %p147 = scmp.ne.s32.totalorder %s142, %s144
      %p148 = scmp.eq.s32.totalorder %s26, 0
      %p149 = por %p147, %p148
      %p150 = scmp.ne.s32.totalorder %s142, %s144
      %p151 = scmp.eq.s32.totalorder %s31, 1
      %p152 = por %p150, %p151
      %p153 = scmp.ne.s32.totalorder %s144, %s145
      %p154 = scmp.eq.s32.totalorder %s31, 0
      %p155 = por %p153, %p154
      %p156 = scmp.ne.s32.totalorder %s144, %s145
      %p157 = scmp.eq.s32.totalorder %s32, 1
      %p158 = por %p156, %p157
      %p160 = scmp.ne.s32.totalorder %s145, %s159
      %p161 = scmp.eq.s32.totalorder %s32, 0
      %p162 = por %p160, %p161
      %s164 = sadd.s32 %s163, 1
      %p167 = scmp.eq.s32.totalorder %s26, 1
      %p168 = scmp.ne.s32.totalorder %s163, %s165
      %p169 = scmp.eq.s32.totalorder %s26, 0
      %p170 = por %p168, %p169
      %p171 = scmp.ne.s32.totalorder %s163, %s165
      %p172 = scmp.eq.s32.totalorder %s31, 1
      %p173 = por %p171, %p172
      %p174 = scmp.ne.s32.totalorder %s165, %s166
      %p175 = scmp.eq.s32.totalorder %s31, 0
      %p176 = por %p174, %p175
      %p177 = scmp.ne.s32.totalorder %s165, %s166
      %p178 = scmp.eq.s32.totalorder %s32, 1
      %p179 = por %p177, %p178
      %p181 = scmp.ne.s32.totalorder %s166, %s180
      %p182 = scmp.eq.s32.totalorder %s32, 0
      %p183 = por %p181, %p182
      %s185 = sadd.s32 %s184, 1
      %p188 = scmp.eq.s32.totalorder %s26, 1
      %p189 = scmp.ne.s32.totalorder %s184, %s186
      %p190 = scmp.eq.s32.totalorder %s26, 0
      %p191 = por %p189, %p190
      %p192 = scmp.ne.s32.totalorder %s184, %s186
      %p193 = scmp.eq.s32.totalorder %s31, 1
      %p194 = por %p192, %p193
      %p195 = scmp.ne.s32.totalorder %s186, %s187
      %p196 = scmp.eq.s32.totalorder %s31, 0
      %p197 = por %p195, %p196
      %p198 = scmp.ne.s32.totalorder %s186, %s187
      %p199 = scmp.eq.s32.totalorder %s32, 1
      %p200 = por %p198, %p199
      %p202 = scmp.ne.s32.totalorder %s187, %s201
      %p203 = scmp.eq.s32.totalorder %s32, 0
      %p204 = por %p202, %p203
      %s206 = sadd.s32 %s205, 1
      %p209 = scmp.eq.s32.totalorder %s26, 1
      %p210 = scmp.ne.s32.totalorder %s205, %s207
      %p211 = scmp.eq.s32.totalorder %s26, 0
      %p212 = por %p210, %p211
      %p213 = scmp.ne.s32.totalorder %s205, %s207
      %p214 = scmp.eq.s32.totalorder %s31, 1
      %p215 = por %p213, %p214
      %p216 = scmp.ne.s32.totalorder %s207, %s208
      %p217 = scmp.eq.s32.totalorder %s31, 0
      %p218 = por %p216, %p217
      %p219 = scmp.ne.s32.totalorder %s207, %s208
      %p220 = scmp.eq.s32.totalorder %s32, 1
      %p221 = por %p219, %p220
      %p223 = scmp.ne.s32.totalorder %s208, %s222
      %p224 = scmp.eq.s32.totalorder %s32, 0
      %p225 = por %p223, %p224
      %s227 = sadd.s32 %s226, 1
      %p230 = scmp.eq.s32.totalorder %s26, 1
      %p231 = scmp.ne.s32.totalorder %s226, %s228
      %p232 = scmp.eq.s32.totalorder %s26, 0
      %p233 = por %p231, %p232
      %p234 = scmp.ne.s32.totalorder %s226, %s228
      %p235 = scmp.eq.s32.totalorder %s31, 1
      %p236 = por %p234, %p235
      %p237 = scmp.ne.s32.totalorder %s228, %s229
      %p238 = scmp.eq.s32.totalorder %s31, 0
      %p239 = por %p237, %p238
      %p240 = scmp.ne.s32.totalorder %s228, %s229
      %p241 = scmp.eq.s32.totalorder %s32, 1
      %p242 = por %p240, %p241
      %p244 = scmp.ne.s32.totalorder %s229, %s243
      %p245 = scmp.eq.s32.totalorder %s32, 0
      %p246 = por %p244, %p245
      %s248 = sadd.s32 %s247, 1
      %p251 = scmp.eq.s32.totalorder %s26, 1
      %p252 = scmp.ne.s32.totalorder %s247, %s249
      %p253 = scmp.eq.s32.totalorder %s26, 0
      %p254 = por %p252, %p253
      %p255 = scmp.ne.s32.totalorder %s247, %s249
      %p256 = scmp.eq.s32.totalorder %s31, 1
      %p257 = por %p255, %p256
      %p258 = scmp.ne.s32.totalorder %s249, %s250
      %p259 = scmp.eq.s32.totalorder %s31, 0
      %p260 = por %p258, %p259
      %p261 = scmp.ne.s32.totalorder %s249, %s250
      %p262 = scmp.eq.s32.totalorder %s32, 1
      %p263 = por %p261, %p262
      %p265 = scmp.ne.s32.totalorder %s250, %s264
      %p266 = scmp.eq.s32.totalorder %s32, 0
      %p267 = por %p265, %p266
      %s269 = sadd.s32 %s268, 1
      %p272 = scmp.eq.s32.totalorder %s26, 1
      %p273 = scmp.ne.s32.totalorder %s268, %s270
      %p274 = scmp.eq.s32.totalorder %s26, 0
      %p275 = por %p273, %p274
      %p276 = scmp.ne.s32.totalorder %s268, %s270
      %p277 = scmp.eq.s32.totalorder %s31, 1
      %p278 = por %p276, %p277
      %p279 = scmp.ne.s32.totalorder %s270, %s271
      %p280 = scmp.eq.s32.totalorder %s31, 0
      %p281 = por %p279, %p280
      %p282 = scmp.ne.s32.totalorder %s270, %s271
      %p283 = scmp.eq.s32.totalorder %s32, 1
      %p284 = por %p282, %p283
      %p286 = scmp.ne.s32.totalorder %s271, %s285
      %p287 = scmp.eq.s32.totalorder %s32, 0
      %p288 = por %p286, %p287
      %s290 = sadd.s32 %s289, 1
      %p293 = scmp.eq.s32.totalorder %s26, 1
      %p294 = scmp.ne.s32.totalorder %s289, %s291
      %p295 = scmp.eq.s32.totalorder %s26, 0
      %p296 = por %p294, %p295
      %p297 = scmp.ne.s32.totalorder %s289, %s291
      %p298 = scmp.eq.s32.totalorder %s31, 1
      %p299 = por %p297, %p298
      %p300 = scmp.ne.s32.totalorder %s291, %s292
      %p301 = scmp.eq.s32.totalorder %s31, 0
      %p302 = por %p300, %p301
      %p303 = scmp.ne.s32.totalorder %s291, %s292
      %p304 = scmp.eq.s32.totalorder %s32, 1
      %p305 = por %p303, %p304
      %p307 = scmp.ne.s32.totalorder %s292, %s306
      %p308 = scmp.eq.s32.totalorder %s32, 0
      %p309 = por %p307, %p308
      %s311 = sadd.s32 %s310, 1
      %p314 = scmp.eq.s32.totalorder %s26, 1
      %p315 = scmp.ne.s32.totalorder %s310, %s312
      %p316 = scmp.eq.s32.totalorder %s26, 0
      %p317 = por %p315, %p316
      %p318 = scmp.ne.s32.totalorder %s310, %s312
      %p319 = scmp.eq.s32.totalorder %s31, 1
      %p320 = por %p318, %p319
      %p321 = scmp.ne.s32.totalorder %s312, %s313
      %p322 = scmp.eq.s32.totalorder %s31, 0
      %p323 = por %p321, %p322
      %p324 = scmp.ne.s32.totalorder %s312, %s313
      %p325 = scmp.eq.s32.totalorder %s32, 1
      %p326 = por %p324, %p325
      %p328 = scmp.ne.s32.totalorder %s313, %s327
      %p329 = scmp.eq.s32.totalorder %s32, 0
      %p330 = por %p328, %p329
      %s332 = sadd.s32 %s331, 1
      %p335 = scmp.eq.s32.totalorder %s26, 1
      %p336 = scmp.ne.s32.totalorder %s331, %s333
      %p337 = scmp.eq.s32.totalorder %s26, 0
      %p338 = por %p336, %p337
      %p339 = scmp.ne.s32.totalorder %s331, %s333
      %p340 = scmp.eq.s32.totalorder %s31, 1
      %p341 = por %p339, %p340
      %p342 = scmp.ne.s32.totalorder %s333, %s334
      %p343 = scmp.eq.s32.totalorder %s31, 0
      %p344 = por %p342, %p343
      %p345 = scmp.ne.s32.totalorder %s333, %s334
      %p346 = scmp.eq.s32.totalorder %s32, 1
      %p347 = por %p345, %p346
      %p349 = scmp.ne.s32.totalorder %s334, %s348
      %p350 = scmp.eq.s32.totalorder %s32, 0
      %p351 = por %p349, %p350
      %s352 = ssub.s32 %s33, %s45
      %s353 = ssub.s32 %s34, %s41
      %s354 = sor.u32 %s352, %s353
      %p355 = scmp.eq.s32.totalorder %s354, 0
      %s357 = sadd.s32 %s356, 1
      %s358 = scalar_select %p355, %s356, %s357
      %p361 = pneg %p355
      %p362 = scmp.eq.s32.totalorder %s26, 1
      %p363 = por %p361, %p362
      %p364 = scmp.ne.s32.totalorder %s356, %s359
      %p365 = scmp.eq.s32.totalorder %s26, 0
      %p366 = por %p364, %p365
      %p367 = scmp.ne.s32.totalorder %s356, %s359
      %p368 = scmp.eq.s32.totalorder %s31, 1
      %p369 = por %p367, %p368
      %p370 = scmp.ne.s32.totalorder %s359, %s360
      %p371 = scmp.eq.s32.totalorder %s31, 0
      %p372 = por %p370, %p371
      %p373 = scmp.ne.s32.totalorder %s359, %s360
      %p374 = scmp.eq.s32.totalorder %s32, 1
      %p375 = por %p373, %p374
      %p377 = scmp.ne.s32.totalorder %s360, %s376
      %p378 = scmp.eq.s32.totalorder %s32, 0
      %p379 = por %p377, %p378
      %p380 = scmp.le.s32.totalorder 1, %s26
      %p381 = scmp.lt.s32.totalorder %s26, 3
      %p382 = pnand %p380, %p381
      %p383 = pneg %p382
      // Predicated region
      $region9: #{tpu_custom_call.1} parent=5 // pred_check
        _
      $region10: #{tpu_custom_call.1} parent=5 // pred_check_branch
        %385 = sbr.rel (%p382) target = $region12
      $region11: #{tpu_custom_call.1} parent=5 // pred_region
        %s386 = ssub.s32 %s26, 1
        // Predicated region
        $region13: #{tpu_custom_call.1} parent=11 // pred_check
          %p387 = pneg %p113
        $region14: #{tpu_custom_call.1} parent=11 // pred_check_branch
          %389 = sbr.rel (%p387) target = $region16
        $region15: #{tpu_custom_call.1} parent=11 // pred_region
          _
        $region16: #{tpu_custom_call.1} parent=11 // pred_fallthru
          _
        // Predicated region
        $region17: #{tpu_custom_call.1} parent=11 // pred_check
          %p390 = pneg %p134
        $region18: #{tpu_custom_call.1} parent=11 // pred_check_branch
          %392 = sbr.rel (%p390) target = $region20
        $region19: #{tpu_custom_call.1} parent=11 // pred_region
          _
        $region20: #{tpu_custom_call.1} parent=11 // pred_fallthru
          _
        // Predicated region
        $region21: #{tpu_custom_call.1} parent=11 // pred_check
          %p393 = pneg %p155
        $region22: #{tpu_custom_call.1} parent=11 // pred_check_branch
          %395 = sbr.rel (%p393) target = $region24
        $region23: #{tpu_custom_call.1} parent=11 // pred_region
          _
        $region24: #{tpu_custom_call.1} parent=11 // pred_fallthru
          _
        // Predicated region
        $region25: #{tpu_custom_call.1} parent=11 // pred_check
          %p396 = pneg %p176
        $region26: #{tpu_custom_call.1} parent=11 // pred_check_branch
          %398 = sbr.rel (%p396) target = $region28
        $region27: #{tpu_custom_call.1} parent=11 // pred_region
          %400 = vsyncadd [#allocation6], 0
          %s401 = sshll.u32 %s5, 4
          %s402 = int_to_ptr.hbm [resolvable:$true] %s401
          %s403 = sshll.u32 [#allocation5], 4
          %s404 = int_to_ptr.vmem [resolvable:$true] %s403
          %409 = dma.hbm_to_vmem [thread:$0]  %s402, 256, %s404, [#allocation6], 64, 64, 4
        $region28: #{tpu_custom_call.1} parent=11 // pred_fallthru
          _
        // Predicated region
        $region29: #{tpu_custom_call.1} parent=11 // pred_check
          %p410 = pneg %p197
        $region30: #{tpu_custom_call.1} parent=11 // pred_check_branch
          %412 = sbr.rel (%p410) target = $region32
        $region31: #{tpu_custom_call.1} parent=11 // pred_region
          %414 = vsyncadd [#allocation9], 0
          %s415 = sshll.u32 %s6, 4
          %s416 = int_to_ptr.hbm [resolvable:$true] %s415
          %s417 = sshll.u32 [#allocation8], 4
          %s418 = int_to_ptr.vmem [resolvable:$true] %s417
          %423 = dma.hbm_to_vmem [thread:$0]  %s416, 256, %s418, [#allocation9], 64, 64, 4
        $region32: #{tpu_custom_call.1} parent=11 // pred_fallthru
          _
        // Predicated region
        $region33: #{tpu_custom_call.1} parent=11 // pred_check
          %p424 = pneg %p218
        $region34: #{tpu_custom_call.1} parent=11 // pred_check_branch
          %426 = sbr.rel (%p424) target = $region36
        $region35: #{tpu_custom_call.1} parent=11 // pred_region
          %428 = vsyncadd [#allocation9], 0
          %s429 = sshll.u32 %s7, 4
          %s430 = int_to_ptr.hbm [resolvable:$true] %s429
          %s431 = sshll.u32 [#allocation10], 4
          %s432 = int_to_ptr.vmem [resolvable:$true] %s431
          %437 = dma.hbm_to_vmem [thread:$0]  %s430, 256, %s432, [#allocation9], 64, 64, 4
        $region36: #{tpu_custom_call.1} parent=11 // pred_fallthru
          _
        // Predicated region
        $region37: #{tpu_custom_call.1} parent=11 // pred_check
          %p438 = pneg %p239
        $region38: #{tpu_custom_call.1} parent=11 // pred_check_branch
          %440 = sbr.rel (%p438) target = $region40
        $region39: #{tpu_custom_call.1} parent=11 // pred_region
          _
        $region40: #{tpu_custom_call.1} parent=11 // pred_fallthru
          _
        // Predicated region
        $region41: #{tpu_custom_call.1} parent=11 // pred_check
          %p441 = pneg %p260
        $region42: #{tpu_custom_call.1} parent=11 // pred_check_branch
          %443 = sbr.rel (%p441) target = $region44
        $region43: #{tpu_custom_call.1} parent=11 // pred_region
          _
        $region44: #{tpu_custom_call.1} parent=11 // pred_fallthru
          _
        // Predicated region
        $region45: #{tpu_custom_call.1} parent=11 // pred_check
          %p444 = pneg %p281
        $region46: #{tpu_custom_call.1} parent=11 // pred_check_branch
          %446 = sbr.rel (%p444) target = $region48
        $region47: #{tpu_custom_call.1} parent=11 // pred_region
          %448 = vsyncadd [#allocation12], 0
          %s449 = sshll.u32 %s10, 4
          %s450 = int_to_ptr.hbm [resolvable:$true] %s449
          %s451 = sshll.u32 [#allocation11], 4
          %s452 = int_to_ptr.vmem [resolvable:$true] %s451
          %457 = dma.hbm_to_vmem [thread:$0]  %s450, 256, %s452, [#allocation12], 64, 64, 4
        $region48: #{tpu_custom_call.1} parent=11 // pred_fallthru
          _
        // Predicated region
        $region49: #{tpu_custom_call.1} parent=11 // pred_check
          %p458 = pneg %p302
        $region50: #{tpu_custom_call.1} parent=11 // pred_check_branch
          %460 = sbr.rel (%p458) target = $region52
        $region51: #{tpu_custom_call.1} parent=11 // pred_region
          _
        $region52: #{tpu_custom_call.1} parent=11 // pred_fallthru
          _
        // Predicated region
        $region53: #{tpu_custom_call.1} parent=11 // pred_check
          %p461 = pneg %p323
        $region54: #{tpu_custom_call.1} parent=11 // pred_check_branch
          %463 = sbr.rel (%p461) target = $region56
        $region55: #{tpu_custom_call.1} parent=11 // pred_region
          _
        $region56: #{tpu_custom_call.1} parent=11 // pred_fallthru
          _
        // Predicated region
        $region57: #{tpu_custom_call.1} parent=11 // pred_check
          %p464 = pneg %p344
        $region58: #{tpu_custom_call.1} parent=11 // pred_check_branch
          %466 = sbr.rel (%p464) target = $region60
        $region59: #{tpu_custom_call.1} parent=11 // pred_region
          _
        $region60: #{tpu_custom_call.1} parent=11 // pred_fallthru
          _
      $region12: #{tpu_custom_call.1} parent=5 // pred_fallthru
        _
      %p467 = scmp.lt.s32.totalorder %s26, 2
      // Predicated region
      $region61: #{tpu_custom_call.1} parent=5 // pred_check
        %p468 = pneg %p467
      $region62: #{tpu_custom_call.1} parent=5 // pred_check_branch
        %470 = sbr.rel (%p468) target = $region64
      $region63: #{tpu_custom_call.1} parent=5 // pred_region
        // Predicated region
        $region65: #{tpu_custom_call.1} parent=63 // pred_check
          %p471 = pneg %p60
        $region66: #{tpu_custom_call.1} parent=63 // pred_check_branch
          %473 = sbr.rel (%p471) target = $region68
        $region67: #{tpu_custom_call.1} parent=63 // pred_region
          %p474 = scmp.lt.s32.totalorder %s33, 1
          %s475 = scalar_select %p474, %s33, 1
          %p476 = scmp.lt.s32.totalorder %s34, 0
          %s477 = scalar_select %p476, %s34, 0
          %s478 = sadd.s32 %s477, %s475
          %s479 = smul.addr %s478, 8
          %s480 = scalar_lea.vmem %s0, %s479
        $region68: #{tpu_custom_call.1} parent=63 // pred_fallthru
          _
        // Predicated region
        $region69: #{tpu_custom_call.1} parent=63 // pred_check
          %p481 = pneg %p86
        $region70: #{tpu_custom_call.1} parent=63 // pred_check_branch
          %483 = sbr.rel (%p481) target = $region72
        $region71: #{tpu_custom_call.1} parent=63 // pred_region
          %p484 = scmp.lt.s32.totalorder %s33, 1
          %s485 = scalar_select %p484, %s33, 1
          %s486 = smul.addr %s485, 8
          %s487 = scalar_lea.vmem %s1, %s486
        $region72: #{tpu_custom_call.1} parent=63 // pred_fallthru
          _
      $region64: #{tpu_custom_call.1} parent=5 // pred_fallthru
        _
      %p488 = scmp.le.s32.totalorder 1, %s26
      %p489 = scmp.lt.s32.totalorder %s26, 3
      %p490 = pnand %p488, %p489
      %p491 = pneg %p490
      // Predicated region
      $region73: #{tpu_custom_call.1} parent=5 // pred_check
        _
      $region74: #{tpu_custom_call.1} parent=5 // pred_check_branch
        %493 = sbr.rel (%p490) target = $region76
      $region75: #{tpu_custom_call.1} parent=5 // pred_region
        %s494 = ssub.s32 %s26, 1
        // Predicated region
        $region77: #{tpu_custom_call.1} parent=75 // pred_check
          %p495 = pneg %p176
        $region78: #{tpu_custom_call.1} parent=75 // pred_check_branch
          %497 = sbr.rel (%p495) target = $region80
        $region79: #{tpu_custom_call.1} parent=75 // pred_region
          %499 = dma.done [#allocation6], 256
        $region80: #{tpu_custom_call.1} parent=75 // pred_fallthru
          _
        // Predicated region
        $region81: #{tpu_custom_call.1} parent=75 // pred_check
          %p500 = pneg %p197
        $region82: #{tpu_custom_call.1} parent=75 // pred_check_branch
          %502 = sbr.rel (%p500) target = $region84
        $region83: #{tpu_custom_call.1} parent=75 // pred_region
          %504 = dma.done [#allocation9], 256
        $region84: #{tpu_custom_call.1} parent=75 // pred_fallthru
          _
        // Predicated region
        $region85: #{tpu_custom_call.1} parent=75 // pred_check
          %p505 = pneg %p218
        $region86: #{tpu_custom_call.1} parent=75 // pred_check_branch
          %507 = sbr.rel (%p505) target = $region88
        $region87: #{tpu_custom_call.1} parent=75 // pred_region
          %509 = dma.done [#allocation9], 256
        $region88: #{tpu_custom_call.1} parent=75 // pred_fallthru
          _
        // Predicated region
        $region89: #{tpu_custom_call.1} parent=75 // pred_check
          %p510 = pneg %p281
        $region90: #{tpu_custom_call.1} parent=75 // pred_check_branch
          %512 = sbr.rel (%p510) target = $region92
        $region91: #{tpu_custom_call.1} parent=75 // pred_region
          %514 = dma.done [#allocation12], 256
        $region92: #{tpu_custom_call.1} parent=75 // pred_fallthru
          _
        %p515 = scmp.lt.s32.totalorder %s35, 1
        %s516 = scalar_select %p515, %s35, 1
        %p517 = scmp.lt.s32.totalorder %s36, 0
        %s518 = scalar_select %p517, %s36, 0
        %s519 = sadd.s32 %s518, %s516
        %s520 = smul.addr %s519, 8
        %s521 = scalar_lea.vmem %s0, %s520
        %p522 = pneg %p66
        %p523 = pneg %p63
        %p524 = scmp.lt.s32.totalorder %s35, 1
        %s525 = scalar_select %p524, %s35, 1
        %s526 = smul.addr %s525, 8
        %s527 = scalar_lea.vmem %s1, %s526
        %p528 = pneg %p92
        %p529 = pneg %p89
        %p530 = pneg %p113
        %p531 = pneg %p110
        %p532 = pneg %p134
        %p533 = pneg %p131
        %p534 = pneg %p155
        %p535 = pneg %p152
        %p536 = pneg %p176
        %p537 = pneg %p173
        %p538 = pneg %p197
        %p539 = pneg %p194
        %p540 = pneg %p218
        %p541 = pneg %p215
        %p542 = pneg %p239
        %p543 = pneg %p236
        %p544 = pneg %p260
        %p545 = pneg %p257
        %p546 = pneg %p281
        %p547 = pneg %p278
        %p548 = pneg %p302
        %p549 = pneg %p299
        %p550 = pneg %p323
        %p551 = pneg %p320
        %p552 = pneg %p344
        %p553 = pneg %p341
        %p554 = pneg %p372
        %p555 = pneg %p369
        %s556 = sand.u32 %s359, 1
        %s557 = scalar_lea.sflag [#allocation7], %s556
        %s558 = sand.u32 %s359, 1
        %s559 = smul.addr %s558, 8
        %s560 = scalar_lea.vmem [#allocation13], %s559
        %p561 = scmp.lt.s32.totalorder %s35, 1
        %s562 = scalar_select %p561, %s35, 1
        %p563 = scmp.lt.s32.totalorder %s36, 0
        %s564 = scalar_select %p563, %s36, 0
        %s565 = sadd.s32 %s564, %s562
        %s566 = smul.addr %s565, 8
        %s567 = scalar_lea.vmem %s0, %s566
        %p568 = scmp.lt.s32.totalorder %s35, 1
        %s569 = scalar_select %p568, %s35, 1
        %s570 = smul.addr %s569, 8
        %s571 = scalar_lea.vmem %s1, %s570
        %v573 = vld [vmem:[%s2] sm:$0x1]
        %v574 = vld [vmem:[%s3] sm:$0x1]
        %p575 = scmp.eq.s32.totalorder %s36, 0
        // Predicated region
        $region93: #{tpu_custom_call.1} parent=75 // pred_check
          %p576 = pneg %p575
        $region94: #{tpu_custom_call.1} parent=75 // pred_check_branch
          %578 = sbr.rel (%p576) target = $region96
        $region95: #{tpu_custom_call.1} parent=75 // pred_region
          %v579 = vld [vmem:[%s571] sm:$0xff]
          %vm580 = vcmask 261120
          %v581 = vsel %vm580, %v579, 0.0
          %582 = vadd.xlane.f32.xlu0 %v581
          %v583 = vpop.xlane.xlu0 %582
          %v584 = vrcp.pop 32.0
          %v585 = vmul.f32 32.0, %v584
          %v586 = vsub.f32 1.0, %v585
          %v587 = vmul.f32 %v584, %v586
          %v588 = vadd.f32 %v584, %v587
          %vm589 = vweird.f32 %v584
          %v590 = vsel %vm589, %v584, %v588
          %v591 = vmul.f32 %v583, %v590
          %v592 = vsub.f32 %v579, %v591
          %v593 = vmul.f32 %v592, %v592
          %v594 = vsel %vm580, %v593, 0.0
          %595 = vadd.xlane.f32.xlu0 %v594
          %v596 = vpop.xlane.xlu0 %595
          %v597 = vmul.f32 %v596, %v590
          %v598 = vadd.f32 %v597, 1e-05
          %v599 = vrsqrt.pop %v598
          %v600 = vmul.f32 %v599, %v598
          %v601 = vmul.f32 %v600, %v599
          %v602 = vmul.f32 0.5, %v601
          %v603 = vsub.f32 1.5, %v602
          %v604 = vmul.f32 %v599, %v603
          %vm605 = vweird.f32 %v598
          %vm606 = vweird.f32 %v599
          %vm607 = vmor %vm605, %vm606
          %v608 = vsel %vm607, %v599, %v604
          %v609 = vmul.f32 %v592, %v608
          %v611 = vperm.slane %v573, 0
          %v613 = vmul.f32 %v609, %v611
          %v615 = vperm.slane %v574, 0
          %v617 = vadd.f32 %v613, %v615
          %v618 = vpack.c.bf16 %v617, %v617
          %v619 = vld [vmem:[#allocation5] sm:$0xf]
          %v620 = vld [vmem:[#allocation5 + $0x4] sm:$0xf]
          %v621 = vld [vmem:[#allocation5 + $0x8] sm:$0xf]
          %v622 = vld [vmem:[#allocation5 + $0xc] sm:$0xf]
          %v627 = vunpack.c.l.b16 %v619
          %v628 = vunpack.c.l.b16 %v620
          %v629 = vunpack.c.l.b16 %v621
          %v630 = vunpack.c.l.b16 %v622
          %v631 = vpack.c.b16 %v628, %v627
          %v632 = vpack.c.b16 %v630, %v629
          %v636 = vsel %vm580, %v618, 0
          %638 = vmatpush.bf16.msra.mxu0 0
          %639 = vmatpush.bf16.msra.mxu0 0
          %640 = vmatpush.bf16.msra.mxu0 0
          %641 = vmatpush.bf16.msra.mxu0 0
          %642 = vmatpush.bf16.msra.mxu0 0
          %643 = vmatpush.bf16.msra.mxu0 0
          %644 = vmatpush.bf16.msra.mxu0 %v632
          %645 = vmatpush.bf16.msra.mxu0 %v631
          %646 = vmatmul.bf16.gmra.mxu0 %v636
          %v647 = vpop.f32.mrf.mxu0
          %v648 = vadd.f32 0.0, %v647
          %v649 = vpop.f32.mrf.mxu0
          %650 = vdwg.mxu0
          %v651 = vpack.c.bf16 %v648, %v648
          %vm652 = vcmask 257024
          %653 = vst.msk [vmem:[#allocation2] sm:$0xf] %vm652, %v651
          %v654 = vld [vmem:[#allocation8] sm:$0xf]
          %v655 = vld [vmem:[#allocation8 + $0x4] sm:$0xf]
          %v656 = vld [vmem:[#allocation8 + $0x8] sm:$0xf]
          %v657 = vld [vmem:[#allocation8 + $0xc] sm:$0xf]
          %v662 = vunpack.c.l.b16 %v654
          %v663 = vunpack.c.l.b16 %v655
          %v664 = vunpack.c.l.b16 %v656
          %v665 = vunpack.c.l.b16 %v657
          %v666 = vpack.c.b16 %v663, %v662
          %v667 = vpack.c.b16 %v665, %v664
          %670 = vmatpush.bf16.msra.mxu0 0
          %671 = vmatpush.bf16.msra.mxu0 0
          %672 = vmatpush.bf16.msra.mxu0 0
          %673 = vmatpush.bf16.msra.mxu0 0
          %674 = vmatpush.bf16.msra.mxu0 0
          %675 = vmatpush.bf16.msra.mxu0 0
          %676 = vmatpush.bf16.msra.mxu0 %v667
          %677 = vmatpush.bf16.msra.mxu0 %v666
          %678 = vmatmul.bf16.gmra.mxu0 %v636
          %v679 = vpop.f32.mrf.mxu0
          %v680 = vadd.f32 0.0, %v679
          %v681 = vpop.f32.mrf.mxu0
          %682 = vdwg.mxu0
          %v683 = vpack.c.bf16 %v680, %v680
          %684 = vst.msk [vmem:[#allocation3] sm:$0xf] %vm652, %v683
        $region96: #{tpu_custom_call.1} parent=75 // pred_fallthru
          _
        %v685 = vld [vmem:[%s567] sm:$0xff]
        %vm686 = vcmask 261120
        %v687 = vsel %vm686, %v685, 0.0
        %688 = vadd.xlane.f32.xlu0 %v687
        %v689 = vpop.xlane.xlu0 %688
        %v690 = vrcp.pop 32.0
        %v691 = vmul.f32 32.0, %v690
        %v692 = vsub.f32 1.0, %v691
        %v693 = vmul.f32 %v690, %v692
        %v694 = vadd.f32 %v690, %v693
        %vm695 = vweird.f32 %v690
        %v696 = vsel %vm695, %v690, %v694
        %v697 = vmul.f32 %v689, %v696
        %v698 = vsub.f32 %v685, %v697
        %v699 = vmul.f32 %v698, %v698
        %v700 = vsel %vm686, %v699, 0.0
        %701 = vadd.xlane.f32.xlu0 %v700
        %v702 = vpop.xlane.xlu0 %701
        %v703 = vmul.f32 %v702, %v696
        %v704 = vadd.f32 %v703, 1e-05
        %v705 = vrsqrt.pop %v704
        %v706 = vmul.f32 %v705, %v704
        %v707 = vmul.f32 %v706, %v705
        %v708 = vmul.f32 0.5, %v707
        %v709 = vsub.f32 1.5, %v708
        %v710 = vmul.f32 %v705, %v709
        %vm711 = vweird.f32 %v704
        %vm712 = vweird.f32 %v705
        %vm713 = vmor %vm711, %vm712
        %v714 = vsel %vm713, %v705, %v710
        %v715 = vmul.f32 %v698, %v714
        %v717 = vperm.slane %v573, 0
        %v719 = vmul.f32 %v715, %v717
        %v721 = vperm.slane %v574, 0
        %v723 = vadd.f32 %v719, %v721
        %v724 = vpack.c.bf16 %v723, %v723
        %v725 = vld [vmem:[%s4] sm:$0xf]
        %v726 = vld [vmem:[%s4 + $0x4] sm:$0xf]
        %v727 = vld [vmem:[%s4 + $0x8] sm:$0xf]
        %v728 = vld [vmem:[%s4 + $0xc] sm:$0xf]
        %v733 = vunpack.c.l.b16 %v725
        %v734 = vunpack.c.l.b16 %v726
        %v735 = vunpack.c.l.b16 %v727
        %v736 = vunpack.c.l.b16 %v728
        %v737 = vpack.c.b16 %v734, %v733
        %v738 = vpack.c.b16 %v736, %v735
        %v742 = vsel %vm686, %v724, 0
        %744 = vmatpush.bf16.msra.mxu0 0
        %745 = vmatpush.bf16.msra.mxu0 0
        %746 = vmatpush.bf16.msra.mxu0 0
        %747 = vmatpush.bf16.msra.mxu0 0
        %748 = vmatpush.bf16.msra.mxu0 0
        %749 = vmatpush.bf16.msra.mxu0 0
        %750 = vmatpush.bf16.msra.mxu0 %v738
        %751 = vmatpush.bf16.msra.mxu0 %v737
        %752 = vmatmul.bf16.gmra.mxu0 %v742
        %v753 = vpop.f32.mrf.mxu0
        %v754 = vadd.f32 0.0, %v753
        %v755 = vpop.f32.mrf.mxu0
        %756 = vdwg.mxu0
        %v757 = vpack.c.bf16 %v754, %v754
        %v758 = vld [vmem:[#allocation2] sm:$0xf]
        %v759 = vld [vmem:[#allocation3] sm:$0xf]
        %vm760 = vcmask 64512
        %v762 = vsel %vm760, %v757, 0
        %v765 = vsel %vm760, %v758, 0
        %767 = vmatpush.bf16.xpose.msra.mxu0 0
        %768 = vmatpush.bf16.xpose.msra.mxu0 0
        %769 = vmatpush.bf16.xpose.msra.mxu0 0
        %770 = vmatpush.bf16.xpose.msra.mxu0 0
        %771 = vmatpush.bf16.xpose.msra.mxu0 0
        %772 = vmatpush.bf16.xpose.msra.mxu0 0
        %773 = vmatpush.bf16.xpose.msra.mxu0 0
        %774 = vmatpush.bf16.xpose.msra.mxu0 %v765
        %775 = vmatmul.bf16.gmra.mxu0 %v762
        %v776 = vpop.f32.mrf.mxu0
        %v777 = vadd.f32 0.0, %v776
        %v778 = vpop.f32.mrf.mxu0
        %779 = vdwg.mxu0
        %v780 = vsel %vm760, %v777, -inf
        %781 = vmax.xlane.f32.xlu0 %v780
        %v782 = vpop.xlane.xlu0 %781
        %v783 = vsub.f32 %v777, %v782
        %v784 = vmul.f32 %v783, 1.442695
        %v785 = vpow.pop %v784
        %v786 = vsel %vm760, %v785, 0.0
        %787 = vadd.xlane.f32.xlu0 %v786
        %v788 = vpop.xlane.xlu0 %787
        %v789 = vrcp.pop %v788
        %v790 = vmul.f32 %v788, %v789
        %v791 = vsub.f32 1.0, %v790
        %v792 = vmul.f32 %v789, %v791
        %v793 = vadd.f32 %v789, %v792
        %vm794 = vweird.f32 %v788
        %vm795 = vweird.f32 %v789
        %vm796 = vmor %vm794, %vm795
        %v797 = vsel %vm796, %v789, %v793
        %v798 = vand.u32 2147483647, %v788
        %vm799 = vcmp.eq.f32.partialorder %v798, 8.507059e+37
        %v800 = vand.u32 %v788, 2147483648
        %v801 = vor.u32 1.1754944e-38, %v800
        %v802 = vsel %vm799, %v801, %v797
        %v803 = vmul.f32 %v785, %v802
        %v804 = vpack.c.bf16 %v803, %v803
        %v806 = vsel %vm760, %v804, 0
        %vm808 = vcmask 1043456
        %v810 = vsel %vm808, %v759, 0
        %812 = vmatpush.bf16.msra.mxu0 0
        %813 = vmatpush.bf16.msra.mxu0 0
        %814 = vmatpush.bf16.msra.mxu0 0
        %815 = vmatpush.bf16.msra.mxu0 0
        %816 = vmatpush.bf16.msra.mxu0 0
        %817 = vmatpush.bf16.msra.mxu0 0
        %818 = vmatpush.bf16.msra.mxu0 0
        %819 = vmatpush.bf16.msra.mxu0 %v810
        %820 = vmatmul.bf16.gmra.mxu0 %v806
        %v821 = vpop.f32.mrf.mxu0
        %v822 = vadd.f32 0.0, %v821
        %v823 = vpop.f32.mrf.mxu0
        %824 = vdwg.mxu0
        %v825 = vpack.c.bf16 %v822, %v822
        %vm826 = vcmask 60416
        %827 = vst.msk [vmem:[#allocation4] sm:$0xf] %vm826, %v825
        %v829 = vunpack.c.l.b16 %v757
        %v830 = vpack.c.b16 %v829, %v829
        %831 = vrot.lane.b32.xlu0 %v830, 120
        %v832 = vpop.permute.xlu0 %831
        %v834 = vunpack.c.l.b16 %v758
        %v835 = vpack.c.b16 %v834, %v834
        %836 = vrot.lane.b32.xlu0 %v835, 120
        %v837 = vpop.permute.xlu0 %836
        %v839 = vsel %vm760, %v832, 0
        %v842 = vsel %vm760, %v837, 0
        %844 = vmatpush.bf16.xpose.msra.mxu0 0
        %845 = vmatpush.bf16.xpose.msra.mxu0 0
        %846 = vmatpush.bf16.xpose.msra.mxu0 0
        %847 = vmatpush.bf16.xpose.msra.mxu0 0
        %848 = vmatpush.bf16.xpose.msra.mxu0 0
        %849 = vmatpush.bf16.xpose.msra.mxu0 0
        %850 = vmatpush.bf16.xpose.msra.mxu0 0
        %851 = vmatpush.bf16.xpose.msra.mxu0 %v842
        %852 = vmatmul.bf16.gmra.mxu0 %v839
        %v853 = vpop.f32.mrf.mxu0
        %v854 = vadd.f32 0.0, %v853
        %v855 = vpop.f32.mrf.mxu0
        %856 = vdwg.mxu0
        %v857 = vsel %vm760, %v854, -inf
        %858 = vmax.xlane.f32.xlu0 %v857
        %v859 = vpop.xlane.xlu0 %858
        %v860 = vsub.f32 %v854, %v859
        %v861 = vmul.f32 %v860, 1.442695
        %v862 = vpow.pop %v861
        %v863 = vsel %vm760, %v862, 0.0
        %864 = vadd.xlane.f32.xlu0 %v863
        %v865 = vpop.xlane.xlu0 %864
        %v866 = vrcp.pop %v865
        %v867 = vmul.f32 %v865, %v866
        %v868 = vsub.f32 1.0, %v867
        %v869 = vmul.f32 %v866, %v868
        %v870 = vadd.f32 %v866, %v869
        %vm871 = vweird.f32 %v865
        %vm872 = vweird.f32 %v866
        %vm873 = vmor %vm871, %vm872
        %v874 = vsel %vm873, %v866, %v870
        %v875 = vand.u32 2147483647, %v865
        %vm876 = vcmp.eq.f32.partialorder %v875, 8.507059e+37
        %v877 = vand.u32 %v865, 2147483648
        %v878 = vor.u32 1.1754944e-38, %v877
        %v879 = vsel %vm876, %v878, %v874
        %v880 = vmul.f32 %v862, %v879
        %v881 = vpack.c.bf16 %v880, %v880
        %v883 = vunpack.c.l.b16 %v759
        %v884 = vpack.c.b16 %v883, %v883
        %885 = vrot.lane.b32.xlu0 %v884, 120
        %v886 = vpop.permute.xlu0 %885
        %v888 = vsel %vm760, %v881, 0
        %v891 = vsel %vm808, %v886, 0
        %893 = vmatpush.bf16.msra.mxu0 0
        %894 = vmatpush.bf16.msra.mxu0 0
        %895 = vmatpush.bf16.msra.mxu0 0
        %896 = vmatpush.bf16.msra.mxu0 0
        %897 = vmatpush.bf16.msra.mxu0 0
        %898 = vmatpush.bf16.msra.mxu0 0
        %899 = vmatpush.bf16.msra.mxu0 0
        %900 = vmatpush.bf16.msra.mxu0 %v891
        %901 = vmatmul.bf16.gmra.mxu0 %v888
        %v902 = vpop.f32.mrf.mxu0
        %v903 = vadd.f32 0.0, %v902
        %v904 = vpop.f32.mrf.mxu0
        %905 = vdwg.mxu0
        %v906 = vpack.c.bf16 %v903, %v903
        %908 = vrot.lane.b32.xlu0 %v906, 8
        %v909 = vpop.permute.xlu0 %908
        %vm911 = vcmask 126016
        %912 = vst.msk [vmem:[#allocation4] sm:$0xf] %vm911, %v909
        %913 = vrot.lane.b32.xlu0 %v830, 112
        %v914 = vpop.permute.xlu0 %913
        %915 = vrot.lane.b32.xlu0 %v835, 112
        %v916 = vpop.permute.xlu0 %915
        %v918 = vsel %vm760, %v914, 0
        %v921 = vsel %vm760, %v916, 0
        %923 = vmatpush.bf16.xpose.msra.mxu0 0
        %924 = vmatpush.bf16.xpose.msra.mxu0 0
        %925 = vmatpush.bf16.xpose.msra.mxu0 0
        %926 = vmatpush.bf16.xpose.msra.mxu0 0
        %927 = vmatpush.bf16.xpose.msra.mxu0 0
        %928 = vmatpush.bf16.xpose.msra.mxu0 0
        %929 = vmatpush.bf16.xpose.msra.mxu0 0
        %930 = vmatpush.bf16.xpose.msra.mxu0 %v921
        %931 = vmatmul.bf16.gmra.mxu0 %v918
        %v932 = vpop.f32.mrf.mxu0
        %v933 = vadd.f32 0.0, %v932
        %v934 = vpop.f32.mrf.mxu0
        %935 = vdwg.mxu0
        %v936 = vsel %vm760, %v933, -inf
        %937 = vmax.xlane.f32.xlu0 %v936
        %v938 = vpop.xlane.xlu0 %937
        %v939 = vsub.f32 %v933, %v938
        %v940 = vmul.f32 %v939, 1.442695
        %v941 = vpow.pop %v940
        %v942 = vsel %vm760, %v941, 0.0
        %943 = vadd.xlane.f32.xlu0 %v942
        %v944 = vpop.xlane.xlu0 %943
        %v945 = vrcp.pop %v944
        %v946 = vmul.f32 %v944, %v945
        %v947 = vsub.f32 1.0, %v946
        %v948 = vmul.f32 %v945, %v947
        %v949 = vadd.f32 %v945, %v948
        %vm950 = vweird.f32 %v944
        %vm951 = vweird.f32 %v945
        %vm952 = vmor %vm950, %vm951
        %v953 = vsel %vm952, %v945, %v949
        %v954 = vand.u32 2147483647, %v944
        %vm955 = vcmp.eq.f32.partialorder %v954, 8.507059e+37
        %v956 = vand.u32 %v944, 2147483648
        %v957 = vor.u32 1.1754944e-38, %v956
        %v958 = vsel %vm955, %v957, %v953
        %v959 = vmul.f32 %v941, %v958
        %v960 = vpack.c.bf16 %v959, %v959
        %961 = vrot.lane.b32.xlu0 %v884, 112
        %v962 = vpop.permute.xlu0 %961
        %v964 = vsel %vm760, %v960, 0
        %v967 = vsel %vm808, %v962, 0
        %969 = vmatpush.bf16.msra.mxu0 0
        %970 = vmatpush.bf16.msra.mxu0 0
        %971 = vmatpush.bf16.msra.mxu0 0
        %972 = vmatpush.bf16.msra.mxu0 0
        %973 = vmatpush.bf16.msra.mxu0 0
        %974 = vmatpush.bf16.msra.mxu0 0
        %975 = vmatpush.bf16.msra.mxu0 0
        %976 = vmatpush.bf16.msra.mxu0 %v967
        %977 = vmatmul.bf16.gmra.mxu0 %v964
        %v978 = vpop.f32.mrf.mxu0
        %v979 = vadd.f32 0.0, %v978
        %v980 = vpop.f32.mrf.mxu0
        %981 = vdwg.mxu0
        %v982 = vpack.c.bf16 %v979, %v979
        %984 = vrot.lane.b32.xlu0 %v982, 16
        %v985 = vpop.permute.xlu0 %984
        %vm987 = vcmask 191616
        %988 = vst.msk [vmem:[#allocation4] sm:$0xf] %vm987, %v985
        %989 = vrot.lane.b32.xlu0 %v830, 104
        %v990 = vpop.permute.xlu0 %989
        %991 = vrot.lane.b32.xlu0 %v835, 104
        %v992 = vpop.permute.xlu0 %991
        %v994 = vsel %vm760, %v990, 0
        %v997 = vsel %vm760, %v992, 0
        %999 = vmatpush.bf16.xpose.msra.mxu0 0
        %1000 = vmatpush.bf16.xpose.msra.mxu0 0
        %1001 = vmatpush.bf16.xpose.msra.mxu0 0
        %1002 = vmatpush.bf16.xpose.msra.mxu0 0
        %1003 = vmatpush.bf16.xpose.msra.mxu0 0
        %1004 = vmatpush.bf16.xpose.msra.mxu0 0
        %1005 = vmatpush.bf16.xpose.msra.mxu0 0
        %1006 = vmatpush.bf16.xpose.msra.mxu0 %v997
        %1007 = vmatmul.bf16.gmra.mxu0 %v994
        %v1008 = vpop.f32.mrf.mxu0
        %v1009 = vadd.f32 0.0, %v1008
        %v1010 = vpop.f32.mrf.mxu0
        %1011 = vdwg.mxu0
        %v1012 = vsel %vm760, %v1009, -inf
        %1013 = vmax.xlane.f32.xlu0 %v1012
        %v1014 = vpop.xlane.xlu0 %1013
        %v1015 = vsub.f32 %v1009, %v1014
        %v1016 = vmul.f32 %v1015, 1.442695
        %v1017 = vpow.pop %v1016
        %v1018 = vsel %vm760, %v1017, 0.0
        %1019 = vadd.xlane.f32.xlu0 %v1018
        %v1020 = vpop.xlane.xlu0 %1019
        %v1021 = vrcp.pop %v1020
        %v1022 = vmul.f32 %v1020, %v1021
        %v1023 = vsub.f32 1.0, %v1022
        %v1024 = vmul.f32 %v1021, %v1023
        %v1025 = vadd.f32 %v1021, %v1024
        %vm1026 = vweird.f32 %v1020
        %vm1027 = vweird.f32 %v1021
        %vm1028 = vmor %vm1026, %vm1027
        %v1029 = vsel %vm1028, %v1021, %v1025
        %v1030 = vand.u32 2147483647, %v1020
        %vm1031 = vcmp.eq.f32.partialorder %v1030, 8.507059e+37
        %v1032 = vand.u32 %v1020, 2147483648
        %v1033 = vor.u32 1.1754944e-38, %v1032
        %v1034 = vsel %vm1031, %v1033, %v1029
        %v1035 = vmul.f32 %v1017, %v1034
        %v1036 = vpack.c.bf16 %v1035, %v1035
        %1037 = vrot.lane.b32.xlu0 %v884, 104
        %v1038 = vpop.permute.xlu0 %1037
        %v1040 = vsel %vm760, %v1036, 0
        %v1043 = vsel %vm808, %v1038, 0
        %1045 = vmatpush.bf16.msra.mxu0 0
        %1046 = vmatpush.bf16.msra.mxu0 0
        %1047 = vmatpush.bf16.msra.mxu0 0
        %1048 = vmatpush.bf16.msra.mxu0 0
        %1049 = vmatpush.bf16.msra.mxu0 0
        %1050 = vmatpush.bf16.msra.mxu0 0
        %1051 = vmatpush.bf16.msra.mxu0 0
        %1052 = vmatpush.bf16.msra.mxu0 %v1043
        %1053 = vmatmul.bf16.gmra.mxu0 %v1040
        %v1054 = vpop.f32.mrf.mxu0
        %v1055 = vadd.f32 0.0, %v1054
        %v1056 = vpop.f32.mrf.mxu0
        %1057 = vdwg.mxu0
        %v1058 = vpack.c.bf16 %v1055, %v1055
        %1060 = vrot.lane.b32.xlu0 %v1058, 24
        %v1061 = vpop.permute.xlu0 %1060
        %vm1063 = vcmask 257216
        %1064 = vst.msk [vmem:[#allocation4] sm:$0xf] %vm1063, %v1061
        %v1065 = vld [vmem:[#allocation4] sm:$0xf]
        %v1066 = vld [vmem:[#allocation10] sm:$0xf]
        %v1067 = vld [vmem:[#allocation10 + $0x4] sm:$0xf]
        %v1068 = vld [vmem:[#allocation10 + $0x8] sm:$0xf]
        %v1069 = vld [vmem:[#allocation10 + $0xc] sm:$0xf]
        %v1074 = vunpack.c.l.b16 %v1066
        %v1075 = vunpack.c.l.b16 %v1067
        %v1076 = vunpack.c.l.b16 %v1068
        %v1077 = vunpack.c.l.b16 %v1069
        %v1078 = vpack.c.b16 %v1075, %v1074
        %v1079 = vpack.c.b16 %v1077, %v1076
        %v1083 = vsel %vm686, %v1065, 0
        %1085 = vmatpush.bf16.msra.mxu0 0
        %1086 = vmatpush.bf16.msra.mxu0 0
        %1087 = vmatpush.bf16.msra.mxu0 0
        %1088 = vmatpush.bf16.msra.mxu0 0
        %1089 = vmatpush.bf16.msra.mxu0 0
        %1090 = vmatpush.bf16.msra.mxu0 0
        %1091 = vmatpush.bf16.msra.mxu0 %v1079
        %1092 = vmatpush.bf16.msra.mxu0 %v1078
        %1093 = vmatmul.bf16.gmra.mxu0 %v1083
        %v1094 = vpop.f32.mrf.mxu0
        %v1095 = vadd.f32 0.0, %v1094
        %v1096 = vpop.f32.mrf.mxu0
        %1097 = vdwg.mxu0
        %v1098 = vadd.f32 %v685, %v1095
        %v1099 = vld [vmem:[%s8] sm:$0x1]
        %v1100 = vld [vmem:[%s9] sm:$0x1]
        %v1101 = vsel %vm686, %v1098, 0.0
        %1102 = vadd.xlane.f32.xlu0 %v1101
        %v1103 = vpop.xlane.xlu0 %1102
        %v1104 = vmul.f32 %v1103, %v696
        %v1105 = vsub.f32 %v1098, %v1104
        %v1106 = vmul.f32 %v1105, %v1105
        %v1107 = vsel %vm686, %v1106, 0.0
        %1108 = vadd.xlane.f32.xlu0 %v1107
        %v1109 = vpop.xlane.xlu0 %1108
        %v1110 = vmul.f32 %v1109, %v696
        %v1111 = vadd.f32 %v1110, 1e-05
        %v1112 = vrsqrt.pop %v1111
        %v1113 = vmul.f32 %v1112, %v1111
        %v1114 = vmul.f32 %v1113, %v1112
        %v1115 = vmul.f32 0.5, %v1114
        %v1116 = vsub.f32 1.5, %v1115
        %v1117 = vmul.f32 %v1112, %v1116
        %vm1118 = vweird.f32 %v1111
        %vm1119 = vweird.f32 %v1112
        %vm1120 = vmor %vm1118, %vm1119
        %v1121 = vsel %vm1120, %v1112, %v1117
        %v1122 = vmul.f32 %v1105, %v1121
        %v1124 = vperm.slane %v1099, 0
        %v1126 = vmul.f32 %v1122, %v1124
        %v1128 = vperm.slane %v1100, 0
        %v1130 = vadd.f32 %v1126, %v1128
        %v1131 = vpack.c.bf16 %v1130, %v1130
        %v1132 = vld [vmem:[#allocation11] sm:$0xf]
        %v1133 = vld [vmem:[#allocation11 + $0x4] sm:$0xf]
        %v1134 = vld [vmem:[#allocation11 + $0x8] sm:$0xf]
        %v1135 = vld [vmem:[#allocation11 + $0xc] sm:$0xf]
        %v1136 = vld [vmem:[%s11] sm:$0x1]
        %v1138 = vperm.slane %v1136, 0
        %v1144 = vunpack.c.l.b16 %v1132
        %v1145 = vunpack.c.l.b16 %v1133
        %v1146 = vunpack.c.l.b16 %v1134
        %v1147 = vunpack.c.l.b16 %v1135
        %v1148 = vpack.c.b16 %v1145, %v1144
        %v1149 = vpack.c.b16 %v1147, %v1146
        %v1153 = vsel %vm686, %v1131, 0
        %1155 = vmatpush.bf16.msra.mxu0 0
        %1156 = vmatpush.bf16.msra.mxu0 0
        %1157 = vmatpush.bf16.msra.mxu0 0
        %1158 = vmatpush.bf16.msra.mxu0 0
        %1159 = vmatpush.bf16.msra.mxu0 0
        %1160 = vmatpush.bf16.msra.mxu0 0
        %1161 = vmatpush.bf16.msra.mxu0 %v1149
        %1162 = vmatpush.bf16.msra.mxu0 %v1148
        %1163 = vmatmul.bf16.gmra.mxu0 %v1153
        %v1164 = vpop.f32.mrf.mxu0
        %v1165 = vadd.f32 %v1138, %v1164
        %v1166 = vpop.f32.mrf.mxu0
        %1167 = vdwg.mxu0
        %v1168 = vmax.f32 %v1165, 0.0
        %v1169 = vpack.c.bf16 %v1168, %v1168
        %v1170 = vld [vmem:[%s12] sm:$0xf]
        %v1171 = vld [vmem:[%s12 + $0x4] sm:$0xf]
        %v1172 = vld [vmem:[%s12 + $0x8] sm:$0xf]
        %v1173 = vld [vmem:[%s12 + $0xc] sm:$0xf]
        %v1174 = vld [vmem:[%s12 + $0x10] sm:$0xf]
        %v1175 = vld [vmem:[%s12 + $0x14] sm:$0xf]
        %v1176 = vld [vmem:[%s12 + $0x18] sm:$0xf]
        %v1177 = vld [vmem:[%s12 + $0x1c] sm:$0xf]
        %v1178 = vld [vmem:[%s13] sm:$0x1]
        %v1180 = vperm.slane %v1178, 0
        %v1190 = vunpack.c.l.b16 %v1170
        %v1191 = vunpack.c.l.b16 %v1171
        %v1192 = vunpack.c.l.b16 %v1172
        %v1193 = vunpack.c.l.b16 %v1173
        %v1194 = vunpack.c.l.b16 %v1174
        %v1195 = vunpack.c.l.b16 %v1175
        %v1196 = vunpack.c.l.b16 %v1176
        %v1197 = vunpack.c.l.b16 %v1177
        %v1198 = vpack.c.b16 %v1191, %v1190
        %v1199 = vpack.c.b16 %v1193, %v1192
        %v1200 = vpack.c.b16 %v1195, %v1194
        %v1201 = vpack.c.b16 %v1197, %v1196
        %vm1206 = vcmask 523264
        %v1208 = vsel %vm1206, %v1169, 0
        %1210 = vmatpush.bf16.msra.mxu0 0
        %1211 = vmatpush.bf16.msra.mxu0 0
        %1212 = vmatpush.bf16.msra.mxu0 0
        %1213 = vmatpush.bf16.msra.mxu0 0
        %1214 = vmatpush.bf16.msra.mxu0 %v1201
        %1215 = vmatpush.bf16.msra.mxu0 %v1200
        %1216 = vmatpush.bf16.msra.mxu0 %v1199
        %1217 = vmatpush.bf16.msra.mxu0 %v1198
        %1218 = vmatmul.bf16.gmra.mxu0 %v1208
        %v1219 = vpop.f32.mrf.mxu0
        %v1220 = vadd.f32 %v1180, %v1219
        %v1221 = vpop.f32.mrf.mxu0
        %1222 = vdwg.mxu0
        %v1223 = vadd.f32 %v1098, %v1220
        %1224 = vst.msk [vmem:[%s560] sm:$0xff] %vm686, %v1223
        %s1225 = sand.u32 %s359, 1
        %s1226 = scalar_lea.sflag [#allocation7], %s1225
        %s1227 = sand.u32 %s359, 1
        %s1228 = smul.addr %s1227, 8
        %s1229 = scalar_lea.vmem [#allocation13], %s1228
        // Predicated region
        $region97: #{tpu_custom_call.1} parent=75 // pred_check
          %p1230 = pneg %p369
        $region98: #{tpu_custom_call.1} parent=75 // pred_check_branch
          %1232 = sbr.rel (%p1230) target = $region100
        $region99: #{tpu_custom_call.1} parent=75 // pred_region
          %1234 = vsyncadd %s1226, 0
          %s1235 = sadd.s32 %s36, %s35
          %s1236 = smul.addr %s1235, 8
          %s1237 = scalar_lea.hbm %s14, %s1236
          %s1239 = sshll.u32 %s1229, 4
          %s1240 = int_to_ptr.vmem [resolvable:$true] %s1239
          %s1241 = sshll.u32 %s1237, 4
          %s1242 = int_to_ptr.hbm [resolvable:$true] %s1241
          %1244 = dma.vmem_to_hbm [thread:$0]  %s1240, 128, %s1242, %s1226
        $region100: #{tpu_custom_call.1} parent=75 // pred_fallthru
          _
      $region76: #{tpu_custom_call.1} parent=5 // pred_fallthru
        _
      %p1245 = scmp.le.s32.totalorder 2, %s26
      // Predicated region
      $region101: #{tpu_custom_call.1} parent=5 // pred_check
        %p1246 = pneg %p1245
      $region102: #{tpu_custom_call.1} parent=5 // pred_check_branch
        %1248 = sbr.rel (%p1246) target = $region104
      $region103: #{tpu_custom_call.1} parent=5 // pred_region
        %s1249 = ssub.s32 %s26, 2
        // Predicated region
        $region105: #{tpu_custom_call.1} parent=103 // pred_check
          %p1250 = pneg %p375
        $region106: #{tpu_custom_call.1} parent=103 // pred_check_branch
          %1252 = sbr.rel (%p1250) target = $region108
        $region107: #{tpu_custom_call.1} parent=103 // pred_region
          %s1253 = sand.u32 %s360, 1
          %s1254 = scalar_lea.sflag [#allocation7], %s1253
          %s1255 = sand.u32 %s360, 1
          %s1256 = smul.addr %s1255, 8
          %s1257 = scalar_lea.vmem [#allocation13], %s1256
          %1259 = dma.done %s1254, 128
        $region108: #{tpu_custom_call.1} parent=103 // pred_fallthru
          _
      $region104: #{tpu_custom_call.1} parent=5 // pred_fallthru
        _
    $region6: #{tpu_custom_call.1} parent=1 // loop_footer
      %s30 = sadd.s32 1, %s26
    $region7: #{tpu_custom_call.1} parent=1 // loop_footer_branch
      %25 = sbr.rel target = $region3
    $region8: #{tpu_custom_call.1} parent=1 // loop_exit
      _
    %1260 = vsyncpa [#allocation6], 1
    %s1261 = scalar_lea.sflag [#allocation6], 1
    %1262 = vsyncpa %s1261, 1
    %1263 = vsyncpa [#allocation9], 1
    %1264 = vsyncpa [#allocation12], 1
    %1265 = vsyncpa [#allocation7], 1
    %s1266 = scalar_lea.sflag [#allocation7], 1
    %1267 = vsyncpa %s1266, 1

</llo_original>
